<compile_context>
chip_gen: v7x
topology: tpu7x:2x2x1
jax: 0.10.0
libtpu: 0.0.40
codegen_flags: <defaults>
</compile_context>

<pallas_src>
import functools
import math

import jax
import jax.numpy as jnp
from jax.experimental import pallas as pl
from jax.experimental.pallas import tpu as pltpu


def _graph_filter_db_kernel(x_ref, s_ref, h_ref, b_ref, y_ref,
                            carry_ref, z_ref, *, Tt, E, K, G, F, N):
    # x_ref:     [1, Tt, G, N]
    # s_ref:     [1, Tt, E, N, N]
    # h_ref:     [F, R]   with R = G + E*(K-1)*G (k=0 weights pre-summed over e)
    # b_ref:     [F, 1]
    # y_ref:     [1, 1, F, Tt*N]
    # carry_ref: [max(K-1,1), E, G, N]  f32, persists across time tiles
    # z_ref:     [R, Tt*N]              f32, all taps for the fused matmul
    t_idx = pl.program_id(1)
    TN = Tt * N

    # New batch element / first time tile: zero the delay-line state.
    @pl.when(t_idx == 0)
    def _():
        carry_ref[...] = jnp.zeros_like(carry_ref)

    x0 = x_ref[0].astype(jnp.float32)                          # [Tt, G, N]

    # k = 0 tap (shared across edge features; weights summed over e on host).
    z_ref[0:G, :] = jnp.transpose(x0, (1, 0, 2)).reshape(G, TN)

    if K > 1:
        S_all = s_ref[0]                                       # [Tt, E, N, N] (native dtype)

        # Shifted level-0 signal, built ONCE and shared across e; the tile
        # boundary value comes from the carried delay-line state.
        c0 = carry_ref[0, 0]                                   # x_0(t_prev_last) or 0
        carry_ref[0, 0] = x0[Tt - 1]
        x0_shift = jnp.concatenate([c0[None], x0[: Tt - 1]], axis=0)   # [Tt, G, N]

        for e in range(E):
            S_e = S_all[:, e]                                  # [Tt, N, N]
            prev_shift = x0_shift                              # x_{k-1}(t-1), f32
            for k in range(1, K):
                # x_k(t) = x_{k-1}(t-1) @ S_e(t)   (t-batched MXU matmuls)
                xk = jnp.einsum("tgm,tmn->tgn", prev_shift, S_e,
                                preferred_element_type=jnp.float32)    # [Tt, G, N]
                row = G + (e * (K - 1) + (k - 1)) * G
                z_ref[row:row + G, :] = jnp.transpose(xk, (1, 0, 2)).reshape(G, TN)
                if k < K - 1:
                    ck = carry_ref[k, e]                       # x_k(t_prev_last)
                    carry_ref[k, e] = xk[Tt - 1]
                    prev_shift = jnp.concatenate([ck[None], xk[: Tt - 1]], axis=0)

    # Fused filter contraction: one lane-dense MXU matmul [F, R] @ [R, Tt*N].
    acc = jnp.dot(h_ref[...], z_ref[...],
                  preferred_element_type=jnp.float32)          # [F, Tt*N]
    acc = acc + b_ref[...].astype(jnp.float32)                 # bias broadcasts over (t, n)
    y_ref[0, 0] = acc.astype(y_ref.dtype)


def graph_filter_db_forward(x, S, weight, bias=None, *, block_t=None):
    """Pallas implementation of GraphFilter_DB.forward (LSIGF_DB + bias)."""
    B, T, G, N = x.shape
    assert S.shape[0] == B and S.shape[1] == T and S.shape[3] == N and S.shape[4] == N
    E = S.shape[2]
    F, E_w, K, G_w = weight.shape
    assert E_w == E and G_w == G
    if bias is None:
        bias = jnp.zeros((F, 1), dtype=weight.dtype)
    assert bias.shape == (F, 1)

    Tt = T if block_t is None else block_t
    assert T % Tt == 0
    n_t = T // Tt
    R = G + E * (K - 1) * G

    # k = 0 is applied to the same (e-independent) x for every edge feature,
    # so sum those weights over e; remaining taps keep (e, k, g) ordering that
    # matches the Z-scratch row layout in the kernel.
    h0 = weight[:, :, 0, :].sum(axis=1)                        # [F, G]
    if K > 1:
        hk = weight[:, :, 1:, :].reshape(F, E * (K - 1) * G)   # [F, E*(K-1)*G]
        hmat = jnp.concatenate([h0, hk], axis=1)               # [F, R]
    else:
        hmat = h0
    hmat = hmat.astype(jnp.float32)

    kernel = functools.partial(_graph_filter_db_kernel,
                               Tt=Tt, E=E, K=K, G=G, F=F, N=N)

    out = pl.pallas_call(
        kernel,
        out_shape=jax.ShapeDtypeStruct((B, n_t, F, Tt * N), x.dtype),
        grid_spec=pltpu.PrefetchScalarGridSpec(
            num_scalar_prefetch=0,
            grid=(B, n_t),
            in_specs=[
                pl.BlockSpec((1, Tt, G, N), lambda b, t: (b, t, 0, 0)),
                pl.BlockSpec((1, Tt, E, N, N), lambda b, t: (b, t, 0, 0, 0)),
                pl.BlockSpec((F, R), lambda b, t: (0, 0)),
                pl.BlockSpec((F, 1), lambda b, t: (0, 0)),
            ],
            out_specs=pl.BlockSpec((1, 1, F, Tt * N), lambda b, t: (b, t, 0, 0)),
            scratch_shapes=[
                pltpu.VMEM((max(K - 1, 1), E, G, N), jnp.float32),  # delay-line carry
                pltpu.VMEM((R, Tt * N), jnp.float32),               # fused-tap matrix Z
            ],
        ),
        compiler_params=pltpu.CompilerParams(
            # B is independent (megacore-parallel); the time-tile axis carries
            # the delay-line state and must run sequentially.
            dimension_semantics=("parallel", "arbitrary"),
        ),
    )(x, S, hmat, bias)

    # lane-dense [B, n_t, F, Tt*N]  ->  [B, T, F, N]
    y = out.reshape(B, n_t, F, Tt, N).transpose(0, 1, 3, 2, 4).reshape(B, T, F, N)
    return y


def lsigf_db_reference(h, S, x, b=None):
    """Pure-JAX mirror of the PyTorch LSIGF_DB for verification."""
    F, E, K, G = h.shape
    B, T, _, N, _ = S.shape
    xk = jnp.broadcast_to(x[:, :, None, :, :], (B, T, E, G, N))
    z = xk[:, :, None]                                   # [B, T, 1, E, G, N]
    for _ in range(1, K):
        xk = xk[:, : T - 1]
        zero = jnp.zeros((B, 1, E, G, N), xk.dtype)
        xk = jnp.concatenate([zero, xk], axis=1)
        xk = jnp.matmul(xk, S)                           # [B, T, E, G, N]
        z = jnp.concatenate([z, xk[:, :, None]], axis=2)
    z = z.transpose(0, 1, 5, 3, 2, 4).reshape(B, T, N, E * K * G)
    hh = h.reshape(F, E * K * G).T
    y = jnp.matmul(z, hh)                                # [B, T, N, F]
    y = y.transpose(0, 1, 3, 2)                          # [B, T, F, N]
    if b is not None:
        y = y + b
    return y


if __name__ == "__main__":
    # Small shapes consistent with the module's forward:
    B, T, E, G, F, K, N = 2, 8, 2, 4, 6, 3, 16

    key = jax.random.PRNGKey(0)
    k_w, k_b, k_x, k_s = jax.random.split(key, 4)

    # Deterministic parameter init, matching reset_parameters():
    stdv = 1.0 / math.sqrt(G * K)
    weight = jax.random.uniform(
        k_w, (F, E, K, G), jnp.float32, minval=-stdv, maxval=stdv
    )
    bias = jax.random.uniform(
        k_b, (F, 1), jnp.float32, minval=-stdv, maxval=stdv
    )

    # Inputs: signal x and (batch x time) GSOs.
    x = jax.random.normal(k_x, (B, T, G, N), jnp.float32)
    S = jax.random.normal(k_s, (B, T, E, N, N), jnp.float32) / math.sqrt(N)

    y_ref = lsigf_db_reference(weight, S, x, bias)

    # Run once with a single time tile (lane-dense Tt*N = 128 output slab) and
    # once with T tiled in half (exercises the carried delay-line state).
    for tt in (T, T // 2):
        y = graph_filter_db_forward(x, S, weight, bias, block_t=tt)
        y = jax.block_until_ready(y)
        assert y.shape == (B, T, F, N)
        err = float(jnp.max(jnp.abs(y - y_ref)))
        assert jnp.allclose(y, y_ref, atol=5e-4, rtol=5e-4), (tt, err)

    print("KERNEL_OK")
</pallas_src>

<mosaic_0001>
module attributes {stable_mosaic.version = 11 : i64} {
  func.func @_graph_filter_db_kernel(%arg0: i32, %arg1: i32, %arg2: memref<1x8x4x16xf32, #tpu.memory_space<vmem>>, %arg3: memref<1x8x2x16x16xf32, #tpu.memory_space<vmem>>, %arg4: memref<6x20xf32, #tpu.memory_space<vmem>>, %arg5: memref<6x1xf32, #tpu.memory_space<vmem>>, %arg6: memref<1x1x6x128xf32, #tpu.memory_space<vmem>>, %arg7: memref<2x2x4x16xf32, #tpu.memory_space<vmem>>, %arg8: memref<20x128xf32, #tpu.memory_space<vmem>>) attributes {dimension_semantics = [#tpu.dimension_semantics<parallel>, #tpu.dimension_semantics<arbitrary>], iteration_bounds = array<i64: 2, 1>, scalar_prefetch = 0 : i64, scratch_operands = 2 : i64, tpu.core_type = #tpu.core_type<tc>, window_params = [{transform_indices = @transform_0, window_bounds = array<i64: 1, 8, 4, 16>}, {transform_indices = @transform_1, window_bounds = array<i64: 1, 8, 2, 16, 16>}, {pipeline_mode = #tpu.pipeline_mode<synchronous>, transform_indices = @transform_2, window_bounds = array<i64: 6, 20>}, {pipeline_mode = #tpu.pipeline_mode<synchronous>, transform_indices = @transform_3, window_bounds = array<i64: 6, 1>}, {transform_indices = @transform_4, window_bounds = array<i64: 1, 1, 6, 128>}]} {
    %c0_i32 = arith.constant 0 : i32
    %0 = arith.cmpi eq, %arg1, %c0_i32 : i32
    %1 = arith.extui %0 : i1 to i32
    %c0_i32_0 = arith.constant 0 : i32
    %2 = arith.cmpi ne, %1, %c0_i32_0 : i32
    scf.if %2 {
      %cst_52 = arith.constant 0.000000e+00 : f32
      %69 = vector.broadcast %cst_52 : f32 to vector<2x2x4x16xf32>
      %c0_53 = arith.constant 0 : index
      %c0_54 = arith.constant 0 : index
      %c0_55 = arith.constant 0 : index
      %c0_56 = arith.constant 0 : index
      %70 = vector.load %arg7[%c0_53, %c0_54, %c0_55, %c0_56] : memref<2x2x4x16xf32, #tpu.memory_space<vmem>>, vector<2x2x4x16xf32>
      tpu.vector_store %arg7[%c0_53, %c0_54, %c0_55, %c0_56], %69 {strides = array<i32>} : memref<2x2x4x16xf32, #tpu.memory_space<vmem>>, vector<2x2x4x16xf32>,
    } else {
    }
    %c0 = arith.constant 0 : index
    %c0_1 = arith.constant 0 : index
    %c0_2 = arith.constant 0 : index
    %c0_3 = arith.constant 0 : index
    %3 = vector.load %arg2[%c0, %c0_1, %c0_2, %c0_3] : memref<1x8x4x16xf32, #tpu.memory_space<vmem>>, vector<1x8x4x16xf32>
    %4 = vector.shape_cast %3 : vector<1x8x4x16xf32> to vector<8x4x16xf32>
    %5 = tpu.transpose %4, [1, 0, 2] : vector<8x4x16xf32> -> vector<4x8x16xf32>
    %6 = vector.shape_cast %5 : vector<4x8x16xf32> to vector<4x128xf32>
    %c0_4 = arith.constant 0 : index
    %c0_5 = arith.constant 0 : index
    %7 = vector.load %arg8[%c0_4, %c0_5] : memref<20x128xf32, #tpu.memory_space<vmem>>, vector<4x128xf32>
    tpu.vector_store %arg8[%c0_4, %c0_5], %6 {strides = array<i32>} : memref<20x128xf32, #tpu.memory_space<vmem>>, vector<4x128xf32>,
    %c0_6 = arith.constant 0 : index
    %c0_7 = arith.constant 0 : index
    %c0_8 = arith.constant 0 : index
    %c0_9 = arith.constant 0 : index
    %c0_10 = arith.constant 0 : index
    %8 = vector.load %arg3[%c0_6, %c0_7, %c0_8, %c0_9, %c0_10] : memref<1x8x2x16x16xf32, #tpu.memory_space<vmem>>, vector<1x8x2x16x16xf32>
    %9 = vector.shape_cast %8 : vector<1x8x2x16x16xf32> to vector<8x2x16x16xf32>
    %c0_11 = arith.constant 0 : index
    %c0_12 = arith.constant 0 : index
    %c0_13 = arith.constant 0 : index
    %c0_14 = arith.constant 0 : index
    %10 = vector.load %arg7[%c0_11, %c0_12, %c0_13, %c0_14] : memref<2x2x4x16xf32, #tpu.memory_space<vmem>>, vector<1x1x4x16xf32>
    %11 = vector.shape_cast %10 : vector<1x1x4x16xf32> to vector<4x16xf32>
    %12 = vector.extract_strided_slice %4 {offsets = [7, 0, 0], sizes = [1, 4, 16], strides = [1, 1, 1]} : vector<8x4x16xf32> to vector<1x4x16xf32>
    %13 = vector.shape_cast %12 : vector<1x4x16xf32> to vector<4x16xf32>
    %c0_15 = arith.constant 0 : index
    %c0_16 = arith.constant 0 : index
    %c0_17 = arith.constant 0 : index
    %c0_18 = arith.constant 0 : index
    %14 = vector.load %arg7[%c0_15, %c0_16, %c0_17, %c0_18] : memref<2x2x4x16xf32, #tpu.memory_space<vmem>>, vector<1x1x4x16xf32>
    %15 = vector.shape_cast %14 : vector<1x1x4x16xf32> to vector<4x16xf32>
    %16 = vector.shape_cast %13 : vector<4x16xf32> to vector<1x1x4x16xf32>
    tpu.vector_store %arg7[%c0_15, %c0_16, %c0_17, %c0_18], %16 {strides = array<i32>} : memref<2x2x4x16xf32, #tpu.memory_space<vmem>>, vector<1x1x4x16xf32>,
    %17 = vector.shape_cast %11 : vector<4x16xf32> to vector<1x4x16xf32>
    %18 = vector.extract_strided_slice %4 {offsets = [0, 0, 0], sizes = [7, 4, 16], strides = [1, 1, 1]} : vector<8x4x16xf32> to vector<7x4x16xf32>
    %19 = tpu.concatenate %17, %18 in 0 : vector<1x4x16xf32>, vector<7x4x16xf32> -> vector<8x4x16xf32>
    %20 = vector.extract_strided_slice %9 {offsets = [0, 0, 0, 0], sizes = [8, 1, 16, 16], strides = [1, 1, 1, 1]} : vector<8x2x16x16xf32> to vector<8x1x16x16xf32>
    %21 = vector.shape_cast %20 : vector<8x1x16x16xf32> to vector<8x16x16xf32>
    "tpu.trace_start"() <{level = 10 : i32, message = "tgm,tmn->tgn"}> : () -> ()
    %cst = arith.constant dense<0.000000e+00> : vector<8x4x16xf32>
    %22 = tpu.matmul %19, %21, %cst {dimension_numbers = #tpu.dot_dimension_numbers<[2], [1], [1], [2], [0, 0, 0, 1, 1, 2], [0], [0]>} : vector<8x4x16xf32>, vector<8x16x16xf32>, vector<8x4x16xf32> -> vector<8x4x16xf32>
    "tpu.trace_stop"() : () -> ()
    %23 = tpu.transpose %22, [1, 0, 2] : vector<8x4x16xf32> -> vector<4x8x16xf32>
    %24 = vector.shape_cast %23 : vector<4x8x16xf32> to vector<4x128xf32>
    %c4 = arith.constant 4 : index
    %c0_19 = arith.constant 0 : index
    %25 = vector.load %arg8[%c4, %c0_19] : memref<20x128xf32, #tpu.memory_space<vmem>>, vector<4x128xf32>
    tpu.vector_store %arg8[%c4, %c0_19], %24 {strides = array<i32>} : memref<20x128xf32, #tpu.memory_space<vmem>>, vector<4x128xf32>,
    %c1 = arith.constant 1 : index
    %c0_20 = arith.constant 0 : index
    %c0_21 = arith.constant 0 : index
    %c0_22 = arith.constant 0 : index
    %26 = vector.load %arg7[%c1, %c0_20, %c0_21, %c0_22] : memref<2x2x4x16xf32, #tpu.memory_space<vmem>>, vector<1x1x4x16xf32>
    %27 = vector.shape_cast %26 : vector<1x1x4x16xf32> to vector<4x16xf32>
    %28 = vector.extract_strided_slice %22 {offsets = [7, 0, 0], sizes = [1, 4, 16], strides = [1, 1, 1]} : vector<8x4x16xf32> to vector<1x4x16xf32>
    %29 = vector.shape_cast %28 : vector<1x4x16xf32> to vector<4x16xf32>
    %c1_23 = arith.constant 1 : index
    %c0_24 = arith.constant 0 : index
    %c0_25 = arith.constant 0 : index
    %c0_26 = arith.constant 0 : index
    %30 = vector.load %arg7[%c1_23, %c0_24, %c0_25, %c0_26] : memref<2x2x4x16xf32, #tpu.memory_space<vmem>>, vector<1x1x4x16xf32>
    %31 = vector.shape_cast %30 : vector<1x1x4x16xf32> to vector<4x16xf32>
    %32 = vector.shape_cast %29 : vector<4x16xf32> to vector<1x1x4x16xf32>
    tpu.vector_store %arg7[%c1_23, %c0_24, %c0_25, %c0_26], %32 {strides = array<i32>} : memref<2x2x4x16xf32, #tpu.memory_space<vmem>>, vector<1x1x4x16xf32>,
    %33 = vector.shape_cast %27 : vector<4x16xf32> to vector<1x4x16xf32>
    %34 = vector.extract_strided_slice %22 {offsets = [0, 0, 0], sizes = [7, 4, 16], strides = [1, 1, 1]} : vector<8x4x16xf32> to vector<7x4x16xf32>
    %35 = tpu.concatenate %33, %34 in 0 : vector<1x4x16xf32>, vector<7x4x16xf32> -> vector<8x4x16xf32>
    "tpu.trace_start"() <{level = 10 : i32, message = "tgm,tmn->tgn"}> : () -> ()
    %cst_27 = arith.constant dense<0.000000e+00> : vector<8x4x16xf32>
    %36 = tpu.matmul %35, %21, %cst_27 {dimension_numbers = #tpu.dot_dimension_numbers<[2], [1], [1], [2], [0, 0, 0, 1, 1, 2], [0], [0]>} : vector<8x4x16xf32>, vector<8x16x16xf32>, vector<8x4x16xf32> -> vector<8x4x16xf32>
    "tpu.trace_stop"() : () -> ()
    %37 = tpu.transpose %36, [1, 0, 2] : vector<8x4x16xf32> -> vector<4x8x16xf32>
    %38 = vector.shape_cast %37 : vector<4x8x16xf32> to vector<4x128xf32>
    %c8 = arith.constant 8 : index
    %c0_28 = arith.constant 0 : index
    %39 = vector.load %arg8[%c8, %c0_28] : memref<20x128xf32, #tpu.memory_space<vmem>>, vector<4x128xf32>
    tpu.vector_store %arg8[%c8, %c0_28], %38 {strides = array<i32>} : memref<20x128xf32, #tpu.memory_space<vmem>>, vector<4x128xf32>,
    %40 = vector.extract_strided_slice %9 {offsets = [0, 1, 0, 0], sizes = [8, 1, 16, 16], strides = [1, 1, 1, 1]} : vector<8x2x16x16xf32> to vector<8x1x16x16xf32>
    %41 = vector.shape_cast %40 : vector<8x1x16x16xf32> to vector<8x16x16xf32>
    "tpu.trace_start"() <{level = 10 : i32, message = "tgm,tmn->tgn"}> : () -> ()
    %cst_29 = arith.constant dense<0.000000e+00> : vector<8x4x16xf32>
    %42 = tpu.matmul %19, %41, %cst_29 {dimension_numbers = #tpu.dot_dimension_numbers<[2], [1], [1], [2], [0, 0, 0, 1, 1, 2], [0], [0]>} : vector<8x4x16xf32>, vector<8x16x16xf32>, vector<8x4x16xf32> -> vector<8x4x16xf32>
    "tpu.trace_stop"() : () -> ()
    %43 = tpu.transpose %42, [1, 0, 2] : vector<8x4x16xf32> -> vector<4x8x16xf32>
    %44 = vector.shape_cast %43 : vector<4x8x16xf32> to vector<4x128xf32>
    %c12 = arith.constant 12 : index
    %c0_30 = arith.constant 0 : index
    %45 = vector.load %arg8[%c12, %c0_30] : memref<20x128xf32, #tpu.memory_space<vmem>>, vector<4x128xf32>
    tpu.vector_store %arg8[%c12, %c0_30], %44 {strides = array<i32>} : memref<20x128xf32, #tpu.memory_space<vmem>>, vector<4x128xf32>,
    %c1_31 = arith.constant 1 : index
    %c1_32 = arith.constant 1 : index
    %c0_33 = arith.constant 0 : index
    %c0_34 = arith.constant 0 : index
    %46 = vector.load %arg7[%c1_31, %c1_32, %c0_33, %c0_34] : memref<2x2x4x16xf32, #tpu.memory_space<vmem>>, vector<1x1x4x16xf32>
    %47 = vector.shape_cast %46 : vector<1x1x4x16xf32> to vector<4x16xf32>
    %48 = vector.extract_strided_slice %42 {offsets = [7, 0, 0], sizes = [1, 4, 16], strides = [1, 1, 1]} : vector<8x4x16xf32> to vector<1x4x16xf32>
    %49 = vector.shape_cast %48 : vector<1x4x16xf32> to vector<4x16xf32>
    %c1_35 = arith.constant 1 : index
    %c1_36 = arith.constant 1 : index
    %c0_37 = arith.constant 0 : index
    %c0_38 = arith.constant 0 : index
    %50 = vector.load %arg7[%c1_35, %c1_36, %c0_37, %c0_38] : memref<2x2x4x16xf32, #tpu.memory_space<vmem>>, vector<1x1x4x16xf32>
    %51 = vector.shape_cast %50 : vector<1x1x4x16xf32> to vector<4x16xf32>
    %52 = vector.shape_cast %49 : vector<4x16xf32> to vector<1x1x4x16xf32>
    tpu.vector_store %arg7[%c1_35, %c1_36, %c0_37, %c0_38], %52 {strides = array<i32>} : memref<2x2x4x16xf32, #tpu.memory_space<vmem>>, vector<1x1x4x16xf32>,
    %53 = vector.shape_cast %47 : vector<4x16xf32> to vector<1x4x16xf32>
    %54 = vector.extract_strided_slice %42 {offsets = [0, 0, 0], sizes = [7, 4, 16], strides = [1, 1, 1]} : vector<8x4x16xf32> to vector<7x4x16xf32>
    %55 = tpu.concatenate %53, %54 in 0 : vector<1x4x16xf32>, vector<7x4x16xf32> -> vector<8x4x16xf32>
    "tpu.trace_start"() <{level = 10 : i32, message = "tgm,tmn->tgn"}> : () -> ()
    %cst_39 = arith.constant dense<0.000000e+00> : vector<8x4x16xf32>
    %56 = tpu.matmul %55, %41, %cst_39 {dimension_numbers = #tpu.dot_dimension_numbers<[2], [1], [1], [2], [0, 0, 0, 1, 1, 2], [0], [0]>} : vector<8x4x16xf32>, vector<8x16x16xf32>, vector<8x4x16xf32> -> vector<8x4x16xf32>
    "tpu.trace_stop"() : () -> ()
    %57 = tpu.transpose %56, [1, 0, 2] : vector<8x4x16xf32> -> vector<4x8x16xf32>
    %58 = vector.shape_cast %57 : vector<4x8x16xf32> to vector<4x128xf32>
    %c16 = arith.constant 16 : index
    %c0_40 = arith.constant 0 : index
    %59 = vector.load %arg8[%c16, %c0_40] : memref<20x128xf32, #tpu.memory_space<vmem>>, vector<4x128xf32>
    tpu.vector_store %arg8[%c16, %c0_40], %58 {strides = array<i32>} : memref<20x128xf32, #tpu.memory_space<vmem>>, vector<4x128xf32>,
    %c0_41 = arith.constant 0 : index
    %c0_42 = arith.constant 0 : index
    %60 = vector.load %arg4[%c0_41, %c0_42] : memref<6x20xf32, #tpu.memory_space<vmem>>, vector<6x20xf32>
    %c0_43 = arith.constant 0 : index
    %c0_44 = arith.constant 0 : index
    %61 = vector.load %arg8[%c0_43, %c0_44] : memref<20x128xf32, #tpu.memory_space<vmem>>, vector<20x128xf32>
    %cst_45 = arith.constant dense<0.000000e+00> : vector<6x128xf32>
    %62 = tpu.matmul %60, %61, %cst_45 {dimension_numbers = #tpu.dot_dimension_numbers<[1], [0], [0], [1], [0, 0, 1, 1], [], []>} : vector<6x20xf32>, vector<20x128xf32>, vector<6x128xf32> -> vector<6x128xf32>
    %c0_46 = arith.constant 0 : index
    %c0_47 = arith.constant 0 : index
    %63 = vector.load %arg5[%c0_46, %c0_47] : memref<6x1xf32, #tpu.memory_space<vmem>>, vector<6x1xf32>
    %64 = vector.broadcast %63 : vector<6x1xf32> to vector<6x128xf32>
    %65 = arith.addf %62, %64 : vector<6x128xf32>
    %c0_48 = arith.constant 0 : index
    %c0_49 = arith.constant 0 : index
    %c0_50 = arith.constant 0 : index
    %c0_51 = arith.constant 0 : index
    %66 = vector.load %arg6[%c0_48, %c0_49, %c0_50, %c0_51] : memref<1x1x6x128xf32, #tpu.memory_space<vmem>>, vector<1x1x6x128xf32>
    %67 = vector.shape_cast %66 : vector<1x1x6x128xf32> to vector<6x128xf32>
    %68 = vector.shape_cast %65 : vector<6x128xf32> to vector<1x1x6x128xf32>
    tpu.vector_store %arg6[%c0_48, %c0_49, %c0_50, %c0_51], %68 {strides = array<i32>} : memref<1x1x6x128xf32, #tpu.memory_space<vmem>>, vector<1x1x6x128xf32>,
    return
  }
  func.func @transform_0(%arg0: i32, %arg1: i32) -> (i32, i32, i32, i32) {
    %c0_i32 = arith.constant 0 : i32
    %c0_i32_0 = arith.constant 0 : i32
    %c0_i32_1 = arith.constant 0 : i32
    return %arg0, %arg1, %c0_i32, %c0_i32_0 : i32, i32, i32, i32
  }
  func.func @transform_1(%arg0: i32, %arg1: i32) -> (i32, i32, i32, i32, i32) {
    %c0_i32 = arith.constant 0 : i32
    %c0_i32_0 = arith.constant 0 : i32
    %c0_i32_1 = arith.constant 0 : i32
    %c0_i32_2 = arith.constant 0 : i32
    return %arg0, %arg1, %c0_i32, %c0_i32_0, %c0_i32_1 : i32, i32, i32, i32, i32
  }
  func.func @transform_2(%arg0: i32, %arg1: i32) -> (i32, i32) {
    %c0_i32 = arith.constant 0 : i32
    %c0_i32_0 = arith.constant 0 : i32
    %c0_i32_1 = arith.constant 0 : i32
    return %c0_i32, %c0_i32_0 : i32, i32
  }
  func.func @transform_3(%arg0: i32, %arg1: i32) -> (i32, i32) {
    %c0_i32 = arith.constant 0 : i32
    %c0_i32_0 = arith.constant 0 : i32
    %c0_i32_1 = arith.constant 0 : i32
    return %c0_i32, %c0_i32_0 : i32, i32
  }
  func.func @transform_4(%arg0: i32, %arg1: i32) -> (i32, i32, i32, i32) {
    %c0_i32 = arith.constant 0 : i32
    %c0_i32_0 = arith.constant 0 : i32
    %c0_i32_1 = arith.constant 0 : i32
    return %arg0, %arg1, %c0_i32, %c0_i32_0 : i32, i32, i32, i32
  }
}

</mosaic_0001>

<llo_original>
// kernel: tpu_custom_call.1
$region0: #{tpu_custom_call.1}
  #allocation0 [shape = 'u32[]', space=smem, size = 0x4, offset = 0x4, fixed_abs, tag = 'smem constant byte address 0x4 - core index']
  #allocation1 [shape = 'u32[144,128]{1,0:T(1,128)}', space=vmem, size = 0x12000, scoped, tag = 'internal scratch']
  #allocation2 [shape = 'f32[2,2,4,16]{3,2,1,0:T(4,128)}', space=vmem, size = 0x2000, scoped, tag = 'scratch operand']
  #allocation3 [shape = 'f32[20,128]{1,0:T(8,128)}', space=vmem, size = 0x3000, scoped, tag = 'scratch operand']
  %s0 = inlined_call_operand.hbm [shape: f32[2,8,4,16], index: 0, kind: input, shape index: {}]
  %s1 = inlined_call_operand.hbm [shape: f32[2,8,2,16,16], index: 1, kind: input, shape index: {}]
  %s2 = inlined_call_operand.vmem [shape: f32[6,20], index: 2, kind: input, shape index: {}]
  %s3 = inlined_call_operand.vmem [shape: f32[6,1], index: 3, kind: input, shape index: {}]
  %s4 = inlined_call_operand.vmem [shape: f32[2,1,6,128], index: 4, kind: output, shape index: {}]
  %s5 = sld [smem:[#allocation0]]
  $region61: #{tpu_custom_call.1} parent=0
    _
  %s7 = ssub.s32 1, %s5
  %s8 = scalar_select 0, %s7, %s5
  $region1: #{tpu_custom_call.1} parent=0
    #allocation4 [shape = 'u8[32768]{0}', space=vmem, size = 0x8000, scoped, tag = 'input window, operand 0']
    #allocation5 [shape = 's32[2]{0}', space=sflag, size = 0x8, scoped, tag = 'scoped memory for tpu_custom_call.1']
    #allocation6 [shape = 'u8[262144]{0}', space=vmem, size = 0x40000, scoped, tag = 'input window, operand 1']
    #allocation7 [shape = 's32[2]{0}', space=sflag, size = 0x8, scoped, tag = 'scoped memory for tpu_custom_call.1']
    %9 = vsyncpa [#allocation5], 0
    %s10 = scalar_lea.sflag [#allocation5], 1
    %11 = vsyncpa %s10, 0
    %12 = vsyncpa [#allocation7], 0
    %s13 = scalar_lea.sflag [#allocation7], 1
    %14 = vsyncpa %s13, 0
    loop: start=0, step=1, limit=4
    $region2: #{tpu_custom_call.1} parent=1 // loop_pre_header
      _
    $region3: #{tpu_custom_call.1} parent=1 // loop_header
      %s16 = sphi 0, %s20
      %p17 = scmp.ge.s32.totalorder %s16, 4
      %s23 = sphi 0, %s35
      %s24 = sphi 0, %s31
      %s25 = sphi 0, %s23
      %s26 = sphi 0, %s24
      %s27 = sphi 0, %s25
      %s28 = sphi 0, %s26
      %s40 = sphi 0, %s42
      %s43 = sphi 0, %s40
      %s44 = sphi 0, %s43
      %s60 = sphi 0, %s44
      %s68 = sphi 0, %s70
      %s71 = sphi 0, %s68
      %s72 = sphi 0, %s71
      %s88 = sphi 0, %s72
      %s92 = sphi 0, %s92
      %s94 = sphi 0, %s92
      %s95 = sphi 0, %s94
      %s109 = sphi 0, %s95
      %s113 = sphi 0, %s113
      %s115 = sphi 0, %s113
      %s116 = sphi 0, %s115
      %s130 = sphi 0, %s116
      %s138 = sphi 0, %s140
      %s141 = sphi 0, %s138
      %s142 = sphi 0, %s141
      %s158 = sphi 0, %s142
    $region4: #{tpu_custom_call.1} parent=1 // loop_header_branch
      %19 = sbr.rel (%p17) target = $region8
    $region5: #{tpu_custom_call.1} parent=1 // loop_body
      %s21 = ssub.s32 %s16, 1
      %s22 = ssub.s32 %s16, 2
      %s29 = sadd.s32 1, %s24
      %p30 = scmp.ge.s32.totalorder %s29, 1
      %s31 = scalar_select %p30, 0, %s29
      %s32 = sadd.s32 1, %s23
      %s33 = scalar_select %p30, %s32, %s23
      %p34 = scmp.ge.s32.totalorder %s33, 2
      %s35 = scalar_select %p34, 0, %s33
      %s36 = ssub.s32 %s23, %s35
      %s37 = ssub.s32 %s24, %s31
      %s38 = sor.u32 %s36, %s37
      %p39 = scmp.eq.s32.totalorder %s38, 0
      %s41 = sadd.s32 %s40, 1
      %s42 = scalar_select %p39, %s40, %s41
      %p45 = pneg %p39
      %p46 = scmp.eq.s32.totalorder %s16, 1
      %p47 = por %p45, %p46
      %p48 = scmp.ne.s32.totalorder %s40, %s43
      %p49 = scmp.eq.s32.totalorder %s16, 0
      %p50 = por %p48, %p49
      %p51 = scmp.ne.s32.totalorder %s40, %s43
      %p52 = scmp.eq.s32.totalorder %s21, 1
      %p53 = por %p51, %p52
      %p54 = scmp.ne.s32.totalorder %s43, %s44
      %p55 = scmp.eq.s32.totalorder %s21, 0
      %p56 = por %p54, %p55
      %p57 = scmp.ne.s32.totalorder %s43, %s44
      %p58 = scmp.eq.s32.totalorder %s22, 1
      %p59 = por %p57, %p58
      %p61 = scmp.ne.s32.totalorder %s44, %s60
      %p62 = scmp.eq.s32.totalorder %s22, 0
      %p63 = por %p61, %p62
      %s64 = ssub.s32 %s23, %s35
      %s65 = ssub.s32 %s24, %s31
      %s66 = sor.u32 %s64, %s65
      %p67 = scmp.eq.s32.totalorder %s66, 0
      %s69 = sadd.s32 %s68, 1
      %s70 = scalar_select %p67, %s68, %s69
      %p73 = pneg %p67
      %p74 = scmp.eq.s32.totalorder %s16, 1
      %p75 = por %p73, %p74
      %p76 = scmp.ne.s32.totalorder %s68, %s71
      %p77 = scmp.eq.s32.totalorder %s16, 0
      %p78 = por %p76, %p77
      %p79 = scmp.ne.s32.totalorder %s68, %s71
      %p80 = scmp.eq.s32.totalorder %s21, 1
      %p81 = por %p79, %p80
      %p82 = scmp.ne.s32.totalorder %s71, %s72
      %p83 = scmp.eq.s32.totalorder %s21, 0
      %p84 = por %p82, %p83
      %p85 = scmp.ne.s32.totalorder %s71, %s72
      %p86 = scmp.eq.s32.totalorder %s22, 1
      %p87 = por %p85, %p86
      %p89 = scmp.ne.s32.totalorder %s72, %s88
      %p90 = scmp.eq.s32.totalorder %s22, 0
      %p91 = por %p89, %p90
      %s93 = sadd.s32 %s92, 1
      %p96 = scmp.eq.s32.totalorder %s16, 1
      %p97 = scmp.ne.s32.totalorder %s92, %s94
      %p98 = scmp.eq.s32.totalorder %s16, 0
      %p99 = por %p97, %p98
      %p100 = scmp.ne.s32.totalorder %s92, %s94
      %p101 = scmp.eq.s32.totalorder %s21, 1
      %p102 = por %p100, %p101
      %p103 = scmp.ne.s32.totalorder %s94, %s95
      %p104 = scmp.eq.s32.totalorder %s21, 0
      %p105 = por %p103, %p104
      %p106 = scmp.ne.s32.totalorder %s94, %s95
      %p107 = scmp.eq.s32.totalorder %s22, 1
      %p108 = por %p106, %p107
      %p110 = scmp.ne.s32.totalorder %s95, %s109
      %p111 = scmp.eq.s32.totalorder %s22, 0
      %p112 = por %p110, %p111
      %s114 = sadd.s32 %s113, 1
      %p117 = scmp.eq.s32.totalorder %s16, 1
      %p118 = scmp.ne.s32.totalorder %s113, %s115
      %p119 = scmp.eq.s32.totalorder %s16, 0
      %p120 = por %p118, %p119
      %p121 = scmp.ne.s32.totalorder %s113, %s115
      %p122 = scmp.eq.s32.totalorder %s21, 1
      %p123 = por %p121, %p122
      %p124 = scmp.ne.s32.totalorder %s115, %s116
      %p125 = scmp.eq.s32.totalorder %s21, 0
      %p126 = por %p124, %p125
      %p127 = scmp.ne.s32.totalorder %s115, %s116
      %p128 = scmp.eq.s32.totalorder %s22, 1
      %p129 = por %p127, %p128
      %p131 = scmp.ne.s32.totalorder %s116, %s130
      %p132 = scmp.eq.s32.totalorder %s22, 0
      %p133 = por %p131, %p132
      %s134 = ssub.s32 %s23, %s35
      %s135 = ssub.s32 %s24, %s31
      %s136 = sor.u32 %s134, %s135
      %p137 = scmp.eq.s32.totalorder %s136, 0
      %s139 = sadd.s32 %s138, 1
      %s140 = scalar_select %p137, %s138, %s139
      %p143 = pneg %p137
      %p144 = scmp.eq.s32.totalorder %s16, 1
      %p145 = por %p143, %p144
      %p146 = scmp.ne.s32.totalorder %s138, %s141
      %p147 = scmp.eq.s32.totalorder %s16, 0
      %p148 = por %p146, %p147
      %p149 = scmp.ne.s32.totalorder %s138, %s141
      %p150 = scmp.eq.s32.totalorder %s21, 1
      %p151 = por %p149, %p150
      %p152 = scmp.ne.s32.totalorder %s141, %s142
      %p153 = scmp.eq.s32.totalorder %s21, 0
      %p154 = por %p152, %p153
      %p155 = scmp.ne.s32.totalorder %s141, %s142
      %p156 = scmp.eq.s32.totalorder %s22, 1
      %p157 = por %p155, %p156
      %p159 = scmp.ne.s32.totalorder %s142, %s158
      %p160 = scmp.eq.s32.totalorder %s22, 0
      %p161 = por %p159, %p160
      %p162 = scmp.le.s32.totalorder 1, %s16
      %p163 = scmp.lt.s32.totalorder %s16, 3
      %p164 = pnand %p162, %p163
      %p165 = pneg %p164
      // Predicated region
      $region9: #{tpu_custom_call.1} parent=5 // pred_check
        _
      $region10: #{tpu_custom_call.1} parent=5 // pred_check_branch
        %167 = sbr.rel (%p164) target = $region12
      $region11: #{tpu_custom_call.1} parent=5 // pred_region
        %s168 = ssub.s32 %s16, 1
        // Predicated region
        $region13: #{tpu_custom_call.1} parent=11 // pred_check
          %p169 = pneg %p105
        $region14: #{tpu_custom_call.1} parent=11 // pred_check_branch
          %171 = sbr.rel (%p169) target = $region16
        $region15: #{tpu_custom_call.1} parent=11 // pred_region
          _
        $region16: #{tpu_custom_call.1} parent=11 // pred_fallthru
          _
        // Predicated region
        $region17: #{tpu_custom_call.1} parent=11 // pred_check
          %p172 = pneg %p126
        $region18: #{tpu_custom_call.1} parent=11 // pred_check_branch
          %174 = sbr.rel (%p172) target = $region20
        $region19: #{tpu_custom_call.1} parent=11 // pred_region
          _
        $region20: #{tpu_custom_call.1} parent=11 // pred_fallthru
          _
      $region12: #{tpu_custom_call.1} parent=5 // pred_fallthru
        _
      %p175 = scmp.lt.s32.totalorder %s16, 2
      // Predicated region
      $region21: #{tpu_custom_call.1} parent=5 // pred_check
        %p176 = pneg %p175
      $region22: #{tpu_custom_call.1} parent=5 // pred_check_branch
        %178 = sbr.rel (%p176) target = $region24
      $region23: #{tpu_custom_call.1} parent=5 // pred_region
        // Predicated region
        $region25: #{tpu_custom_call.1} parent=23 // pred_check
          %p179 = pneg %p50
        $region26: #{tpu_custom_call.1} parent=23 // pred_check_branch
          %181 = sbr.rel (%p179) target = $region28
        $region27: #{tpu_custom_call.1} parent=23 // pred_region
          %s182 = sand.u32 %s40, 1
          %s183 = scalar_lea.sflag [#allocation5], %s182
          %s184 = sand.u32 %s40, 1
          %s185 = smul.addr %s184, 32
          %s186 = scalar_lea.vmem [#allocation4], %s185
          %s187 = smul.u32 8, %s24
          %s189 = ssub.s32 512, 512
          %190 = vsyncadd %s183, %s189
          %s191 = smul.addr %s23, 8
          %s192 = sadd.s32 %s187, %s191
          %s193 = smul.addr %s192, 64
          %s194 = scalar_lea.hbm %s0, %s193
          %s195 = sshll.u32 %s186, 4
          %s196 = int_to_ptr.vmem [resolvable:$true] %s195
          %201 = dma.hbm_to_vmem [thread:$0]  %s194, 512, %s196, %s183, 64, 64, 4
        $region28: #{tpu_custom_call.1} parent=23 // pred_fallthru
          _
        // Predicated region
        $region29: #{tpu_custom_call.1} parent=23 // pred_check
          %p202 = pneg %p78
        $region30: #{tpu_custom_call.1} parent=23 // pred_check_branch
          %204 = sbr.rel (%p202) target = $region32
        $region31: #{tpu_custom_call.1} parent=23 // pred_region
          %s205 = sand.u32 %s68, 1
          %s206 = scalar_lea.sflag [#allocation7], %s205
          %s207 = sand.u32 %s68, 1
          %s208 = smul.addr %s207, 256
          %s209 = scalar_lea.vmem [#allocation6], %s208
          %s210 = smul.u32 8, %s24
          %s212 = ssub.s32 4096, 4096
          %213 = vsyncadd %s206, %s212
          %s214 = smul.addr %s210, 4
          %s215 = smul.addr %s23, 32
          %s216 = sadd.s32 %s214, %s215
          %s217 = smul.addr %s216, 128
          %s218 = scalar_lea.hbm %s1, %s217
          %s219 = sshll.u32 %s209, 4
          %s220 = int_to_ptr.vmem [resolvable:$true] %s219
          %225 = dma.hbm_to_vmem [thread:$0]  %s218, 4096, %s220, %s206, 128, 128, 8
        $region32: #{tpu_custom_call.1} parent=23 // pred_fallthru
          _
      $region24: #{tpu_custom_call.1} parent=5 // pred_fallthru
        _
      %p226 = scmp.le.s32.totalorder 1, %s16
      %p227 = scmp.lt.s32.totalorder %s16, 3
      %p228 = pnand %p226, %p227
      %p229 = pneg %p228
      // Predicated region
      $region33: #{tpu_custom_call.1} parent=5 // pred_check
        _
      $region34: #{tpu_custom_call.1} parent=5 // pred_check_branch
        %231 = sbr.rel (%p228) target = $region36
      $region35: #{tpu_custom_call.1} parent=5 // pred_region
        %s232 = ssub.s32 %s16, 1
        %s233 = sand.u32 %s43, 1
        %s234 = scalar_lea.sflag [#allocation5], %s233
        %s235 = sand.u32 %s43, 1
        %s236 = smul.addr %s235, 32
        %s237 = scalar_lea.vmem [#allocation4], %s236
        // Predicated region
        $region37: #{tpu_custom_call.1} parent=35 // pred_check
          %p238 = pneg %p56
        $region38: #{tpu_custom_call.1} parent=35 // pred_check_branch
          %240 = sbr.rel (%p238) target = $region40
        $region39: #{tpu_custom_call.1} parent=35 // pred_region
          %241 = dma.done %s234, 512
        $region40: #{tpu_custom_call.1} parent=35 // pred_fallthru
          _
        %s242 = sand.u32 %s71, 1
        %s243 = scalar_lea.sflag [#allocation7], %s242
        %s244 = sand.u32 %s71, 1
        %s245 = smul.addr %s244, 256
        %s246 = scalar_lea.vmem [#allocation6], %s245
        // Predicated region
        $region41: #{tpu_custom_call.1} parent=35 // pred_check
          %p247 = pneg %p84
        $region42: #{tpu_custom_call.1} parent=35 // pred_check_branch
          %249 = sbr.rel (%p247) target = $region44
        $region43: #{tpu_custom_call.1} parent=35 // pred_region
          %250 = dma.done %s243, 4096
        $region44: #{tpu_custom_call.1} parent=35 // pred_fallthru
          _
        %s251 = sand.u32 %s43, 1
        %s252 = scalar_lea.sflag [#allocation5], %s251
        %s253 = sand.u32 %s43, 1
        %s254 = smul.addr %s253, 32
        %s255 = scalar_lea.vmem [#allocation4], %s254
        %p256 = pneg %p56
        %p257 = pneg %p53
        %s258 = sand.u32 %s71, 1
        %s259 = scalar_lea.sflag [#allocation7], %s258
        %s260 = sand.u32 %s71, 1
        %s261 = smul.addr %s260, 256
        %s262 = scalar_lea.vmem [#allocation6], %s261
        %p263 = pneg %p84
        %p264 = pneg %p81
        %p265 = pneg %p105
        %p266 = pneg %p102
        %p267 = pneg %p126
        %p268 = pneg %p123
        %p269 = pneg %p154
        %p270 = pneg %p151
        %p271 = scmp.lt.s32.totalorder %s25, 1
        %s272 = scalar_select %p271, %s25, 1
        %p273 = scmp.lt.s32.totalorder %s26, 0
        %s274 = scalar_select %p273, %s26, 0
        %s275 = sadd.s32 %s274, %s272
        %s276 = smul.addr %s275, 8
        %s277 = scalar_lea.vmem %s4, %s276
        %s278 = smul.u32 8, %s26
        %s279 = smul.u32 8, %s26
        %p280 = scmp.lt.s32.totalorder %s25, 1
        %s281 = scalar_select %p280, %s25, 1
        %p282 = scmp.lt.s32.totalorder %s26, 0
        %s283 = scalar_select %p282, %s26, 0
        %s284 = sadd.s32 %s283, %s281
        %s285 = smul.addr %s284, 8
        %s286 = scalar_lea.vmem %s4, %s285
        %p287 = scmp.eq.s32.totalorder %s26, 0
        // Predicated region
        $region45: #{tpu_custom_call.1} parent=35 // pred_check
          %p288 = pneg %p287
        $region46: #{tpu_custom_call.1} parent=35 // pred_check_branch
          %290 = sbr.rel (%p288) target = $region48
        $region47: #{tpu_custom_call.1} parent=35 // pred_region
          %vm291 = vcmask 125952
          %292 = vst.msk [vmem:[#allocation2] sm:$0xf] %vm291, 0.0
          %293 = vst.msk [vmem:[#allocation2 + $0x4] sm:$0xf] %vm291, 0.0
          %294 = vst.msk [vmem:[#allocation2 + $0x8] sm:$0xf] %vm291, 0.0
          %295 = vst.msk [vmem:[#allocation2 + $0xc] sm:$0xf] %vm291, 0.0
        $region48: #{tpu_custom_call.1} parent=35 // pred_fallthru
          _
        %v296 = vld [vmem:[%s237] sm:$0xf]
        %v297 = vld [vmem:[%s237 + $0x4] sm:$0xf]
        %v298 = vld [vmem:[%s237 + $0x8] sm:$0xf]
        %v299 = vld [vmem:[%s237 + $0xc] sm:$0xf]
        %v300 = vld [vmem:[%s237 + $0x10] sm:$0xf]
        %v301 = vld [vmem:[%s237 + $0x14] sm:$0xf]
        %v302 = vld [vmem:[%s237 + $0x18] sm:$0xf]
        %v303 = vld [vmem:[%s237 + $0x1c] sm:$0xf]
        %v304 = vcombine.low %v296, %v298
        %v306 = vunpack.c.l.s4 1983009808
        %v307 = vunpack.c.0.s8 %v306
        %v308 = vlaneseq
        %v309 = vshrl.u32 %v308, 7
        %v310 = vsub.s32 %v307, %v309
        %v311 = vrot.slane %v304, %v310
        %v312 = vcombine.low %v297, %v299
        %v314 = vunpack.c.l.s4 1983009808
        %v315 = vunpack.c.0.s8 %v314
        %v316 = vlaneseq
        %v317 = vshrl.u32 %v316, 7
        %v318 = vsub.s32 %v315, %v317
        %v319 = vrot.slane %v312, %v318
        %v320 = vcombine.low %v300, %v302
        %v322 = vunpack.c.l.s4 1983009808
        %v323 = vunpack.c.0.s8 %v322
        %v324 = vlaneseq
        %v325 = vshrl.u32 %v324, 7
        %v326 = vsub.s32 %v323, %v325
        %v327 = vrot.slane %v320, %v326
        %v328 = vcombine.low %v301, %v303
        %v330 = vunpack.c.l.s4 1983009808
        %v331 = vunpack.c.0.s8 %v330
        %v332 = vlaneseq
        %v333 = vshrl.u32 %v332, 7
        %v334 = vsub.s32 %v331, %v333
        %v335 = vrot.slane %v328, %v334
        %v336 = vcombine.low %v311, %v319
        %v337 = vcombine.high %v311, %v319
        %v339 = vunpack.c.l.s4 1934713408
        %v340 = vunpack.c.0.s8 %v339
        %v341 = vlaneseq
        %v342 = vshrl.u32 %v341, 7
        %v343 = vsub.s32 %v340, %v342
        %v344 = vrot.slane %v336, %v343
        %v346 = vunpack.c.l.s4 1934713408
        %v347 = vunpack.c.0.s8 %v346
        %v348 = vlaneseq
        %v349 = vshrl.u32 %v348, 7
        %v350 = vsub.s32 %v347, %v349
        %v351 = vrot.slane %v337, %v350
        %v352 = vcombine.low %v327, %v335
        %v353 = vcombine.high %v327, %v335
        %v355 = vunpack.c.l.s4 1934713408
        %v356 = vunpack.c.0.s8 %v355
        %v357 = vlaneseq
        %v358 = vshrl.u32 %v357, 7
        %v359 = vsub.s32 %v356, %v358
        %v360 = vrot.slane %v352, %v359
        %v362 = vunpack.c.l.s4 1934713408
        %v363 = vunpack.c.0.s8 %v362
        %v364 = vlaneseq
        %v365 = vshrl.u32 %v364, 7
        %v366 = vsub.s32 %v363, %v365
        %v367 = vrot.slane %v353, %v366
        %v368 = vcombine.low %v344, %v360
        %v369 = vcombine.high %v344, %v360
        %v370 = vcombine.low %v351, %v367
        %v371 = vcombine.high %v351, %v367
        %v372 = vcombine.low %v368, %v370
        %v373 = vcombine.high %v368, %v370
        %v375 = vunpack.c.l.s4 1983009808
        %v376 = vunpack.c.0.s8 %v375
        %v377 = vlaneseq
        %v378 = vshrl.u32 %v377, 7
        %v379 = vsub.s32 %v376, %v378
        %v380 = vrot.slane %v372, %v379
        %v382 = vunpack.c.l.s4 1983009808
        %v383 = vunpack.c.0.s8 %v382
        %v384 = vlaneseq
        %v385 = vshrl.u32 %v384, 7
        %v386 = vsub.s32 %v383, %v385
        %v387 = vrot.slane %v373, %v386
        %v388 = vcombine.low %v369, %v371
        %v389 = vcombine.high %v369, %v371
        %v391 = vunpack.c.l.s4 1983009808
        %v392 = vunpack.c.0.s8 %v391
        %v393 = vlaneseq
        %v394 = vshrl.u32 %v393, 7
        %v395 = vsub.s32 %v392, %v394
        %v396 = vrot.slane %v388, %v395
        %v398 = vunpack.c.l.s4 1983009808
        %v399 = vunpack.c.0.s8 %v398
        %v400 = vlaneseq
        %v401 = vshrl.u32 %v400, 7
        %v402 = vsub.s32 %v399, %v401
        %v403 = vrot.slane %v389, %v402
        %v404 = vcombine.low %v380, %v396
        %v405 = vcombine.high %v380, %v396
        %v407 = vunpack.c.l.s4 1934713408
        %v408 = vunpack.c.0.s8 %v407
        %v409 = vlaneseq
        %v410 = vshrl.u32 %v409, 7
        %v411 = vsub.s32 %v408, %v410
        %v412 = vrot.slane %v404, %v411
        %v414 = vunpack.c.l.s4 1934713408
        %v415 = vunpack.c.0.s8 %v414
        %v416 = vlaneseq
        %v417 = vshrl.u32 %v416, 7
        %v418 = vsub.s32 %v415, %v417
        %v419 = vrot.slane %v405, %v418
        %v420 = vcombine.low %v387, %v403
        %v421 = vcombine.high %v387, %v403
        %v423 = vunpack.c.l.s4 1934713408
        %v424 = vunpack.c.0.s8 %v423
        %v425 = vlaneseq
        %v426 = vshrl.u32 %v425, 7
        %v427 = vsub.s32 %v424, %v426
        %v428 = vrot.slane %v420, %v427
        %v430 = vunpack.c.l.s4 1934713408
        %v431 = vunpack.c.0.s8 %v430
        %v432 = vlaneseq
        %v433 = vshrl.u32 %v432, 7
        %v434 = vsub.s32 %v431, %v433
        %v435 = vrot.slane %v421, %v434
        %v436 = vcombine.high %v412, 0.0
        %v437 = vcombine.high %v419, 0.0
        %v438 = vcombine.high %v428, 0.0
        %v439 = vcombine.high %v435, 0.0
        %441 = vrot.lane.b32.xlu0 %v436, 16
        %v442 = vpop.permute.xlu0 %441
        %445 = vrot.lane.b32.xlu0 %v419, 32
        %v446 = vpop.permute.xlu0 %445
        %449 = vrot.lane.b32.xlu0 %v437, 48
        %v450 = vpop.permute.xlu0 %449
        %453 = vrot.lane.b32.xlu0 %v428, 64
        %v454 = vpop.permute.xlu0 %453
        %457 = vrot.lane.b32.xlu0 %v438, 80
        %v458 = vpop.permute.xlu0 %457
        %461 = vrot.lane.b32.xlu0 %v435, 96
        %v462 = vpop.permute.xlu0 %461
        %465 = vrot.lane.b32.xlu0 %v439, 112
        %v466 = vpop.permute.xlu0 %465
        %vm468 = vcmask 130048
        %v469 = vsel %vm468, %v412, %v442
        %vm470 = vcmask 261120
        %v471 = vsel %vm470, %v469, %v446
        %vm472 = vcmask 392192
        %v473 = vsel %vm472, %v471, %v450
        %vm474 = vcmask 523264
        %v475 = vsel %vm474, %v473, %v454
        %vm476 = vcmask 654336
        %v477 = vsel %vm476, %v475, %v458
        %vm478 = vcmask 785408
        %v479 = vsel %vm478, %v477, %v462
        %vm480 = vcmask 916480
        %v481 = vsel %vm480, %v479, %v466
        %482 = vst [vmem:[#allocation3] sm:$0xf] %v481
        %v483 = vld [vmem:[%s246] sm:$0xff]
        %v484 = vld [vmem:[%s246 + $0x8] sm:$0xff]
        %v485 = vld [vmem:[%s246 + $0x10] sm:$0xff]
        %v486 = vld [vmem:[%s246 + $0x18] sm:$0xff]
        %v487 = vld [vmem:[%s246 + $0x20] sm:$0xff]
        %v488 = vld [vmem:[%s246 + $0x28] sm:$0xff]
        %v489 = vld [vmem:[%s246 + $0x30] sm:$0xff]
        %v490 = vld [vmem:[%s246 + $0x38] sm:$0xff]
        %v491 = vld [vmem:[%s246 + $0x40] sm:$0xff]
        %v492 = vld [vmem:[%s246 + $0x48] sm:$0xff]
        %v493 = vld [vmem:[%s246 + $0x50] sm:$0xff]
        %v494 = vld [vmem:[%s246 + $0x58] sm:$0xff]
        %v495 = vld [vmem:[%s246 + $0x60] sm:$0xff]
        %v496 = vld [vmem:[%s246 + $0x68] sm:$0xff]
        %v497 = vld [vmem:[%s246 + $0x70] sm:$0xff]
        %v498 = vld [vmem:[%s246 + $0x78] sm:$0xff]
        %v499 = vld [vmem:[%s246 + $0x80] sm:$0xff]
        %v500 = vld [vmem:[%s246 + $0x88] sm:$0xff]
        %v501 = vld [vmem:[%s246 + $0x90] sm:$0xff]
        %v502 = vld [vmem:[%s246 + $0x98] sm:$0xff]
        %v503 = vld [vmem:[%s246 + $0xa0] sm:$0xff]
        %v504 = vld [vmem:[%s246 + $0xa8] sm:$0xff]
        %v505 = vld [vmem:[%s246 + $0xb0] sm:$0xff]
        %v506 = vld [vmem:[%s246 + $0xb8] sm:$0xff]
        %v507 = vld [vmem:[%s246 + $0xc0] sm:$0xff]
        %v508 = vld [vmem:[%s246 + $0xc8] sm:$0xff]
        %v509 = vld [vmem:[%s246 + $0xd0] sm:$0xff]
        %v510 = vld [vmem:[%s246 + $0xd8] sm:$0xff]
        %v511 = vld [vmem:[%s246 + $0xe0] sm:$0xff]
        %v512 = vld [vmem:[%s246 + $0xe8] sm:$0xff]
        %v513 = vld [vmem:[%s246 + $0xf0] sm:$0xff]
        %v514 = vld [vmem:[%s246 + $0xf8] sm:$0xff]
        %v515 = vld [vmem:[#allocation2] sm:$0xf]
        %vm516 = vcmask 125952
        %517 = vst.msk [vmem:[#allocation2] sm:$0xf] %vm516, %v303
        %v519 = vsel %vm468, %v515, 0
        %521 = vmatprep.subr.mxu0 0.0
        %522 = vmatpush1.msra.mxu0 %v483
        %523 = vmatprep.subr.mxu0 0.0
        %524 = vmatpush1.msra.mxu0 %v484
        %525 = vmatprep.subr.mxu0 0.0
        %526 = vmatpush1.msra.mxu0 0.0
        %527 = vmatprep.subr.mxu0 0.0
        %528 = vmatpush1.msra.mxu0 0.0
        %529 = vmatprep.subr.mxu0 0.0
        %530 = vmatpush1.msra.mxu0 0.0
        %531 = vmatprep.subr.mxu0 0.0
        %532 = vmatpush1.msra.mxu0 0.0
        %533 = vmatprep.subr.mxu0 0.0
        %534 = vmatpush1.msra.mxu0 0.0
        %535 = vmatprep.subr.mxu0 0.0
        %536 = vmatpush1.msra.mxu0 0.0
        %537 = vmatprep.subr.mxu0 0.0
        %538 = vmatpush1.msra.mxu0 0.0
        %539 = vmatprep.subr.mxu0 0.0
        %540 = vmatpush1.msra.mxu0 0.0
        %541 = vmatprep.subr.mxu0 0.0
        %542 = vmatpush1.msra.mxu0 0.0
        %543 = vmatprep.subr.mxu0 0.0
        %544 = vmatpush1.msra.mxu0 0.0
        %545 = vmatprep.subr.mxu0 0.0
        %546 = vmatpush1.msra.mxu0 0.0
        %547 = vmatprep.subr.mxu0 0.0
        %548 = vmatpush1.msra.mxu0 0.0
        %549 = vmatprep.subr.mxu0 0.0
        %550 = vmatpush1.msra.mxu0 0.0
        %551 = vmatprep.subr.mxu0 0.0
        %552 = vmatpush1.msra.mxu0 0.0
        %553 = vmatprep.subr.mxu0 0.0
        %554 = vmatpush1.msra.mxu0 0.0
        %555 = vmatprep.subr.mxu0 0.0
        %556 = vmatpush1.msra.mxu0 0.0
        %557 = vmatprep.subr.mxu0 0.0
        %558 = vmatpush1.msra.mxu0 0.0
        %559 = vmatprep.subr.mxu0 0.0
        %560 = vmatpush1.msra.mxu0 0.0
        %561 = vmatprep.subr.mxu0 0.0
        %562 = vmatpush1.msra.mxu0 0.0
        %563 = vmatprep.subr.mxu0 0.0
        %564 = vmatpush1.msra.mxu0 0.0
        %565 = vmatprep.subr.mxu0 0.0
        %566 = vmatpush1.msra.mxu0 0.0
        %567 = vmatprep.subr.mxu0 0.0
        %568 = vmatpush1.msra.mxu0 0.0
        %569 = vmatprep.subr.mxu0 0.0
        %570 = vmatpush1.msra.mxu0 0.0
        %571 = vmatprep.subr.mxu0 0.0
        %572 = vmatpush1.msra.mxu0 0.0
        %573 = vmatprep.subr.mxu0 0.0
        %574 = vmatpush1.msra.mxu0 0.0
        %575 = vmatprep.subr.mxu0 0.0
        %576 = vmatpush1.msra.mxu0 0.0
        %577 = vmatprep.subr.mxu0 0.0
        %578 = vmatpush1.msra.mxu0 0.0
        %579 = vmatprep.subr.mxu0 0.0
        %580 = vmatpush1.msra.mxu0 0.0
        %581 = vmatprep.subr.mxu0 0.0
        %582 = vmatpush1.msra.mxu0 0.0
        %583 = vmatprep.subr.mxu0 0.0
        %584 = vmatpush1.msra.mxu0 0.0
        %585 = vmatprep.mubr.f32.mxu0 0.0
        %586 = vmatmul.mubr.f32.gmra.mrb[0].mxu0 %v519
        %v587 = vpop.f32.mrb[0].mxu0
        %v588 = vadd.f32 0.0, %v587
        %v589 = vpop.f32.mrb[0].mxu0
        %590 = vdwg.mxu0
        %v592 = vsel %vm468, %v296, 0
        %594 = vmatprep.subr.mxu0 0.0
        %595 = vmatpush1.msra.mxu0 %v487
        %596 = vmatprep.subr.mxu0 0.0
        %597 = vmatpush1.msra.mxu0 %v488
        %598 = vmatprep.subr.mxu0 0.0
        %599 = vmatpush1.msra.mxu0 0.0
        %600 = vmatprep.subr.mxu0 0.0
        %601 = vmatpush1.msra.mxu0 0.0
        %602 = vmatprep.subr.mxu0 0.0
        %603 = vmatpush1.msra.mxu0 0.0
        %604 = vmatprep.subr.mxu0 0.0
        %605 = vmatpush1.msra.mxu0 0.0
        %606 = vmatprep.subr.mxu0 0.0
        %607 = vmatpush1.msra.mxu0 0.0
        %608 = vmatprep.subr.mxu0 0.0
        %609 = vmatpush1.msra.mxu0 0.0
        %610 = vmatprep.subr.mxu0 0.0
        %611 = vmatpush1.msra.mxu0 0.0
        %612 = vmatprep.subr.mxu0 0.0
        %613 = vmatpush1.msra.mxu0 0.0
        %614 = vmatprep.subr.mxu0 0.0
        %615 = vmatpush1.msra.mxu0 0.0
        %616 = vmatprep.subr.mxu0 0.0
        %617 = vmatpush1.msra.mxu0 0.0
        %618 = vmatprep.subr.mxu0 0.0
        %619 = vmatpush1.msra.mxu0 0.0
        %620 = vmatprep.subr.mxu0 0.0
        %621 = vmatpush1.msra.mxu0 0.0
        %622 = vmatprep.subr.mxu0 0.0
        %623 = vmatpush1.msra.mxu0 0.0
        %624 = vmatprep.subr.mxu0 0.0
        %625 = vmatpush1.msra.mxu0 0.0
        %626 = vmatprep.subr.mxu0 0.0
        %627 = vmatpush1.msra.mxu0 0.0
        %628 = vmatprep.subr.mxu0 0.0
        %629 = vmatpush1.msra.mxu0 0.0
        %630 = vmatprep.subr.mxu0 0.0
        %631 = vmatpush1.msra.mxu0 0.0
        %632 = vmatprep.subr.mxu0 0.0
        %633 = vmatpush1.msra.mxu0 0.0
        %634 = vmatprep.subr.mxu0 0.0
        %635 = vmatpush1.msra.mxu0 0.0
        %636 = vmatprep.subr.mxu0 0.0
        %637 = vmatpush1.msra.mxu0 0.0
        %638 = vmatprep.subr.mxu0 0.0
        %639 = vmatpush1.msra.mxu0 0.0
        %640 = vmatprep.subr.mxu0 0.0
        %641 = vmatpush1.msra.mxu0 0.0
        %642 = vmatprep.subr.mxu0 0.0
        %643 = vmatpush1.msra.mxu0 0.0
        %644 = vmatprep.subr.mxu0 0.0
        %645 = vmatpush1.msra.mxu0 0.0
        %646 = vmatprep.subr.mxu0 0.0
        %647 = vmatpush1.msra.mxu0 0.0
        %648 = vmatprep.subr.mxu0 0.0
        %649 = vmatpush1.msra.mxu0 0.0
        %650 = vmatprep.subr.mxu0 0.0
        %651 = vmatpush1.msra.mxu0 0.0
        %652 = vmatprep.subr.mxu0 0.0
        %653 = vmatpush1.msra.mxu0 0.0
        %654 = vmatprep.subr.mxu0 0.0
        %655 = vmatpush1.msra.mxu0 0.0
        %656 = vmatprep.subr.mxu0 0.0
        %657 = vmatpush1.msra.mxu0 0.0
        %658 = vmatprep.mubr.f32.mxu0 0.0
        %659 = vmatmul.mubr.f32.gmra.mrb[0].mxu0 %v592
        %v660 = vpop.f32.mrb[0].mxu0
        %v661 = vadd.f32 0.0, %v660
        %v662 = vpop.f32.mrb[0].mxu0
        %663 = vdwg.mxu0
        %v665 = vsel %vm468, %v297, 0
        %667 = vmatprep.subr.mxu0 0.0
        %668 = vmatpush1.msra.mxu0 %v491
        %669 = vmatprep.subr.mxu0 0.0
        %670 = vmatpush1.msra.mxu0 %v492
        %671 = vmatprep.subr.mxu0 0.0
        %672 = vmatpush1.msra.mxu0 0.0
        %673 = vmatprep.subr.mxu0 0.0
        %674 = vmatpush1.msra.mxu0 0.0
        %675 = vmatprep.subr.mxu0 0.0
        %676 = vmatpush1.msra.mxu0 0.0
        %677 = vmatprep.subr.mxu0 0.0
        %678 = vmatpush1.msra.mxu0 0.0
        %679 = vmatprep.subr.mxu0 0.0
        %680 = vmatpush1.msra.mxu0 0.0
        %681 = vmatprep.subr.mxu0 0.0
        %682 = vmatpush1.msra.mxu0 0.0
        %683 = vmatprep.subr.mxu0 0.0
        %684 = vmatpush1.msra.mxu0 0.0
        %685 = vmatprep.subr.mxu0 0.0
        %686 = vmatpush1.msra.mxu0 0.0
        %687 = vmatprep.subr.mxu0 0.0
        %688 = vmatpush1.msra.mxu0 0.0
        %689 = vmatprep.subr.mxu0 0.0
        %690 = vmatpush1.msra.mxu0 0.0
        %691 = vmatprep.subr.mxu0 0.0
        %692 = vmatpush1.msra.mxu0 0.0
        %693 = vmatprep.subr.mxu0 0.0
        %694 = vmatpush1.msra.mxu0 0.0
        %695 = vmatprep.subr.mxu0 0.0
        %696 = vmatpush1.msra.mxu0 0.0
        %697 = vmatprep.subr.mxu0 0.0
        %698 = vmatpush1.msra.mxu0 0.0
        %699 = vmatprep.subr.mxu0 0.0
        %700 = vmatpush1.msra.mxu0 0.0
        %701 = vmatprep.subr.mxu0 0.0
        %702 = vmatpush1.msra.mxu0 0.0
        %703 = vmatprep.subr.mxu0 0.0
        %704 = vmatpush1.msra.mxu0 0.0
        %705 = vmatprep.subr.mxu0 0.0
        %706 = vmatpush1.msra.mxu0 0.0
        %707 = vmatprep.subr.mxu0 0.0
        %708 = vmatpush1.msra.mxu0 0.0
        %709 = vmatprep.subr.mxu0 0.0
        %710 = vmatpush1.msra.mxu0 0.0
        %711 = vmatprep.subr.mxu0 0.0
        %712 = vmatpush1.msra.mxu0 0.0
        %713 = vmatprep.subr.mxu0 0.0
        %714 = vmatpush1.msra.mxu0 0.0
        %715 = vmatprep.subr.mxu0 0.0
        %716 = vmatpush1.msra.mxu0 0.0
        %717 = vmatprep.subr.mxu0 0.0
        %718 = vmatpush1.msra.mxu0 0.0
        %719 = vmatprep.subr.mxu0 0.0
        %720 = vmatpush1.msra.mxu0 0.0
        %721 = vmatprep.subr.mxu0 0.0
        %722 = vmatpush1.msra.mxu0 0.0
        %723 = vmatprep.subr.mxu0 0.0
        %724 = vmatpush1.msra.mxu0 0.0
        %725 = vmatprep.subr.mxu0 0.0
        %726 = vmatpush1.msra.mxu0 0.0
        %727 = vmatprep.subr.mxu0 0.0
        %728 = vmatpush1.msra.mxu0 0.0
        %729 = vmatprep.subr.mxu0 0.0
        %730 = vmatpush1.msra.mxu0 0.0
        %731 = vmatprep.mubr.f32.mxu0 0.0
        %732 = vmatmul.mubr.f32.gmra.mrb[0].mxu0 %v665
        %v733 = vpop.f32.mrb[0].mxu0
        %v734 = vadd.f32 0.0, %v733
        %v735 = vpop.f32.mrb[0].mxu0
        %736 = vdwg.mxu0
        %v738 = vsel %vm468, %v298, 0
        %740 = vmatprep.subr.mxu0 0.0
        %741 = vmatpush1.msra.mxu0 %v495
        %742 = vmatprep.subr.mxu0 0.0
        %743 = vmatpush1.msra.mxu0 %v496
        %744 = vmatprep.subr.mxu0 0.0
        %745 = vmatpush1.msra.mxu0 0.0
        %746 = vmatprep.subr.mxu0 0.0
        %747 = vmatpush1.msra.mxu0 0.0
        %748 = vmatprep.subr.mxu0 0.0
        %749 = vmatpush1.msra.mxu0 0.0
        %750 = vmatprep.subr.mxu0 0.0
        %751 = vmatpush1.msra.mxu0 0.0
        %752 = vmatprep.subr.mxu0 0.0
        %753 = vmatpush1.msra.mxu0 0.0
        %754 = vmatprep.subr.mxu0 0.0
        %755 = vmatpush1.msra.mxu0 0.0
        %756 = vmatprep.subr.mxu0 0.0
        %757 = vmatpush1.msra.mxu0 0.0
        %758 = vmatprep.subr.mxu0 0.0
        %759 = vmatpush1.msra.mxu0 0.0
        %760 = vmatprep.subr.mxu0 0.0
        %761 = vmatpush1.msra.mxu0 0.0
        %762 = vmatprep.subr.mxu0 0.0
        %763 = vmatpush1.msra.mxu0 0.0
        %764 = vmatprep.subr.mxu0 0.0
        %765 = vmatpush1.msra.mxu0 0.0
        %766 = vmatprep.subr.mxu0 0.0
        %767 = vmatpush1.msra.mxu0 0.0
        %768 = vmatprep.subr.mxu0 0.0
        %769 = vmatpush1.msra.mxu0 0.0
        %770 = vmatprep.subr.mxu0 0.0
        %771 = vmatpush1.msra.mxu0 0.0
        %772 = vmatprep.subr.mxu0 0.0
        %773 = vmatpush1.msra.mxu0 0.0
        %774 = vmatprep.subr.mxu0 0.0
        %775 = vmatpush1.msra.mxu0 0.0
        %776 = vmatprep.subr.mxu0 0.0
        %777 = vmatpush1.msra.mxu0 0.0
        %778 = vmatprep.subr.mxu0 0.0
        %779 = vmatpush1.msra.mxu0 0.0
        %780 = vmatprep.subr.mxu0 0.0
        %781 = vmatpush1.msra.mxu0 0.0
        %782 = vmatprep.subr.mxu0 0.0
        %783 = vmatpush1.msra.mxu0 0.0
        %784 = vmatprep.subr.mxu0 0.0
        %785 = vmatpush1.msra.mxu0 0.0
        %786 = vmatprep.subr.mxu0 0.0
        %787 = vmatpush1.msra.mxu0 0.0
        %788 = vmatprep.subr.mxu0 0.0
        %789 = vmatpush1.msra.mxu0 0.0
        %790 = vmatprep.subr.mxu0 0.0
        %791 = vmatpush1.msra.mxu0 0.0
        %792 = vmatprep.subr.mxu0 0.0
        %793 = vmatpush1.msra.mxu0 0.0
        %794 = vmatprep.subr.mxu0 0.0
        %795 = vmatpush1.msra.mxu0 0.0
        %796 = vmatprep.subr.mxu0 0.0
        %797 = vmatpush1.msra.mxu0 0.0
        %798 = vmatprep.subr.mxu0 0.0
        %799 = vmatpush1.msra.mxu0 0.0
        %800 = vmatprep.subr.mxu0 0.0
        %801 = vmatpush1.msra.mxu0 0.0
        %802 = vmatprep.subr.mxu0 0.0
        %803 = vmatpush1.msra.mxu0 0.0
        %804 = vmatprep.mubr.f32.mxu0 0.0
        %805 = vmatmul.mubr.f32.gmra.mrb[0].mxu0 %v738
        %v806 = vpop.f32.mrb[0].mxu0
        %v807 = vadd.f32 0.0, %v806
        %v808 = vpop.f32.mrb[0].mxu0
        %809 = vdwg.mxu0
        %v811 = vsel %vm468, %v299, 0
        %813 = vmatprep.subr.mxu0 0.0
        %814 = vmatpush1.msra.mxu0 %v499
        %815 = vmatprep.subr.mxu0 0.0
        %816 = vmatpush1.msra.mxu0 %v500
        %817 = vmatprep.subr.mxu0 0.0
        %818 = vmatpush1.msra.mxu0 0.0
        %819 = vmatprep.subr.mxu0 0.0
        %820 = vmatpush1.msra.mxu0 0.0
        %821 = vmatprep.subr.mxu0 0.0
        %822 = vmatpush1.msra.mxu0 0.0
        %823 = vmatprep.subr.mxu0 0.0
        %824 = vmatpush1.msra.mxu0 0.0
        %825 = vmatprep.subr.mxu0 0.0
        %826 = vmatpush1.msra.mxu0 0.0
        %827 = vmatprep.subr.mxu0 0.0
        %828 = vmatpush1.msra.mxu0 0.0
        %829 = vmatprep.subr.mxu0 0.0
        %830 = vmatpush1.msra.mxu0 0.0
        %831 = vmatprep.subr.mxu0 0.0
        %832 = vmatpush1.msra.mxu0 0.0
        %833 = vmatprep.subr.mxu0 0.0
        %834 = vmatpush1.msra.mxu0 0.0
        %835 = vmatprep.subr.mxu0 0.0
        %836 = vmatpush1.msra.mxu0 0.0
        %837 = vmatprep.subr.mxu0 0.0
        %838 = vmatpush1.msra.mxu0 0.0
        %839 = vmatprep.subr.mxu0 0.0
        %840 = vmatpush1.msra.mxu0 0.0
        %841 = vmatprep.subr.mxu0 0.0
        %842 = vmatpush1.msra.mxu0 0.0
        %843 = vmatprep.subr.mxu0 0.0
        %844 = vmatpush1.msra.mxu0 0.0
        %845 = vmatprep.subr.mxu0 0.0
        %846 = vmatpush1.msra.mxu0 0.0
        %847 = vmatprep.subr.mxu0 0.0
        %848 = vmatpush1.msra.mxu0 0.0
        %849 = vmatprep.subr.mxu0 0.0
        %850 = vmatpush1.msra.mxu0 0.0
        %851 = vmatprep.subr.mxu0 0.0
        %852 = vmatpush1.msra.mxu0 0.0
        %853 = vmatprep.subr.mxu0 0.0
        %854 = vmatpush1.msra.mxu0 0.0
        %855 = vmatprep.subr.mxu0 0.0
        %856 = vmatpush1.msra.mxu0 0.0
        %857 = vmatprep.subr.mxu0 0.0
        %858 = vmatpush1.msra.mxu0 0.0
        %859 = vmatprep.subr.mxu0 0.0
        %860 = vmatpush1.msra.mxu0 0.0
        %861 = vmatprep.subr.mxu0 0.0
        %862 = vmatpush1.msra.mxu0 0.0
        %863 = vmatprep.subr.mxu0 0.0
        %864 = vmatpush1.msra.mxu0 0.0
        %865 = vmatprep.subr.mxu0 0.0
        %866 = vmatpush1.msra.mxu0 0.0
        %867 = vmatprep.subr.mxu0 0.0
        %868 = vmatpush1.msra.mxu0 0.0
        %869 = vmatprep.subr.mxu0 0.0
        %870 = vmatpush1.msra.mxu0 0.0
        %871 = vmatprep.subr.mxu0 0.0
        %872 = vmatpush1.msra.mxu0 0.0
        %873 = vmatprep.subr.mxu0 0.0
        %874 = vmatpush1.msra.mxu0 0.0
        %875 = vmatprep.subr.mxu0 0.0
        %876 = vmatpush1.msra.mxu0 0.0
        %877 = vmatprep.mubr.f32.mxu0 0.0
        %878 = vmatmul.mubr.f32.gmra.mrb[0].mxu0 %v811
        %v879 = vpop.f32.mrb[0].mxu0
        %v880 = vadd.f32 0.0, %v879
        %v881 = vpop.f32.mrb[0].mxu0
        %882 = vdwg.mxu0
        %v884 = vsel %vm468, %v300, 0
        %886 = vmatprep.subr.mxu0 0.0
        %887 = vmatpush1.msra.mxu0 %v503
        %888 = vmatprep.subr.mxu0 0.0
        %889 = vmatpush1.msra.mxu0 %v504
        %890 = vmatprep.subr.mxu0 0.0
        %891 = vmatpush1.msra.mxu0 0.0
        %892 = vmatprep.subr.mxu0 0.0
        %893 = vmatpush1.msra.mxu0 0.0
        %894 = vmatprep.subr.mxu0 0.0
        %895 = vmatpush1.msra.mxu0 0.0
        %896 = vmatprep.subr.mxu0 0.0
        %897 = vmatpush1.msra.mxu0 0.0
        %898 = vmatprep.subr.mxu0 0.0
        %899 = vmatpush1.msra.mxu0 0.0
        %900 = vmatprep.subr.mxu0 0.0
        %901 = vmatpush1.msra.mxu0 0.0
        %902 = vmatprep.subr.mxu0 0.0
        %903 = vmatpush1.msra.mxu0 0.0
        %904 = vmatprep.subr.mxu0 0.0
        %905 = vmatpush1.msra.mxu0 0.0
        %906 = vmatprep.subr.mxu0 0.0
        %907 = vmatpush1.msra.mxu0 0.0
        %908 = vmatprep.subr.mxu0 0.0
        %909 = vmatpush1.msra.mxu0 0.0
        %910 = vmatprep.subr.mxu0 0.0
        %911 = vmatpush1.msra.mxu0 0.0
        %912 = vmatprep.subr.mxu0 0.0
        %913 = vmatpush1.msra.mxu0 0.0
        %914 = vmatprep.subr.mxu0 0.0
        %915 = vmatpush1.msra.mxu0 0.0
        %916 = vmatprep.subr.mxu0 0.0
        %917 = vmatpush1.msra.mxu0 0.0
        %918 = vmatprep.subr.mxu0 0.0
        %919 = vmatpush1.msra.mxu0 0.0
        %920 = vmatprep.subr.mxu0 0.0
        %921 = vmatpush1.msra.mxu0 0.0
        %922 = vmatprep.subr.mxu0 0.0
        %923 = vmatpush1.msra.mxu0 0.0
        %924 = vmatprep.subr.mxu0 0.0
        %925 = vmatpush1.msra.mxu0 0.0
        %926 = vmatprep.subr.mxu0 0.0
        %927 = vmatpush1.msra.mxu0 0.0
        %928 = vmatprep.subr.mxu0 0.0
        %929 = vmatpush1.msra.mxu0 0.0
        %930 = vmatprep.subr.mxu0 0.0
        %931 = vmatpush1.msra.mxu0 0.0
        %932 = vmatprep.subr.mxu0 0.0
        %933 = vmatpush1.msra.mxu0 0.0
        %934 = vmatprep.subr.mxu0 0.0
        %935 = vmatpush1.msra.mxu0 0.0
        %936 = vmatprep.subr.mxu0 0.0
        %937 = vmatpush1.msra.mxu0 0.0
        %938 = vmatprep.subr.mxu0 0.0
        %939 = vmatpush1.msra.mxu0 0.0
        %940 = vmatprep.subr.mxu0 0.0
        %941 = vmatpush1.msra.mxu0 0.0
        %942 = vmatprep.subr.mxu0 0.0
        %943 = vmatpush1.msra.mxu0 0.0
        %944 = vmatprep.subr.mxu0 0.0
        %945 = vmatpush1.msra.mxu0 0.0
        %946 = vmatprep.subr.mxu0 0.0
        %947 = vmatpush1.msra.mxu0 0.0
        %948 = vmatprep.subr.mxu0 0.0
        %949 = vmatpush1.msra.mxu0 0.0
        %950 = vmatprep.mubr.f32.mxu0 0.0
        %951 = vmatmul.mubr.f32.gmra.mrb[0].mxu0 %v884
        %v952 = vpop.f32.mrb[0].mxu0
        %v953 = vadd.f32 0.0, %v952
        %v954 = vpop.f32.mrb[0].mxu0
        %955 = vdwg.mxu0
        %v957 = vsel %vm468, %v301, 0
        %959 = vmatprep.subr.mxu0 0.0
        %960 = vmatpush1.msra.mxu0 %v507
        %961 = vmatprep.subr.mxu0 0.0
        %962 = vmatpush1.msra.mxu0 %v508
        %963 = vmatprep.subr.mxu0 0.0
        %964 = vmatpush1.msra.mxu0 0.0
        %965 = vmatprep.subr.mxu0 0.0
        %966 = vmatpush1.msra.mxu0 0.0
        %967 = vmatprep.subr.mxu0 0.0
        %968 = vmatpush1.msra.mxu0 0.0
        %969 = vmatprep.subr.mxu0 0.0
        %970 = vmatpush1.msra.mxu0 0.0
        %971 = vmatprep.subr.mxu0 0.0
        %972 = vmatpush1.msra.mxu0 0.0
        %973 = vmatprep.subr.mxu0 0.0
        %974 = vmatpush1.msra.mxu0 0.0
        %975 = vmatprep.subr.mxu0 0.0
        %976 = vmatpush1.msra.mxu0 0.0
        %977 = vmatprep.subr.mxu0 0.0
        %978 = vmatpush1.msra.mxu0 0.0
        %979 = vmatprep.subr.mxu0 0.0
        %980 = vmatpush1.msra.mxu0 0.0
        %981 = vmatprep.subr.mxu0 0.0
        %982 = vmatpush1.msra.mxu0 0.0
        %983 = vmatprep.subr.mxu0 0.0
        %984 = vmatpush1.msra.mxu0 0.0
        %985 = vmatprep.subr.mxu0 0.0
        %986 = vmatpush1.msra.mxu0 0.0
        %987 = vmatprep.subr.mxu0 0.0
        %988 = vmatpush1.msra.mxu0 0.0
        %989 = vmatprep.subr.mxu0 0.0
        %990 = vmatpush1.msra.mxu0 0.0
        %991 = vmatprep.subr.mxu0 0.0
        %992 = vmatpush1.msra.mxu0 0.0
        %993 = vmatprep.subr.mxu0 0.0
        %994 = vmatpush1.msra.mxu0 0.0
        %995 = vmatprep.subr.mxu0 0.0
        %996 = vmatpush1.msra.mxu0 0.0
        %997 = vmatprep.subr.mxu0 0.0
        %998 = vmatpush1.msra.mxu0 0.0
        %999 = vmatprep.subr.mxu0 0.0
        %1000 = vmatpush1.msra.mxu0 0.0
        %1001 = vmatprep.subr.mxu0 0.0
        %1002 = vmatpush1.msra.mxu0 0.0
        %1003 = vmatprep.subr.mxu0 0.0
        %1004 = vmatpush1.msra.mxu0 0.0
        %1005 = vmatprep.subr.mxu0 0.0
        %1006 = vmatpush1.msra.mxu0 0.0
        %1007 = vmatprep.subr.mxu0 0.0
        %1008 = vmatpush1.msra.mxu0 0.0
        %1009 = vmatprep.subr.mxu0 0.0
        %1010 = vmatpush1.msra.mxu0 0.0
        %1011 = vmatprep.subr.mxu0 0.0
        %1012 = vmatpush1.msra.mxu0 0.0
        %1013 = vmatprep.subr.mxu0 0.0
        %1014 = vmatpush1.msra.mxu0 0.0
        %1015 = vmatprep.subr.mxu0 0.0
        %1016 = vmatpush1.msra.mxu0 0.0
        %1017 = vmatprep.subr.mxu0 0.0
        %1018 = vmatpush1.msra.mxu0 0.0
        %1019 = vmatprep.subr.mxu0 0.0
        %1020 = vmatpush1.msra.mxu0 0.0
        %1021 = vmatprep.subr.mxu0 0.0
        %1022 = vmatpush1.msra.mxu0 0.0
        %1023 = vmatprep.mubr.f32.mxu0 0.0
        %1024 = vmatmul.mubr.f32.gmra.mrb[0].mxu0 %v957
        %v1025 = vpop.f32.mrb[0].mxu0
        %v1026 = vadd.f32 0.0, %v1025
        %v1027 = vpop.f32.mrb[0].mxu0
        %1028 = vdwg.mxu0
        %v1030 = vsel %vm468, %v302, 0
        %1032 = vmatprep.subr.mxu0 0.0
        %1033 = vmatpush1.msra.mxu0 %v511
        %1034 = vmatprep.subr.mxu0 0.0
        %1035 = vmatpush1.msra.mxu0 %v512
        %1036 = vmatprep.subr.mxu0 0.0
        %1037 = vmatpush1.msra.mxu0 0.0
        %1038 = vmatprep.subr.mxu0 0.0
        %1039 = vmatpush1.msra.mxu0 0.0
        %1040 = vmatprep.subr.mxu0 0.0
        %1041 = vmatpush1.msra.mxu0 0.0
        %1042 = vmatprep.subr.mxu0 0.0
        %1043 = vmatpush1.msra.mxu0 0.0
        %1044 = vmatprep.subr.mxu0 0.0
        %1045 = vmatpush1.msra.mxu0 0.0
        %1046 = vmatprep.subr.mxu0 0.0
        %1047 = vmatpush1.msra.mxu0 0.0
        %1048 = vmatprep.subr.mxu0 0.0
        %1049 = vmatpush1.msra.mxu0 0.0
        %1050 = vmatprep.subr.mxu0 0.0
        %1051 = vmatpush1.msra.mxu0 0.0
        %1052 = vmatprep.subr.mxu0 0.0
        %1053 = vmatpush1.msra.mxu0 0.0
        %1054 = vmatprep.subr.mxu0 0.0
        %1055 = vmatpush1.msra.mxu0 0.0
        %1056 = vmatprep.subr.mxu0 0.0
        %1057 = vmatpush1.msra.mxu0 0.0
        %1058 = vmatprep.subr.mxu0 0.0
        %1059 = vmatpush1.msra.mxu0 0.0
        %1060 = vmatprep.subr.mxu0 0.0
        %1061 = vmatpush1.msra.mxu0 0.0
        %1062 = vmatprep.subr.mxu0 0.0
        %1063 = vmatpush1.msra.mxu0 0.0
        %1064 = vmatprep.subr.mxu0 0.0
        %1065 = vmatpush1.msra.mxu0 0.0
        %1066 = vmatprep.subr.mxu0 0.0
        %1067 = vmatpush1.msra.mxu0 0.0
        %1068 = vmatprep.subr.mxu0 0.0
        %1069 = vmatpush1.msra.mxu0 0.0
        %1070 = vmatprep.subr.mxu0 0.0
        %1071 = vmatpush1.msra.mxu0 0.0
        %1072 = vmatprep.subr.mxu0 0.0
        %1073 = vmatpush1.msra.mxu0 0.0
        %1074 = vmatprep.subr.mxu0 0.0
        %1075 = vmatpush1.msra.mxu0 0.0
        %1076 = vmatprep.subr.mxu0 0.0
        %1077 = vmatpush1.msra.mxu0 0.0
        %1078 = vmatprep.subr.mxu0 0.0
        %1079 = vmatpush1.msra.mxu0 0.0
        %1080 = vmatprep.subr.mxu0 0.0
        %1081 = vmatpush1.msra.mxu0 0.0
        %1082 = vmatprep.subr.mxu0 0.0
        %1083 = vmatpush1.msra.mxu0 0.0
        %1084 = vmatprep.subr.mxu0 0.0
        %1085 = vmatpush1.msra.mxu0 0.0
        %1086 = vmatprep.subr.mxu0 0.0
        %1087 = vmatpush1.msra.mxu0 0.0
        %1088 = vmatprep.subr.mxu0 0.0
        %1089 = vmatpush1.msra.mxu0 0.0
        %1090 = vmatprep.subr.mxu0 0.0
        %1091 = vmatpush1.msra.mxu0 0.0
        %1092 = vmatprep.subr.mxu0 0.0
        %1093 = vmatpush1.msra.mxu0 0.0
        %1094 = vmatprep.subr.mxu0 0.0
        %1095 = vmatpush1.msra.mxu0 0.0
        %1096 = vmatprep.mubr.f32.mxu0 0.0
        %1097 = vmatmul.mubr.f32.gmra.mrb[0].mxu0 %v1030
        %v1098 = vpop.f32.mrb[0].mxu0
        %v1099 = vadd.f32 0.0, %v1098
        %v1100 = vpop.f32.mrb[0].mxu0
        %1101 = vdwg.mxu0
        %v1102 = vcombine.low %v588, %v734
        %v1104 = vunpack.c.l.s4 1983009808
        %v1105 = vunpack.c.0.s8 %v1104
        %v1106 = vlaneseq
        %v1107 = vshrl.u32 %v1106, 7
        %v1108 = vsub.s32 %v1105, %v1107
        %v1109 = vrot.slane %v1102, %v1108
        %v1110 = vcombine.low %v661, %v807
        %v1112 = vunpack.c.l.s4 1983009808
        %v1113 = vunpack.c.0.s8 %v1112
        %v1114 = vlaneseq
        %v1115 = vshrl.u32 %v1114, 7
        %v1116 = vsub.s32 %v1113, %v1115
        %v1117 = vrot.slane %v1110, %v1116
        %v1118 = vcombine.low %v880, %v1026
        %v1120 = vunpack.c.l.s4 1983009808
        %v1121 = vunpack.c.0.s8 %v1120
        %v1122 = vlaneseq
        %v1123 = vshrl.u32 %v1122, 7
        %v1124 = vsub.s32 %v1121, %v1123
        %v1125 = vrot.slane %v1118, %v1124
        %v1126 = vcombine.low %v953, %v1099
        %v1128 = vunpack.c.l.s4 1983009808
        %v1129 = vunpack.c.0.s8 %v1128
        %v1130 = vlaneseq
        %v1131 = vshrl.u32 %v1130, 7
        %v1132 = vsub.s32 %v1129, %v1131
        %v1133 = vrot.slane %v1126, %v1132
        %v1134 = vcombine.low %v1109, %v1117
        %v1135 = vcombine.high %v1109, %v1117
        %v1137 = vunpack.c.l.s4 1934713408
        %v1138 = vunpack.c.0.s8 %v1137
        %v1139 = vlaneseq
        %v1140 = vshrl.u32 %v1139, 7
        %v1141 = vsub.s32 %v1138, %v1140
        %v1142 = vrot.slane %v1134, %v1141
        %v1144 = vunpack.c.l.s4 1934713408
        %v1145 = vunpack.c.0.s8 %v1144
        %v1146 = vlaneseq
        %v1147 = vshrl.u32 %v1146, 7
        %v1148 = vsub.s32 %v1145, %v1147
        %v1149 = vrot.slane %v1135, %v1148
        %v1150 = vcombine.low %v1125, %v1133
        %v1151 = vcombine.high %v1125, %v1133
        %v1153 = vunpack.c.l.s4 1934713408
        %v1154 = vunpack.c.0.s8 %v1153
        %v1155 = vlaneseq
        %v1156 = vshrl.u32 %v1155, 7
        %v1157 = vsub.s32 %v1154, %v1156
        %v1158 = vrot.slane %v1150, %v1157
        %v1160 = vunpack.c.l.s4 1934713408
        %v1161 = vunpack.c.0.s8 %v1160
        %v1162 = vlaneseq
        %v1163 = vshrl.u32 %v1162, 7
        %v1164 = vsub.s32 %v1161, %v1163
        %v1165 = vrot.slane %v1151, %v1164
        %v1166 = vcombine.low %v1142, %v1158
        %v1167 = vcombine.high %v1142, %v1158
        %v1168 = vcombine.low %v1149, %v1165
        %v1169 = vcombine.high %v1149, %v1165
        %v1170 = vcombine.low %v1166, %v1168
        %v1171 = vcombine.high %v1166, %v1168
        %v1173 = vunpack.c.l.s4 1983009808
        %v1174 = vunpack.c.0.s8 %v1173
        %v1175 = vlaneseq
        %v1176 = vshrl.u32 %v1175, 7
        %v1177 = vsub.s32 %v1174, %v1176
        %v1178 = vrot.slane %v1170, %v1177
        %v1180 = vunpack.c.l.s4 1983009808
        %v1181 = vunpack.c.0.s8 %v1180
        %v1182 = vlaneseq
        %v1183 = vshrl.u32 %v1182, 7
        %v1184 = vsub.s32 %v1181, %v1183
        %v1185 = vrot.slane %v1171, %v1184
        %v1186 = vcombine.low %v1167, %v1169
        %v1187 = vcombine.high %v1167, %v1169
        %v1189 = vunpack.c.l.s4 1983009808
        %v1190 = vunpack.c.0.s8 %v1189
        %v1191 = vlaneseq
        %v1192 = vshrl.u32 %v1191, 7
        %v1193 = vsub.s32 %v1190, %v1192
        %v1194 = vrot.slane %v1186, %v1193
        %v1196 = vunpack.c.l.s4 1983009808
        %v1197 = vunpack.c.0.s8 %v1196
        %v1198 = vlaneseq
        %v1199 = vshrl.u32 %v1198, 7
        %v1200 = vsub.s32 %v1197, %v1199
        %v1201 = vrot.slane %v1187, %v1200
        %v1202 = vcombine.low %v1178, %v1194
        %v1203 = vcombine.high %v1178, %v1194
        %v1205 = vunpack.c.l.s4 1934713408
        %v1206 = vunpack.c.0.s8 %v1205
        %v1207 = vlaneseq
        %v1208 = vshrl.u32 %v1207, 7
        %v1209 = vsub.s32 %v1206, %v1208
        %v1210 = vrot.slane %v1202, %v1209
        %v1212 = vunpack.c.l.s4 1934713408
        %v1213 = vunpack.c.0.s8 %v1212
        %v1214 = vlaneseq
        %v1215 = vshrl.u32 %v1214, 7
        %v1216 = vsub.s32 %v1213, %v1215
        %v1217 = vrot.slane %v1203, %v1216
        %v1218 = vcombine.low %v1185, %v1201
        %v1219 = vcombine.high %v1185, %v1201
        %v1221 = vunpack.c.l.s4 1934713408
        %v1222 = vunpack.c.0.s8 %v1221
        %v1223 = vlaneseq
        %v1224 = vshrl.u32 %v1223, 7
        %v1225 = vsub.s32 %v1222, %v1224
        %v1226 = vrot.slane %v1218, %v1225
        %v1228 = vunpack.c.l.s4 1934713408
        %v1229 = vunpack.c.0.s8 %v1228
        %v1230 = vlaneseq
        %v1231 = vshrl.u32 %v1230, 7
        %v1232 = vsub.s32 %v1229, %v1231
        %v1233 = vrot.slane %v1219, %v1232
        %v1234 = vcombine.high %v1210, 0.0
        %v1235 = vcombine.high %v1217, 0.0
        %v1236 = vcombine.high %v1226, 0.0
        %v1237 = vcombine.high %v1233, 0.0
        %1239 = vrot.lane.b32.xlu0 %v1234, 16
        %v1240 = vpop.permute.xlu0 %1239
        %1243 = vrot.lane.b32.xlu0 %v1217, 32
        %v1244 = vpop.permute.xlu0 %1243
        %1247 = vrot.lane.b32.xlu0 %v1235, 48
        %v1248 = vpop.permute.xlu0 %1247
        %1251 = vrot.lane.b32.xlu0 %v1226, 64
        %v1252 = vpop.permute.xlu0 %1251
        %1255 = vrot.lane.b32.xlu0 %v1236, 80
        %v1256 = vpop.permute.xlu0 %1255
        %1259 = vrot.lane.b32.xlu0 %v1233, 96
        %v1260 = vpop.permute.xlu0 %1259
        %1263 = vrot.lane.b32.xlu0 %v1237, 112
        %v1264 = vpop.permute.xlu0 %1263
        %v1266 = vsel %vm468, %v1210, %v1240
        %v1267 = vsel %vm470, %v1266, %v1244
        %v1268 = vsel %vm472, %v1267, %v1248
        %v1269 = vsel %vm474, %v1268, %v1252
        %v1270 = vsel %vm476, %v1269, %v1256
        %v1271 = vsel %vm478, %v1270, %v1260
        %v1272 = vsel %vm480, %v1271, %v1264
        %1273 = vst [vmem:[#allocation3 + $0x4] sm:$0xf] %v1272
        %s1274 = scalar_lea.vmem [#allocation2], 8
        %v1275 = vld [vmem:[%s1274] sm:$0xf]
        %1276 = vst.msk [vmem:[%s1274] sm:$0xf] %vm516, %v1099
        %v1278 = vsel %vm468, %v1275, 0
        %1280 = vmatprep.subr.mxu0 0.0
        %1281 = vmatpush1.msra.mxu0 %v483
        %1282 = vmatprep.subr.mxu0 0.0
        %1283 = vmatpush1.msra.mxu0 %v484
        %1284 = vmatprep.subr.mxu0 0.0
        %1285 = vmatpush1.msra.mxu0 0.0
        %1286 = vmatprep.subr.mxu0 0.0
        %1287 = vmatpush1.msra.mxu0 0.0
        %1288 = vmatprep.subr.mxu0 0.0
        %1289 = vmatpush1.msra.mxu0 0.0
        %1290 = vmatprep.subr.mxu0 0.0
        %1291 = vmatpush1.msra.mxu0 0.0
        %1292 = vmatprep.subr.mxu0 0.0
        %1293 = vmatpush1.msra.mxu0 0.0
        %1294 = vmatprep.subr.mxu0 0.0
        %1295 = vmatpush1.msra.mxu0 0.0
        %1296 = vmatprep.subr.mxu0 0.0
        %1297 = vmatpush1.msra.mxu0 0.0
        %1298 = vmatprep.subr.mxu0 0.0
        %1299 = vmatpush1.msra.mxu0 0.0
        %1300 = vmatprep.subr.mxu0 0.0
        %1301 = vmatpush1.msra.mxu0 0.0
        %1302 = vmatprep.subr.mxu0 0.0
        %1303 = vmatpush1.msra.mxu0 0.0
        %1304 = vmatprep.subr.mxu0 0.0
        %1305 = vmatpush1.msra.mxu0 0.0
        %1306 = vmatprep.subr.mxu0 0.0
        %1307 = vmatpush1.msra.mxu0 0.0
        %1308 = vmatprep.subr.mxu0 0.0
        %1309 = vmatpush1.msra.mxu0 0.0
        %1310 = vmatprep.subr.mxu0 0.0
        %1311 = vmatpush1.msra.mxu0 0.0
        %1312 = vmatprep.subr.mxu0 0.0
        %1313 = vmatpush1.msra.mxu0 0.0
        %1314 = vmatprep.subr.mxu0 0.0
        %1315 = vmatpush1.msra.mxu0 0.0
        %1316 = vmatprep.subr.mxu0 0.0
        %1317 = vmatpush1.msra.mxu0 0.0
        %1318 = vmatprep.subr.mxu0 0.0
        %1319 = vmatpush1.msra.mxu0 0.0
        %1320 = vmatprep.subr.mxu0 0.0
        %1321 = vmatpush1.msra.mxu0 0.0
        %1322 = vmatprep.subr.mxu0 0.0
        %1323 = vmatpush1.msra.mxu0 0.0
        %1324 = vmatprep.subr.mxu0 0.0
        %1325 = vmatpush1.msra.mxu0 0.0
        %1326 = vmatprep.subr.mxu0 0.0
        %1327 = vmatpush1.msra.mxu0 0.0
        %1328 = vmatprep.subr.mxu0 0.0
        %1329 = vmatpush1.msra.mxu0 0.0
        %1330 = vmatprep.subr.mxu0 0.0
        %1331 = vmatpush1.msra.mxu0 0.0
        %1332 = vmatprep.subr.mxu0 0.0
        %1333 = vmatpush1.msra.mxu0 0.0
        %1334 = vmatprep.subr.mxu0 0.0
        %1335 = vmatpush1.msra.mxu0 0.0
        %1336 = vmatprep.subr.mxu0 0.0
        %1337 = vmatpush1.msra.mxu0 0.0
        %1338 = vmatprep.subr.mxu0 0.0
        %1339 = vmatpush1.msra.mxu0 0.0
        %1340 = vmatprep.subr.mxu0 0.0
        %1341 = vmatpush1.msra.mxu0 0.0
        %1342 = vmatprep.subr.mxu0 0.0
        %1343 = vmatpush1.msra.mxu0 0.0
        %1344 = vmatprep.mubr.f32.mxu0 0.0
        %1345 = vmatmul.mubr.f32.gmra.mrb[0].mxu0 %v1278
        %v1346 = vpop.f32.mrb[0].mxu0
        %v1347 = vadd.f32 0.0, %v1346
        %v1348 = vpop.f32.mrb[0].mxu0
        %1349 = vdwg.mxu0
        %v1351 = vsel %vm468, %v588, 0
        %1353 = vmatprep.subr.mxu0 0.0
        %1354 = vmatpush1.msra.mxu0 %v487
        %1355 = vmatprep.subr.mxu0 0.0
        %1356 = vmatpush1.msra.mxu0 %v488
        %1357 = vmatprep.subr.mxu0 0.0
        %1358 = vmatpush1.msra.mxu0 0.0
        %1359 = vmatprep.subr.mxu0 0.0
        %1360 = vmatpush1.msra.mxu0 0.0
        %1361 = vmatprep.subr.mxu0 0.0
        %1362 = vmatpush1.msra.mxu0 0.0
        %1363 = vmatprep.subr.mxu0 0.0
        %1364 = vmatpush1.msra.mxu0 0.0
        %1365 = vmatprep.subr.mxu0 0.0
        %1366 = vmatpush1.msra.mxu0 0.0
        %1367 = vmatprep.subr.mxu0 0.0
        %1368 = vmatpush1.msra.mxu0 0.0
        %1369 = vmatprep.subr.mxu0 0.0
        %1370 = vmatpush1.msra.mxu0 0.0
        %1371 = vmatprep.subr.mxu0 0.0
        %1372 = vmatpush1.msra.mxu0 0.0
        %1373 = vmatprep.subr.mxu0 0.0
        %1374 = vmatpush1.msra.mxu0 0.0
        %1375 = vmatprep.subr.mxu0 0.0
        %1376 = vmatpush1.msra.mxu0 0.0
        %1377 = vmatprep.subr.mxu0 0.0
        %1378 = vmatpush1.msra.mxu0 0.0
        %1379 = vmatprep.subr.mxu0 0.0
        %1380 = vmatpush1.msra.mxu0 0.0
        %1381 = vmatprep.subr.mxu0 0.0
        %1382 = vmatpush1.msra.mxu0 0.0
        %1383 = vmatprep.subr.mxu0 0.0
        %1384 = vmatpush1.msra.mxu0 0.0
        %1385 = vmatprep.subr.mxu0 0.0
        %1386 = vmatpush1.msra.mxu0 0.0
        %1387 = vmatprep.subr.mxu0 0.0
        %1388 = vmatpush1.msra.mxu0 0.0
        %1389 = vmatprep.subr.mxu0 0.0
        %1390 = vmatpush1.msra.mxu0 0.0
        %1391 = vmatprep.subr.mxu0 0.0
        %1392 = vmatpush1.msra.mxu0 0.0
        %1393 = vmatprep.subr.mxu0 0.0
        %1394 = vmatpush1.msra.mxu0 0.0
        %1395 = vmatprep.subr.mxu0 0.0
        %1396 = vmatpush1.msra.mxu0 0.0
        %1397 = vmatprep.subr.mxu0 0.0
        %1398 = vmatpush1.msra.mxu0 0.0
        %1399 = vmatprep.subr.mxu0 0.0
        %1400 = vmatpush1.msra.mxu0 0.0
        %1401 = vmatprep.subr.mxu0 0.0
        %1402 = vmatpush1.msra.mxu0 0.0
        %1403 = vmatprep.subr.mxu0 0.0
        %1404 = vmatpush1.msra.mxu0 0.0
        %1405 = vmatprep.subr.mxu0 0.0
        %1406 = vmatpush1.msra.mxu0 0.0
        %1407 = vmatprep.subr.mxu0 0.0
        %1408 = vmatpush1.msra.mxu0 0.0
        %1409 = vmatprep.subr.mxu0 0.0
        %1410 = vmatpush1.msra.mxu0 0.0
        %1411 = vmatprep.subr.mxu0 0.0
        %1412 = vmatpush1.msra.mxu0 0.0
        %1413 = vmatprep.subr.mxu0 0.0
        %1414 = vmatpush1.msra.mxu0 0.0
        %1415 = vmatprep.subr.mxu0 0.0
        %1416 = vmatpush1.msra.mxu0 0.0
        %1417 = vmatprep.mubr.f32.mxu0 0.0
        %1418 = vmatmul.mubr.f32.gmra.mrb[0].mxu0 %v1351
        %v1419 = vpop.f32.mrb[0].mxu0
        %v1420 = vadd.f32 0.0, %v1419
        %v1421 = vpop.f32.mrb[0].mxu0
        %1422 = vdwg.mxu0
        %v1424 = vsel %vm468, %v661, 0
        %1426 = vmatprep.subr.mxu0 0.0
        %1427 = vmatpush1.msra.mxu0 %v491
        %1428 = vmatprep.subr.mxu0 0.0
        %1429 = vmatpush1.msra.mxu0 %v492
        %1430 = vmatprep.subr.mxu0 0.0
        %1431 = vmatpush1.msra.mxu0 0.0
        %1432 = vmatprep.subr.mxu0 0.0
        %1433 = vmatpush1.msra.mxu0 0.0
        %1434 = vmatprep.subr.mxu0 0.0
        %1435 = vmatpush1.msra.mxu0 0.0
        %1436 = vmatprep.subr.mxu0 0.0
        %1437 = vmatpush1.msra.mxu0 0.0
        %1438 = vmatprep.subr.mxu0 0.0
        %1439 = vmatpush1.msra.mxu0 0.0
        %1440 = vmatprep.subr.mxu0 0.0
        %1441 = vmatpush1.msra.mxu0 0.0
        %1442 = vmatprep.subr.mxu0 0.0
        %1443 = vmatpush1.msra.mxu0 0.0
        %1444 = vmatprep.subr.mxu0 0.0
        %1445 = vmatpush1.msra.mxu0 0.0
        %1446 = vmatprep.subr.mxu0 0.0
        %1447 = vmatpush1.msra.mxu0 0.0
        %1448 = vmatprep.subr.mxu0 0.0
        %1449 = vmatpush1.msra.mxu0 0.0
        %1450 = vmatprep.subr.mxu0 0.0
        %1451 = vmatpush1.msra.mxu0 0.0
        %1452 = vmatprep.subr.mxu0 0.0
        %1453 = vmatpush1.msra.mxu0 0.0
        %1454 = vmatprep.subr.mxu0 0.0
        %1455 = vmatpush1.msra.mxu0 0.0
        %1456 = vmatprep.subr.mxu0 0.0
        %1457 = vmatpush1.msra.mxu0 0.0
        %1458 = vmatprep.subr.mxu0 0.0
        %1459 = vmatpush1.msra.mxu0 0.0
        %1460 = vmatprep.subr.mxu0 0.0
        %1461 = vmatpush1.msra.mxu0 0.0
        %1462 = vmatprep.subr.mxu0 0.0
        %1463 = vmatpush1.msra.mxu0 0.0
        %1464 = vmatprep.subr.mxu0 0.0
        %1465 = vmatpush1.msra.mxu0 0.0
        %1466 = vmatprep.subr.mxu0 0.0
        %1467 = vmatpush1.msra.mxu0 0.0
        %1468 = vmatprep.subr.mxu0 0.0
        %1469 = vmatpush1.msra.mxu0 0.0
        %1470 = vmatprep.subr.mxu0 0.0
        %1471 = vmatpush1.msra.mxu0 0.0
        %1472 = vmatprep.subr.mxu0 0.0
        %1473 = vmatpush1.msra.mxu0 0.0
        %1474 = vmatprep.subr.mxu0 0.0
        %1475 = vmatpush1.msra.mxu0 0.0
        %1476 = vmatprep.subr.mxu0 0.0
        %1477 = vmatpush1.msra.mxu0 0.0
        %1478 = vmatprep.subr.mxu0 0.0
        %1479 = vmatpush1.msra.mxu0 0.0
        %1480 = vmatprep.subr.mxu0 0.0
        %1481 = vmatpush1.msra.mxu0 0.0
        %1482 = vmatprep.subr.mxu0 0.0
        %1483 = vmatpush1.msra.mxu0 0.0
        %1484 = vmatprep.subr.mxu0 0.0
        %1485 = vmatpush1.msra.mxu0 0.0
        %1486 = vmatprep.subr.mxu0 0.0
        %1487 = vmatpush1.msra.mxu0 0.0
        %1488 = vmatprep.subr.mxu0 0.0
        %1489 = vmatpush1.msra.mxu0 0.0
        %1490 = vmatprep.mubr.f32.mxu0 0.0
        %1491 = vmatmul.mubr.f32.gmra.mrb[0].mxu0 %v1424
        %v1492 = vpop.f32.mrb[0].mxu0
        %v1493 = vadd.f32 0.0, %v1492
        %v1494 = vpop.f32.mrb[0].mxu0
        %1495 = vdwg.mxu0
        %v1497 = vsel %vm468, %v734, 0
        %1499 = vmatprep.subr.mxu0 0.0
        %1500 = vmatpush1.msra.mxu0 %v495
        %1501 = vmatprep.subr.mxu0 0.0
        %1502 = vmatpush1.msra.mxu0 %v496
        %1503 = vmatprep.subr.mxu0 0.0
        %1504 = vmatpush1.msra.mxu0 0.0
        %1505 = vmatprep.subr.mxu0 0.0
        %1506 = vmatpush1.msra.mxu0 0.0
        %1507 = vmatprep.subr.mxu0 0.0
        %1508 = vmatpush1.msra.mxu0 0.0
        %1509 = vmatprep.subr.mxu0 0.0
        %1510 = vmatpush1.msra.mxu0 0.0
        %1511 = vmatprep.subr.mxu0 0.0
        %1512 = vmatpush1.msra.mxu0 0.0
        %1513 = vmatprep.subr.mxu0 0.0
        %1514 = vmatpush1.msra.mxu0 0.0
        %1515 = vmatprep.subr.mxu0 0.0
        %1516 = vmatpush1.msra.mxu0 0.0
        %1517 = vmatprep.subr.mxu0 0.0
        %1518 = vmatpush1.msra.mxu0 0.0
        %1519 = vmatprep.subr.mxu0 0.0
        %1520 = vmatpush1.msra.mxu0 0.0
        %1521 = vmatprep.subr.mxu0 0.0
        %1522 = vmatpush1.msra.mxu0 0.0
        %1523 = vmatprep.subr.mxu0 0.0
        %1524 = vmatpush1.msra.mxu0 0.0
        %1525 = vmatprep.subr.mxu0 0.0
        %1526 = vmatpush1.msra.mxu0 0.0
        %1527 = vmatprep.subr.mxu0 0.0
        %1528 = vmatpush1.msra.mxu0 0.0
        %1529 = vmatprep.subr.mxu0 0.0
        %1530 = vmatpush1.msra.mxu0 0.0
        %1531 = vmatprep.subr.mxu0 0.0
        %1532 = vmatpush1.msra.mxu0 0.0
        %1533 = vmatprep.subr.mxu0 0.0
        %1534 = vmatpush1.msra.mxu0 0.0
        %1535 = vmatprep.subr.mxu0 0.0
        %1536 = vmatpush1.msra.mxu0 0.0
        %1537 = vmatprep.subr.mxu0 0.0
        %1538 = vmatpush1.msra.mxu0 0.0
        %1539 = vmatprep.subr.mxu0 0.0
        %1540 = vmatpush1.msra.mxu0 0.0
        %1541 = vmatprep.subr.mxu0 0.0
        %1542 = vmatpush1.msra.mxu0 0.0
        %1543 = vmatprep.subr.mxu0 0.0
        %1544 = vmatpush1.msra.mxu0 0.0
        %1545 = vmatprep.subr.mxu0 0.0
        %1546 = vmatpush1.msra.mxu0 0.0
        %1547 = vmatprep.subr.mxu0 0.0
        %1548 = vmatpush1.msra.mxu0 0.0
        %1549 = vmatprep.subr.mxu0 0.0
        %1550 = vmatpush1.msra.mxu0 0.0
        %1551 = vmatprep.subr.mxu0 0.0
        %1552 = vmatpush1.msra.mxu0 0.0
        %1553 = vmatprep.subr.mxu0 0.0
        %1554 = vmatpush1.msra.mxu0 0.0
        %1555 = vmatprep.subr.mxu0 0.0
        %1556 = vmatpush1.msra.mxu0 0.0
        %1557 = vmatprep.subr.mxu0 0.0
        %1558 = vmatpush1.msra.mxu0 0.0
        %1559 = vmatprep.subr.mxu0 0.0
        %1560 = vmatpush1.msra.mxu0 0.0
        %1561 = vmatprep.subr.mxu0 0.0
        %1562 = vmatpush1.msra.mxu0 0.0
        %1563 = vmatprep.mubr.f32.mxu0 0.0
        %1564 = vmatmul.mubr.f32.gmra.mrb[0].mxu0 %v1497
        %v1565 = vpop.f32.mrb[0].mxu0
        %v1566 = vadd.f32 0.0, %v1565
        %v1567 = vpop.f32.mrb[0].mxu0
        %1568 = vdwg.mxu0
        %v1570 = vsel %vm468, %v807, 0
        %1572 = vmatprep.subr.mxu0 0.0
        %1573 = vmatpush1.msra.mxu0 %v499
        %1574 = vmatprep.subr.mxu0 0.0
        %1575 = vmatpush1.msra.mxu0 %v500
        %1576 = vmatprep.subr.mxu0 0.0
        %1577 = vmatpush1.msra.mxu0 0.0
        %1578 = vmatprep.subr.mxu0 0.0
        %1579 = vmatpush1.msra.mxu0 0.0
        %1580 = vmatprep.subr.mxu0 0.0
        %1581 = vmatpush1.msra.mxu0 0.0
        %1582 = vmatprep.subr.mxu0 0.0
        %1583 = vmatpush1.msra.mxu0 0.0
        %1584 = vmatprep.subr.mxu0 0.0
        %1585 = vmatpush1.msra.mxu0 0.0
        %1586 = vmatprep.subr.mxu0 0.0
        %1587 = vmatpush1.msra.mxu0 0.0
        %1588 = vmatprep.subr.mxu0 0.0
        %1589 = vmatpush1.msra.mxu0 0.0
        %1590 = vmatprep.subr.mxu0 0.0
        %1591 = vmatpush1.msra.mxu0 0.0
        %1592 = vmatprep.subr.mxu0 0.0
        %1593 = vmatpush1.msra.mxu0 0.0
        %1594 = vmatprep.subr.mxu0 0.0
        %1595 = vmatpush1.msra.mxu0 0.0
        %1596 = vmatprep.subr.mxu0 0.0
        %1597 = vmatpush1.msra.mxu0 0.0
        %1598 = vmatprep.subr.mxu0 0.0
        %1599 = vmatpush1.msra.mxu0 0.0
        %1600 = vmatprep.subr.mxu0 0.0
        %1601 = vmatpush1.msra.mxu0 0.0
        %1602 = vmatprep.subr.mxu0 0.0
        %1603 = vmatpush1.msra.mxu0 0.0
        %1604 = vmatprep.subr.mxu0 0.0
        %1605 = vmatpush1.msra.mxu0 0.0
        %1606 = vmatprep.subr.mxu0 0.0
        %1607 = vmatpush1.msra.mxu0 0.0
        %1608 = vmatprep.subr.mxu0 0.0
        %1609 = vmatpush1.msra.mxu0 0.0
        %1610 = vmatprep.subr.mxu0 0.0
        %1611 = vmatpush1.msra.mxu0 0.0
        %1612 = vmatprep.subr.mxu0 0.0
        %1613 = vmatpush1.msra.mxu0 0.0
        %1614 = vmatprep.subr.mxu0 0.0
        %1615 = vmatpush1.msra.mxu0 0.0
        %1616 = vmatprep.subr.mxu0 0.0
        %1617 = vmatpush1.msra.mxu0 0.0
        %1618 = vmatprep.subr.mxu0 0.0
        %1619 = vmatpush1.msra.mxu0 0.0
        %1620 = vmatprep.subr.mxu0 0.0
        %1621 = vmatpush1.msra.mxu0 0.0
        %1622 = vmatprep.subr.mxu0 0.0
        %1623 = vmatpush1.msra.mxu0 0.0
        %1624 = vmatprep.subr.mxu0 0.0
        %1625 = vmatpush1.msra.mxu0 0.0
        %1626 = vmatprep.subr.mxu0 0.0
        %1627 = vmatpush1.msra.mxu0 0.0
        %1628 = vmatprep.subr.mxu0 0.0
        %1629 = vmatpush1.msra.mxu0 0.0
        %1630 = vmatprep.subr.mxu0 0.0
        %1631 = vmatpush1.msra.mxu0 0.0
        %1632 = vmatprep.subr.mxu0 0.0
        %1633 = vmatpush1.msra.mxu0 0.0
        %1634 = vmatprep.subr.mxu0 0.0
        %1635 = vmatpush1.msra.mxu0 0.0
        %1636 = vmatprep.mubr.f32.mxu0 0.0
        %1637 = vmatmul.mubr.f32.gmra.mrb[0].mxu0 %v1570
        %v1638 = vpop.f32.mrb[0].mxu0
        %v1639 = vadd.f32 0.0, %v1638
        %v1640 = vpop.f32.mrb[0].mxu0
        %1641 = vdwg.mxu0
        %v1643 = vsel %vm468, %v880, 0
        %1645 = vmatprep.subr.mxu0 0.0
        %1646 = vmatpush1.msra.mxu0 %v503
        %1647 = vmatprep.subr.mxu0 0.0
        %1648 = vmatpush1.msra.mxu0 %v504
        %1649 = vmatprep.subr.mxu0 0.0
        %1650 = vmatpush1.msra.mxu0 0.0
        %1651 = vmatprep.subr.mxu0 0.0
        %1652 = vmatpush1.msra.mxu0 0.0
        %1653 = vmatprep.subr.mxu0 0.0
        %1654 = vmatpush1.msra.mxu0 0.0
        %1655 = vmatprep.subr.mxu0 0.0
        %1656 = vmatpush1.msra.mxu0 0.0
        %1657 = vmatprep.subr.mxu0 0.0
        %1658 = vmatpush1.msra.mxu0 0.0
        %1659 = vmatprep.subr.mxu0 0.0
        %1660 = vmatpush1.msra.mxu0 0.0
        %1661 = vmatprep.subr.mxu0 0.0
        %1662 = vmatpush1.msra.mxu0 0.0
        %1663 = vmatprep.subr.mxu0 0.0
        %1664 = vmatpush1.msra.mxu0 0.0
        %1665 = vmatprep.subr.mxu0 0.0
        %1666 = vmatpush1.msra.mxu0 0.0
        %1667 = vmatprep.subr.mxu0 0.0
        %1668 = vmatpush1.msra.mxu0 0.0
        %1669 = vmatprep.subr.mxu0 0.0
        %1670 = vmatpush1.msra.mxu0 0.0
        %1671 = vmatprep.subr.mxu0 0.0
        %1672 = vmatpush1.msra.mxu0 0.0
        %1673 = vmatprep.subr.mxu0 0.0
        %1674 = vmatpush1.msra.mxu0 0.0
        %1675 = vmatprep.subr.mxu0 0.0
        %1676 = vmatpush1.msra.mxu0 0.0
        %1677 = vmatprep.subr.mxu0 0.0
        %1678 = vmatpush1.msra.mxu0 0.0
        %1679 = vmatprep.subr.mxu0 0.0
        %1680 = vmatpush1.msra.mxu0 0.0
        %1681 = vmatprep.subr.mxu0 0.0
        %1682 = vmatpush1.msra.mxu0 0.0
        %1683 = vmatprep.subr.mxu0 0.0
        %1684 = vmatpush1.msra.mxu0 0.0
        %1685 = vmatprep.subr.mxu0 0.0
        %1686 = vmatpush1.msra.mxu0 0.0
        %1687 = vmatprep.subr.mxu0 0.0
        %1688 = vmatpush1.msra.mxu0 0.0
        %1689 = vmatprep.subr.mxu0 0.0
        %1690 = vmatpush1.msra.mxu0 0.0
        %1691 = vmatprep.subr.mxu0 0.0
        %1692 = vmatpush1.msra.mxu0 0.0
        %1693 = vmatprep.subr.mxu0 0.0
        %1694 = vmatpush1.msra.mxu0 0.0
        %1695 = vmatprep.subr.mxu0 0.0
        %1696 = vmatpush1.msra.mxu0 0.0
        %1697 = vmatprep.subr.mxu0 0.0
        %1698 = vmatpush1.msra.mxu0 0.0
        %1699 = vmatprep.subr.mxu0 0.0
        %1700 = vmatpush1.msra.mxu0 0.0
        %1701 = vmatprep.subr.mxu0 0.0
        %1702 = vmatpush1.msra.mxu0 0.0
        %1703 = vmatprep.subr.mxu0 0.0
        %1704 = vmatpush1.msra.mxu0 0.0
        %1705 = vmatprep.subr.mxu0 0.0
        %1706 = vmatpush1.msra.mxu0 0.0
        %1707 = vmatprep.subr.mxu0 0.0
        %1708 = vmatpush1.msra.mxu0 0.0
        %1709 = vmatprep.mubr.f32.mxu0 0.0
        %1710 = vmatmul.mubr.f32.gmra.mrb[0].mxu0 %v1643
        %v1711 = vpop.f32.mrb[0].mxu0
        %v1712 = vadd.f32 0.0, %v1711
        %v1713 = vpop.f32.mrb[0].mxu0
        %1714 = vdwg.mxu0
        %v1716 = vsel %vm468, %v953, 0
        %1718 = vmatprep.subr.mxu0 0.0
        %1719 = vmatpush1.msra.mxu0 %v507
        %1720 = vmatprep.subr.mxu0 0.0
        %1721 = vmatpush1.msra.mxu0 %v508
        %1722 = vmatprep.subr.mxu0 0.0
        %1723 = vmatpush1.msra.mxu0 0.0
        %1724 = vmatprep.subr.mxu0 0.0
        %1725 = vmatpush1.msra.mxu0 0.0
        %1726 = vmatprep.subr.mxu0 0.0
        %1727 = vmatpush1.msra.mxu0 0.0
        %1728 = vmatprep.subr.mxu0 0.0
        %1729 = vmatpush1.msra.mxu0 0.0
        %1730 = vmatprep.subr.mxu0 0.0
        %1731 = vmatpush1.msra.mxu0 0.0
        %1732 = vmatprep.subr.mxu0 0.0
        %1733 = vmatpush1.msra.mxu0 0.0
        %1734 = vmatprep.subr.mxu0 0.0
        %1735 = vmatpush1.msra.mxu0 0.0
        %1736 = vmatprep.subr.mxu0 0.0
        %1737 = vmatpush1.msra.mxu0 0.0
        %1738 = vmatprep.subr.mxu0 0.0
        %1739 = vmatpush1.msra.mxu0 0.0
        %1740 = vmatprep.subr.mxu0 0.0
        %1741 = vmatpush1.msra.mxu0 0.0
        %1742 = vmatprep.subr.mxu0 0.0
        %1743 = vmatpush1.msra.mxu0 0.0
        %1744 = vmatprep.subr.mxu0 0.0
        %1745 = vmatpush1.msra.mxu0 0.0
        %1746 = vmatprep.subr.mxu0 0.0
        %1747 = vmatpush1.msra.mxu0 0.0
        %1748 = vmatprep.subr.mxu0 0.0
        %1749 = vmatpush1.msra.mxu0 0.0
        %1750 = vmatprep.subr.mxu0 0.0
        %1751 = vmatpush1.msra.mxu0 0.0
        %1752 = vmatprep.subr.mxu0 0.0
        %1753 = vmatpush1.msra.mxu0 0.0
        %1754 = vmatprep.subr.mxu0 0.0
        %1755 = vmatpush1.msra.mxu0 0.0
        %1756 = vmatprep.subr.mxu0 0.0
        %1757 = vmatpush1.msra.mxu0 0.0
        %1758 = vmatprep.subr.mxu0 0.0
        %1759 = vmatpush1.msra.mxu0 0.0
        %1760 = vmatprep.subr.mxu0 0.0
        %1761 = vmatpush1.msra.mxu0 0.0
        %1762 = vmatprep.subr.mxu0 0.0
        %1763 = vmatpush1.msra.mxu0 0.0
        %1764 = vmatprep.subr.mxu0 0.0
        %1765 = vmatpush1.msra.mxu0 0.0
        %1766 = vmatprep.subr.mxu0 0.0
        %1767 = vmatpush1.msra.mxu0 0.0
        %1768 = vmatprep.subr.mxu0 0.0
        %1769 = vmatpush1.msra.mxu0 0.0
        %1770 = vmatprep.subr.mxu0 0.0
        %1771 = vmatpush1.msra.mxu0 0.0
        %1772 = vmatprep.subr.mxu0 0.0
        %1773 = vmatpush1.msra.mxu0 0.0
        %1774 = vmatprep.subr.mxu0 0.0
        %1775 = vmatpush1.msra.mxu0 0.0
        %1776 = vmatprep.subr.mxu0 0.0
        %1777 = vmatpush1.msra.mxu0 0.0
        %1778 = vmatprep.subr.mxu0 0.0
        %1779 = vmatpush1.msra.mxu0 0.0
        %1780 = vmatprep.subr.mxu0 0.0
        %1781 = vmatpush1.msra.mxu0 0.0
        %1782 = vmatprep.mubr.f32.mxu0 0.0
        %1783 = vmatmul.mubr.f32.gmra.mrb[0].mxu0 %v1716
        %v1784 = vpop.f32.mrb[0].mxu0
        %v1785 = vadd.f32 0.0, %v1784
        %v1786 = vpop.f32.mrb[0].mxu0
        %1787 = vdwg.mxu0
        %v1789 = vsel %vm468, %v1026, 0
        %1791 = vmatprep.subr.mxu0 0.0
        %1792 = vmatpush1.msra.mxu0 %v511
        %1793 = vmatprep.subr.mxu0 0.0
        %1794 = vmatpush1.msra.mxu0 %v512
        %1795 = vmatprep.subr.mxu0 0.0
        %1796 = vmatpush1.msra.mxu0 0.0
        %1797 = vmatprep.subr.mxu0 0.0
        %1798 = vmatpush1.msra.mxu0 0.0
        %1799 = vmatprep.subr.mxu0 0.0
        %1800 = vmatpush1.msra.mxu0 0.0
        %1801 = vmatprep.subr.mxu0 0.0
        %1802 = vmatpush1.msra.mxu0 0.0
        %1803 = vmatprep.subr.mxu0 0.0
        %1804 = vmatpush1.msra.mxu0 0.0
        %1805 = vmatprep.subr.mxu0 0.0
        %1806 = vmatpush1.msra.mxu0 0.0
        %1807 = vmatprep.subr.mxu0 0.0
        %1808 = vmatpush1.msra.mxu0 0.0
        %1809 = vmatprep.subr.mxu0 0.0
        %1810 = vmatpush1.msra.mxu0 0.0
        %1811 = vmatprep.subr.mxu0 0.0
        %1812 = vmatpush1.msra.mxu0 0.0
        %1813 = vmatprep.subr.mxu0 0.0
        %1814 = vmatpush1.msra.mxu0 0.0
        %1815 = vmatprep.subr.mxu0 0.0
        %1816 = vmatpush1.msra.mxu0 0.0
        %1817 = vmatprep.subr.mxu0 0.0
        %1818 = vmatpush1.msra.mxu0 0.0
        %1819 = vmatprep.subr.mxu0 0.0
        %1820 = vmatpush1.msra.mxu0 0.0
        %1821 = vmatprep.subr.mxu0 0.0
        %1822 = vmatpush1.msra.mxu0 0.0
        %1823 = vmatprep.subr.mxu0 0.0
        %1824 = vmatpush1.msra.mxu0 0.0
        %1825 = vmatprep.subr.mxu0 0.0
        %1826 = vmatpush1.msra.mxu0 0.0
        %1827 = vmatprep.subr.mxu0 0.0
        %1828 = vmatpush1.msra.mxu0 0.0
        %1829 = vmatprep.subr.mxu0 0.0
        %1830 = vmatpush1.msra.mxu0 0.0
        %1831 = vmatprep.subr.mxu0 0.0
        %1832 = vmatpush1.msra.mxu0 0.0
        %1833 = vmatprep.subr.mxu0 0.0
        %1834 = vmatpush1.msra.mxu0 0.0
        %1835 = vmatprep.subr.mxu0 0.0
        %1836 = vmatpush1.msra.mxu0 0.0
        %1837 = vmatprep.subr.mxu0 0.0
        %1838 = vmatpush1.msra.mxu0 0.0
        %1839 = vmatprep.subr.mxu0 0.0
        %1840 = vmatpush1.msra.mxu0 0.0
        %1841 = vmatprep.subr.mxu0 0.0
        %1842 = vmatpush1.msra.mxu0 0.0
        %1843 = vmatprep.subr.mxu0 0.0
        %1844 = vmatpush1.msra.mxu0 0.0
        %1845 = vmatprep.subr.mxu0 0.0
        %1846 = vmatpush1.msra.mxu0 0.0
        %1847 = vmatprep.subr.mxu0 0.0
        %1848 = vmatpush1.msra.mxu0 0.0
        %1849 = vmatprep.subr.mxu0 0.0
        %1850 = vmatpush1.msra.mxu0 0.0
        %1851 = vmatprep.subr.mxu0 0.0
        %1852 = vmatpush1.msra.mxu0 0.0
        %1853 = vmatprep.subr.mxu0 0.0
        %1854 = vmatpush1.msra.mxu0 0.0
        %1855 = vmatprep.mubr.f32.mxu0 0.0
        %1856 = vmatmul.mubr.f32.gmra.mrb[0].mxu0 %v1789
        %v1857 = vpop.f32.mrb[0].mxu0
        %v1858 = vadd.f32 0.0, %v1857
        %v1859 = vpop.f32.mrb[0].mxu0
        %1860 = vdwg.mxu0
        %v1861 = vcombine.low %v1347, %v1493
        %v1863 = vunpack.c.l.s4 1983009808
        %v1864 = vunpack.c.0.s8 %v1863
        %v1865 = vlaneseq
        %v1866 = vshrl.u32 %v1865, 7
        %v1867 = vsub.s32 %v1864, %v1866
        %v1868 = vrot.slane %v1861, %v1867
        %v1869 = vcombine.low %v1420, %v1566
        %v1871 = vunpack.c.l.s4 1983009808
        %v1872 = vunpack.c.0.s8 %v1871
        %v1873 = vlaneseq
        %v1874 = vshrl.u32 %v1873, 7
        %v1875 = vsub.s32 %v1872, %v1874
        %v1876 = vrot.slane %v1869, %v1875
        %v1877 = vcombine.low %v1639, %v1785
        %v1879 = vunpack.c.l.s4 1983009808
        %v1880 = vunpack.c.0.s8 %v1879
        %v1881 = vlaneseq
        %v1882 = vshrl.u32 %v1881, 7
        %v1883 = vsub.s32 %v1880, %v1882
        %v1884 = vrot.slane %v1877, %v1883
        %v1885 = vcombine.low %v1712, %v1858
        %v1887 = vunpack.c.l.s4 1983009808
        %v1888 = vunpack.c.0.s8 %v1887
        %v1889 = vlaneseq
        %v1890 = vshrl.u32 %v1889, 7
        %v1891 = vsub.s32 %v1888, %v1890
        %v1892 = vrot.slane %v1885, %v1891
        %v1893 = vcombine.low %v1868, %v1876
        %v1894 = vcombine.high %v1868, %v1876
        %v1896 = vunpack.c.l.s4 1934713408
        %v1897 = vunpack.c.0.s8 %v1896
        %v1898 = vlaneseq
        %v1899 = vshrl.u32 %v1898, 7
        %v1900 = vsub.s32 %v1897, %v1899
        %v1901 = vrot.slane %v1893, %v1900
        %v1903 = vunpack.c.l.s4 1934713408
        %v1904 = vunpack.c.0.s8 %v1903
        %v1905 = vlaneseq
        %v1906 = vshrl.u32 %v1905, 7
        %v1907 = vsub.s32 %v1904, %v1906
        %v1908 = vrot.slane %v1894, %v1907
        %v1909 = vcombine.low %v1884, %v1892
        %v1910 = vcombine.high %v1884, %v1892
        %v1912 = vunpack.c.l.s4 1934713408
        %v1913 = vunpack.c.0.s8 %v1912
        %v1914 = vlaneseq
        %v1915 = vshrl.u32 %v1914, 7
        %v1916 = vsub.s32 %v1913, %v1915
        %v1917 = vrot.slane %v1909, %v1916
        %v1919 = vunpack.c.l.s4 1934713408
        %v1920 = vunpack.c.0.s8 %v1919
        %v1921 = vlaneseq
        %v1922 = vshrl.u32 %v1921, 7
        %v1923 = vsub.s32 %v1920, %v1922
        %v1924 = vrot.slane %v1910, %v1923
        %v1925 = vcombine.low %v1901, %v1917
        %v1926 = vcombine.high %v1901, %v1917
        %v1927 = vcombine.low %v1908, %v1924
        %v1928 = vcombine.high %v1908, %v1924
        %v1929 = vcombine.low %v1925, %v1927
        %v1930 = vcombine.high %v1925, %v1927
        %v1932 = vunpack.c.l.s4 1983009808
        %v1933 = vunpack.c.0.s8 %v1932
        %v1934 = vlaneseq
        %v1935 = vshrl.u32 %v1934, 7
        %v1936 = vsub.s32 %v1933, %v1935
        %v1937 = vrot.slane %v1929, %v1936
        %v1939 = vunpack.c.l.s4 1983009808
        %v1940 = vunpack.c.0.s8 %v1939
        %v1941 = vlaneseq
        %v1942 = vshrl.u32 %v1941, 7
        %v1943 = vsub.s32 %v1940, %v1942
        %v1944 = vrot.slane %v1930, %v1943
        %v1945 = vcombine.low %v1926, %v1928
        %v1946 = vcombine.high %v1926, %v1928
        %v1948 = vunpack.c.l.s4 1983009808
        %v1949 = vunpack.c.0.s8 %v1948
        %v1950 = vlaneseq
        %v1951 = vshrl.u32 %v1950, 7
        %v1952 = vsub.s32 %v1949, %v1951
        %v1953 = vrot.slane %v1945, %v1952
        %v1955 = vunpack.c.l.s4 1983009808
        %v1956 = vunpack.c.0.s8 %v1955
        %v1957 = vlaneseq
        %v1958 = vshrl.u32 %v1957, 7
        %v1959 = vsub.s32 %v1956, %v1958
        %v1960 = vrot.slane %v1946, %v1959
        %v1961 = vcombine.low %v1937, %v1953
        %v1962 = vcombine.high %v1937, %v1953
        %v1964 = vunpack.c.l.s4 1934713408
        %v1965 = vunpack.c.0.s8 %v1964
        %v1966 = vlaneseq
        %v1967 = vshrl.u32 %v1966, 7
        %v1968 = vsub.s32 %v1965, %v1967
        %v1969 = vrot.slane %v1961, %v1968
        %v1971 = vunpack.c.l.s4 1934713408
        %v1972 = vunpack.c.0.s8 %v1971
        %v1973 = vlaneseq
        %v1974 = vshrl.u32 %v1973, 7
        %v1975 = vsub.s32 %v1972, %v1974
        %v1976 = vrot.slane %v1962, %v1975
        %v1977 = vcombine.low %v1944, %v1960
        %v1978 = vcombine.high %v1944, %v1960
        %v1980 = vunpack.c.l.s4 1934713408
        %v1981 = vunpack.c.0.s8 %v1980
        %v1982 = vlaneseq
        %v1983 = vshrl.u32 %v1982, 7
        %v1984 = vsub.s32 %v1981, %v1983
        %v1985 = vrot.slane %v1977, %v1984
        %v1987 = vunpack.c.l.s4 1934713408
        %v1988 = vunpack.c.0.s8 %v1987
        %v1989 = vlaneseq
        %v1990 = vshrl.u32 %v1989, 7
        %v1991 = vsub.s32 %v1988, %v1990
        %v1992 = vrot.slane %v1978, %v1991
        %v1993 = vcombine.high %v1969, 0.0
        %v1994 = vcombine.high %v1976, 0.0
        %v1995 = vcombine.high %v1985, 0.0
        %v1996 = vcombine.high %v1992, 0.0
        %1998 = vrot.lane.b32.xlu0 %v1993, 16
        %v1999 = vpop.permute.xlu0 %1998
        %2002 = vrot.lane.b32.xlu0 %v1976, 32
        %v2003 = vpop.permute.xlu0 %2002
        %2006 = vrot.lane.b32.xlu0 %v1994, 48
        %v2007 = vpop.permute.xlu0 %2006
        %2010 = vrot.lane.b32.xlu0 %v1985, 64
        %v2011 = vpop.permute.xlu0 %2010
        %2014 = vrot.lane.b32.xlu0 %v1995, 80
        %v2015 = vpop.permute.xlu0 %2014
        %2018 = vrot.lane.b32.xlu0 %v1992, 96
        %v2019 = vpop.permute.xlu0 %2018
        %2022 = vrot.lane.b32.xlu0 %v1996, 112
        %v2023 = vpop.permute.xlu0 %2022
        %v2025 = vsel %vm468, %v1969, %v1999
        %v2026 = vsel %vm470, %v2025, %v2003
        %v2027 = vsel %vm472, %v2026, %v2007
        %v2028 = vsel %vm474, %v2027, %v2011
        %v2029 = vsel %vm476, %v2028, %v2015
        %v2030 = vsel %vm478, %v2029, %v2019
        %v2031 = vsel %vm480, %v2030, %v2023
        %2032 = vst [vmem:[#allocation3 + $0x8] sm:$0xf] %v2031
        %2033 = vmatprep.subr.mxu0 0.0
        %2034 = vmatpush1.msra.mxu0 %v485
        %2035 = vmatprep.subr.mxu0 0.0
        %2036 = vmatpush1.msra.mxu0 %v486
        %2037 = vmatprep.subr.mxu0 0.0
        %2038 = vmatpush1.msra.mxu0 0.0
        %2039 = vmatprep.subr.mxu0 0.0
        %2040 = vmatpush1.msra.mxu0 0.0
        %2041 = vmatprep.subr.mxu0 0.0
        %2042 = vmatpush1.msra.mxu0 0.0
        %2043 = vmatprep.subr.mxu0 0.0
        %2044 = vmatpush1.msra.mxu0 0.0
        %2045 = vmatprep.subr.mxu0 0.0
        %2046 = vmatpush1.msra.mxu0 0.0
        %2047 = vmatprep.subr.mxu0 0.0
        %2048 = vmatpush1.msra.mxu0 0.0
        %2049 = vmatprep.subr.mxu0 0.0
        %2050 = vmatpush1.msra.mxu0 0.0
        %2051 = vmatprep.subr.mxu0 0.0
        %2052 = vmatpush1.msra.mxu0 0.0
        %2053 = vmatprep.subr.mxu0 0.0
        %2054 = vmatpush1.msra.mxu0 0.0
        %2055 = vmatprep.subr.mxu0 0.0
        %2056 = vmatpush1.msra.mxu0 0.0
        %2057 = vmatprep.subr.mxu0 0.0
        %2058 = vmatpush1.msra.mxu0 0.0
        %2059 = vmatprep.subr.mxu0 0.0
        %2060 = vmatpush1.msra.mxu0 0.0
        %2061 = vmatprep.subr.mxu0 0.0
        %2062 = vmatpush1.msra.mxu0 0.0
        %2063 = vmatprep.subr.mxu0 0.0
        %2064 = vmatpush1.msra.mxu0 0.0
        %2065 = vmatprep.subr.mxu0 0.0
        %2066 = vmatpush1.msra.mxu0 0.0
        %2067 = vmatprep.subr.mxu0 0.0
        %2068 = vmatpush1.msra.mxu0 0.0
        %2069 = vmatprep.subr.mxu0 0.0
        %2070 = vmatpush1.msra.mxu0 0.0
        %2071 = vmatprep.subr.mxu0 0.0
        %2072 = vmatpush1.msra.mxu0 0.0
        %2073 = vmatprep.subr.mxu0 0.0
        %2074 = vmatpush1.msra.mxu0 0.0
        %2075 = vmatprep.subr.mxu0 0.0
        %2076 = vmatpush1.msra.mxu0 0.0
        %2077 = vmatprep.subr.mxu0 0.0
        %2078 = vmatpush1.msra.mxu0 0.0
        %2079 = vmatprep.subr.mxu0 0.0
        %2080 = vmatpush1.msra.mxu0 0.0
        %2081 = vmatprep.subr.mxu0 0.0
        %2082 = vmatpush1.msra.mxu0 0.0
        %2083 = vmatprep.subr.mxu0 0.0
        %2084 = vmatpush1.msra.mxu0 0.0
        %2085 = vmatprep.subr.mxu0 0.0
        %2086 = vmatpush1.msra.mxu0 0.0
        %2087 = vmatprep.subr.mxu0 0.0
        %2088 = vmatpush1.msra.mxu0 0.0
        %2089 = vmatprep.subr.mxu0 0.0
        %2090 = vmatpush1.msra.mxu0 0.0
        %2091 = vmatprep.subr.mxu0 0.0
        %2092 = vmatpush1.msra.mxu0 0.0
        %2093 = vmatprep.subr.mxu0 0.0
        %2094 = vmatpush1.msra.mxu0 0.0
        %2095 = vmatprep.subr.mxu0 0.0
        %2096 = vmatpush1.msra.mxu0 0.0
        %2097 = vmatprep.mubr.f32.mxu0 0.0
        %2098 = vmatmul.mubr.f32.gmra.mrb[0].mxu0 %v519
        %v2099 = vpop.f32.mrb[0].mxu0
        %v2100 = vadd.f32 0.0, %v2099
        %v2101 = vpop.f32.mrb[0].mxu0
        %2102 = vdwg.mxu0
        %2103 = vmatprep.subr.mxu0 0.0
        %2104 = vmatpush1.msra.mxu0 %v489
        %2105 = vmatprep.subr.mxu0 0.0
        %2106 = vmatpush1.msra.mxu0 %v490
        %2107 = vmatprep.subr.mxu0 0.0
        %2108 = vmatpush1.msra.mxu0 0.0
        %2109 = vmatprep.subr.mxu0 0.0
        %2110 = vmatpush1.msra.mxu0 0.0
        %2111 = vmatprep.subr.mxu0 0.0
        %2112 = vmatpush1.msra.mxu0 0.0
        %2113 = vmatprep.subr.mxu0 0.0
        %2114 = vmatpush1.msra.mxu0 0.0
        %2115 = vmatprep.subr.mxu0 0.0
        %2116 = vmatpush1.msra.mxu0 0.0
        %2117 = vmatprep.subr.mxu0 0.0
        %2118 = vmatpush1.msra.mxu0 0.0
        %2119 = vmatprep.subr.mxu0 0.0
        %2120 = vmatpush1.msra.mxu0 0.0
        %2121 = vmatprep.subr.mxu0 0.0
        %2122 = vmatpush1.msra.mxu0 0.0
        %2123 = vmatprep.subr.mxu0 0.0
        %2124 = vmatpush1.msra.mxu0 0.0
        %2125 = vmatprep.subr.mxu0 0.0
        %2126 = vmatpush1.msra.mxu0 0.0
        %2127 = vmatprep.subr.mxu0 0.0
        %2128 = vmatpush1.msra.mxu0 0.0
        %2129 = vmatprep.subr.mxu0 0.0
        %2130 = vmatpush1.msra.mxu0 0.0
        %2131 = vmatprep.subr.mxu0 0.0
        %2132 = vmatpush1.msra.mxu0 0.0
        %2133 = vmatprep.subr.mxu0 0.0
        %2134 = vmatpush1.msra.mxu0 0.0
        %2135 = vmatprep.subr.mxu0 0.0
        %2136 = vmatpush1.msra.mxu0 0.0
        %2137 = vmatprep.subr.mxu0 0.0
        %2138 = vmatpush1.msra.mxu0 0.0
        %2139 = vmatprep.subr.mxu0 0.0
        %2140 = vmatpush1.msra.mxu0 0.0
        %2141 = vmatprep.subr.mxu0 0.0
        %2142 = vmatpush1.msra.mxu0 0.0
        %2143 = vmatprep.subr.mxu0 0.0
        %2144 = vmatpush1.msra.mxu0 0.0
        %2145 = vmatprep.subr.mxu0 0.0
        %2146 = vmatpush1.msra.mxu0 0.0
        %2147 = vmatprep.subr.mxu0 0.0
        %2148 = vmatpush1.msra.mxu0 0.0
        %2149 = vmatprep.subr.mxu0 0.0
        %2150 = vmatpush1.msra.mxu0 0.0
        %2151 = vmatprep.subr.mxu0 0.0
        %2152 = vmatpush1.msra.mxu0 0.0
        %2153 = vmatprep.subr.mxu0 0.0
        %2154 = vmatpush1.msra.mxu0 0.0
        %2155 = vmatprep.subr.mxu0 0.0
        %2156 = vmatpush1.msra.mxu0 0.0
        %2157 = vmatprep.subr.mxu0 0.0
        %2158 = vmatpush1.msra.mxu0 0.0
        %2159 = vmatprep.subr.mxu0 0.0
        %2160 = vmatpush1.msra.mxu0 0.0
        %2161 = vmatprep.subr.mxu0 0.0
        %2162 = vmatpush1.msra.mxu0 0.0
        %2163 = vmatprep.subr.mxu0 0.0
        %2164 = vmatpush1.msra.mxu0 0.0
        %2165 = vmatprep.subr.mxu0 0.0
        %2166 = vmatpush1.msra.mxu0 0.0
        %2167 = vmatprep.mubr.f32.mxu0 0.0
        %2168 = vmatmul.mubr.f32.gmra.mrb[0].mxu0 %v592
        %v2169 = vpop.f32.mrb[0].mxu0
        %v2170 = vadd.f32 0.0, %v2169
        %v2171 = vpop.f32.mrb[0].mxu0
        %2172 = vdwg.mxu0
        %2173 = vmatprep.subr.mxu0 0.0
        %2174 = vmatpush1.msra.mxu0 %v493
        %2175 = vmatprep.subr.mxu0 0.0
        %2176 = vmatpush1.msra.mxu0 %v494
        %2177 = vmatprep.subr.mxu0 0.0
        %2178 = vmatpush1.msra.mxu0 0.0
        %2179 = vmatprep.subr.mxu0 0.0
        %2180 = vmatpush1.msra.mxu0 0.0
        %2181 = vmatprep.subr.mxu0 0.0
        %2182 = vmatpush1.msra.mxu0 0.0
        %2183 = vmatprep.subr.mxu0 0.0
        %2184 = vmatpush1.msra.mxu0 0.0
        %2185 = vmatprep.subr.mxu0 0.0
        %2186 = vmatpush1.msra.mxu0 0.0
        %2187 = vmatprep.subr.mxu0 0.0
        %2188 = vmatpush1.msra.mxu0 0.0
        %2189 = vmatprep.subr.mxu0 0.0
        %2190 = vmatpush1.msra.mxu0 0.0
        %2191 = vmatprep.subr.mxu0 0.0
        %2192 = vmatpush1.msra.mxu0 0.0
        %2193 = vmatprep.subr.mxu0 0.0
        %2194 = vmatpush1.msra.mxu0 0.0
        %2195 = vmatprep.subr.mxu0 0.0
        %2196 = vmatpush1.msra.mxu0 0.0
        %2197 = vmatprep.subr.mxu0 0.0
        %2198 = vmatpush1.msra.mxu0 0.0
        %2199 = vmatprep.subr.mxu0 0.0
        %2200 = vmatpush1.msra.mxu0 0.0
        %2201 = vmatprep.subr.mxu0 0.0
        %2202 = vmatpush1.msra.mxu0 0.0
        %2203 = vmatprep.subr.mxu0 0.0
        %2204 = vmatpush1.msra.mxu0 0.0
        %2205 = vmatprep.subr.mxu0 0.0
        %2206 = vmatpush1.msra.mxu0 0.0
        %2207 = vmatprep.subr.mxu0 0.0
        %2208 = vmatpush1.msra.mxu0 0.0
        %2209 = vmatprep.subr.mxu0 0.0
        %2210 = vmatpush1.msra.mxu0 0.0
        %2211 = vmatprep.subr.mxu0 0.0
        %2212 = vmatpush1.msra.mxu0 0.0
        %2213 = vmatprep.subr.mxu0 0.0
        %2214 = vmatpush1.msra.mxu0 0.0
        %2215 = vmatprep.subr.mxu0 0.0
        %2216 = vmatpush1.msra.mxu0 0.0
        %2217 = vmatprep.subr.mxu0 0.0
        %2218 = vmatpush1.msra.mxu0 0.0
        %2219 = vmatprep.subr.mxu0 0.0
        %2220 = vmatpush1.msra.mxu0 0.0
        %2221 = vmatprep.subr.mxu0 0.0
        %2222 = vmatpush1.msra.mxu0 0.0
        %2223 = vmatprep.subr.mxu0 0.0
        %2224 = vmatpush1.msra.mxu0 0.0
        %2225 = vmatprep.subr.mxu0 0.0
        %2226 = vmatpush1.msra.mxu0 0.0
        %2227 = vmatprep.subr.mxu0 0.0
        %2228 = vmatpush1.msra.mxu0 0.0
        %2229 = vmatprep.subr.mxu0 0.0
        %2230 = vmatpush1.msra.mxu0 0.0
        %2231 = vmatprep.subr.mxu0 0.0
        %2232 = vmatpush1.msra.mxu0 0.0
        %2233 = vmatprep.subr.mxu0 0.0
        %2234 = vmatpush1.msra.mxu0 0.0
        %2235 = vmatprep.subr.mxu0 0.0
        %2236 = vmatpush1.msra.mxu0 0.0
        %2237 = vmatprep.mubr.f32.mxu0 0.0
        %2238 = vmatmul.mubr.f32.gmra.mrb[0].mxu0 %v665
        %v2239 = vpop.f32.mrb[0].mxu0
        %v2240 = vadd.f32 0.0, %v2239
        %v2241 = vpop.f32.mrb[0].mxu0
        %2242 = vdwg.mxu0
        %2243 = vmatprep.subr.mxu0 0.0
        %2244 = vmatpush1.msra.mxu0 %v497
        %2245 = vmatprep.subr.mxu0 0.0
        %2246 = vmatpush1.msra.mxu0 %v498
        %2247 = vmatprep.subr.mxu0 0.0
        %2248 = vmatpush1.msra.mxu0 0.0
        %2249 = vmatprep.subr.mxu0 0.0
        %2250 = vmatpush1.msra.mxu0 0.0
        %2251 = vmatprep.subr.mxu0 0.0
        %2252 = vmatpush1.msra.mxu0 0.0
        %2253 = vmatprep.subr.mxu0 0.0
        %2254 = vmatpush1.msra.mxu0 0.0
        %2255 = vmatprep.subr.mxu0 0.0
        %2256 = vmatpush1.msra.mxu0 0.0
        %2257 = vmatprep.subr.mxu0 0.0
        %2258 = vmatpush1.msra.mxu0 0.0
        %2259 = vmatprep.subr.mxu0 0.0
        %2260 = vmatpush1.msra.mxu0 0.0
        %2261 = vmatprep.subr.mxu0 0.0
        %2262 = vmatpush1.msra.mxu0 0.0
        %2263 = vmatprep.subr.mxu0 0.0
        %2264 = vmatpush1.msra.mxu0 0.0
        %2265 = vmatprep.subr.mxu0 0.0
        %2266 = vmatpush1.msra.mxu0 0.0
        %2267 = vmatprep.subr.mxu0 0.0
        %2268 = vmatpush1.msra.mxu0 0.0
        %2269 = vmatprep.subr.mxu0 0.0
        %2270 = vmatpush1.msra.mxu0 0.0
        %2271 = vmatprep.subr.mxu0 0.0
        %2272 = vmatpush1.msra.mxu0 0.0
        %2273 = vmatprep.subr.mxu0 0.0
        %2274 = vmatpush1.msra.mxu0 0.0
        %2275 = vmatprep.subr.mxu0 0.0
        %2276 = vmatpush1.msra.mxu0 0.0
        %2277 = vmatprep.subr.mxu0 0.0
        %2278 = vmatpush1.msra.mxu0 0.0
        %2279 = vmatprep.subr.mxu0 0.0
        %2280 = vmatpush1.msra.mxu0 0.0
        %2281 = vmatprep.subr.mxu0 0.0
        %2282 = vmatpush1.msra.mxu0 0.0
        %2283 = vmatprep.subr.mxu0 0.0
        %2284 = vmatpush1.msra.mxu0 0.0
        %2285 = vmatprep.subr.mxu0 0.0
        %2286 = vmatpush1.msra.mxu0 0.0
        %2287 = vmatprep.subr.mxu0 0.0
        %2288 = vmatpush1.msra.mxu0 0.0
        %2289 = vmatprep.subr.mxu0 0.0
        %2290 = vmatpush1.msra.mxu0 0.0
        %2291 = vmatprep.subr.mxu0 0.0
        %2292 = vmatpush1.msra.mxu0 0.0
        %2293 = vmatprep.subr.mxu0 0.0
        %2294 = vmatpush1.msra.mxu0 0.0
        %2295 = vmatprep.subr.mxu0 0.0
        %2296 = vmatpush1.msra.mxu0 0.0
        %2297 = vmatprep.subr.mxu0 0.0
        %2298 = vmatpush1.msra.mxu0 0.0
        %2299 = vmatprep.subr.mxu0 0.0
        %2300 = vmatpush1.msra.mxu0 0.0
        %2301 = vmatprep.subr.mxu0 0.0
        %2302 = vmatpush1.msra.mxu0 0.0
        %2303 = vmatprep.subr.mxu0 0.0
        %2304 = vmatpush1.msra.mxu0 0.0
        %2305 = vmatprep.subr.mxu0 0.0
        %2306 = vmatpush1.msra.mxu0 0.0
        %2307 = vmatprep.mubr.f32.mxu0 0.0
        %2308 = vmatmul.mubr.f32.gmra.mrb[0].mxu0 %v738
        %v2309 = vpop.f32.mrb[0].mxu0
        %v2310 = vadd.f32 0.0, %v2309
        %v2311 = vpop.f32.mrb[0].mxu0
        %2312 = vdwg.mxu0
        %2313 = vmatprep.subr.mxu0 0.0
        %2314 = vmatpush1.msra.mxu0 %v501
        %2315 = vmatprep.subr.mxu0 0.0
        %2316 = vmatpush1.msra.mxu0 %v502
        %2317 = vmatprep.subr.mxu0 0.0
        %2318 = vmatpush1.msra.mxu0 0.0
        %2319 = vmatprep.subr.mxu0 0.0
        %2320 = vmatpush1.msra.mxu0 0.0
        %2321 = vmatprep.subr.mxu0 0.0
        %2322 = vmatpush1.msra.mxu0 0.0
        %2323 = vmatprep.subr.mxu0 0.0
        %2324 = vmatpush1.msra.mxu0 0.0
        %2325 = vmatprep.subr.mxu0 0.0
        %2326 = vmatpush1.msra.mxu0 0.0
        %2327 = vmatprep.subr.mxu0 0.0
        %2328 = vmatpush1.msra.mxu0 0.0
        %2329 = vmatprep.subr.mxu0 0.0
        %2330 = vmatpush1.msra.mxu0 0.0
        %2331 = vmatprep.subr.mxu0 0.0
        %2332 = vmatpush1.msra.mxu0 0.0
        %2333 = vmatprep.subr.mxu0 0.0
        %2334 = vmatpush1.msra.mxu0 0.0
        %2335 = vmatprep.subr.mxu0 0.0
        %2336 = vmatpush1.msra.mxu0 0.0
        %2337 = vmatprep.subr.mxu0 0.0
        %2338 = vmatpush1.msra.mxu0 0.0
        %2339 = vmatprep.subr.mxu0 0.0
        %2340 = vmatpush1.msra.mxu0 0.0
        %2341 = vmatprep.subr.mxu0 0.0
        %2342 = vmatpush1.msra.mxu0 0.0
        %2343 = vmatprep.subr.mxu0 0.0
        %2344 = vmatpush1.msra.mxu0 0.0
        %2345 = vmatprep.subr.mxu0 0.0
        %2346 = vmatpush1.msra.mxu0 0.0
        %2347 = vmatprep.subr.mxu0 0.0
        %2348 = vmatpush1.msra.mxu0 0.0
        %2349 = vmatprep.subr.mxu0 0.0
        %2350 = vmatpush1.msra.mxu0 0.0
        %2351 = vmatprep.subr.mxu0 0.0
        %2352 = vmatpush1.msra.mxu0 0.0
        %2353 = vmatprep.subr.mxu0 0.0
        %2354 = vmatpush1.msra.mxu0 0.0
        %2355 = vmatprep.subr.mxu0 0.0
        %2356 = vmatpush1.msra.mxu0 0.0
        %2357 = vmatprep.subr.mxu0 0.0
        %2358 = vmatpush1.msra.mxu0 0.0
        %2359 = vmatprep.subr.mxu0 0.0
        %2360 = vmatpush1.msra.mxu0 0.0
        %2361 = vmatprep.subr.mxu0 0.0
        %2362 = vmatpush1.msra.mxu0 0.0
        %2363 = vmatprep.subr.mxu0 0.0
        %2364 = vmatpush1.msra.mxu0 0.0
        %2365 = vmatprep.subr.mxu0 0.0
        %2366 = vmatpush1.msra.mxu0 0.0
        %2367 = vmatprep.subr.mxu0 0.0
        %2368 = vmatpush1.msra.mxu0 0.0
        %2369 = vmatprep.subr.mxu0 0.0
        %2370 = vmatpush1.msra.mxu0 0.0
        %2371 = vmatprep.subr.mxu0 0.0
        %2372 = vmatpush1.msra.mxu0 0.0
        %2373 = vmatprep.subr.mxu0 0.0
        %2374 = vmatpush1.msra.mxu0 0.0
        %2375 = vmatprep.subr.mxu0 0.0
        %2376 = vmatpush1.msra.mxu0 0.0
        %2377 = vmatprep.mubr.f32.mxu0 0.0
        %2378 = vmatmul.mubr.f32.gmra.mrb[0].mxu0 %v811
        %v2379 = vpop.f32.mrb[0].mxu0
        %v2380 = vadd.f32 0.0, %v2379
        %v2381 = vpop.f32.mrb[0].mxu0
        %2382 = vdwg.mxu0
        %2383 = vmatprep.subr.mxu0 0.0
        %2384 = vmatpush1.msra.mxu0 %v505
        %2385 = vmatprep.subr.mxu0 0.0
        %2386 = vmatpush1.msra.mxu0 %v506
        %2387 = vmatprep.subr.mxu0 0.0
        %2388 = vmatpush1.msra.mxu0 0.0
        %2389 = vmatprep.subr.mxu0 0.0
        %2390 = vmatpush1.msra.mxu0 0.0
        %2391 = vmatprep.subr.mxu0 0.0
        %2392 = vmatpush1.msra.mxu0 0.0
        %2393 = vmatprep.subr.mxu0 0.0
        %2394 = vmatpush1.msra.mxu0 0.0
        %2395 = vmatprep.subr.mxu0 0.0
        %2396 = vmatpush1.msra.mxu0 0.0
        %2397 = vmatprep.subr.mxu0 0.0
        %2398 = vmatpush1.msra.mxu0 0.0
        %2399 = vmatprep.subr.mxu0 0.0
        %2400 = vmatpush1.msra.mxu0 0.0
        %2401 = vmatprep.subr.mxu0 0.0
        %2402 = vmatpush1.msra.mxu0 0.0
        %2403 = vmatprep.subr.mxu0 0.0
        %2404 = vmatpush1.msra.mxu0 0.0
        %2405 = vmatprep.subr.mxu0 0.0
        %2406 = vmatpush1.msra.mxu0 0.0
        %2407 = vmatprep.subr.mxu0 0.0
        %2408 = vmatpush1.msra.mxu0 0.0
        %2409 = vmatprep.subr.mxu0 0.0
        %2410 = vmatpush1.msra.mxu0 0.0
        %2411 = vmatprep.subr.mxu0 0.0
        %2412 = vmatpush1.msra.mxu0 0.0
        %2413 = vmatprep.subr.mxu0 0.0
        %2414 = vmatpush1.msra.mxu0 0.0
        %2415 = vmatprep.subr.mxu0 0.0
        %2416 = vmatpush1.msra.mxu0 0.0
        %2417 = vmatprep.subr.mxu0 0.0
        %2418 = vmatpush1.msra.mxu0 0.0
        %2419 = vmatprep.subr.mxu0 0.0
        %2420 = vmatpush1.msra.mxu0 0.0
        %2421 = vmatprep.subr.mxu0 0.0
        %2422 = vmatpush1.msra.mxu0 0.0
        %2423 = vmatprep.subr.mxu0 0.0
        %2424 = vmatpush1.msra.mxu0 0.0
        %2425 = vmatprep.subr.mxu0 0.0
        %2426 = vmatpush1.msra.mxu0 0.0
        %2427 = vmatprep.subr.mxu0 0.0
        %2428 = vmatpush1.msra.mxu0 0.0
        %2429 = vmatprep.subr.mxu0 0.0
        %2430 = vmatpush1.msra.mxu0 0.0
        %2431 = vmatprep.subr.mxu0 0.0
        %2432 = vmatpush1.msra.mxu0 0.0
        %2433 = vmatprep.subr.mxu0 0.0
        %2434 = vmatpush1.msra.mxu0 0.0
        %2435 = vmatprep.subr.mxu0 0.0
        %2436 = vmatpush1.msra.mxu0 0.0
        %2437 = vmatprep.subr.mxu0 0.0
        %2438 = vmatpush1.msra.mxu0 0.0
        %2439 = vmatprep.subr.mxu0 0.0
        %2440 = vmatpush1.msra.mxu0 0.0
        %2441 = vmatprep.subr.mxu0 0.0
        %2442 = vmatpush1.msra.mxu0 0.0
        %2443 = vmatprep.subr.mxu0 0.0
        %2444 = vmatpush1.msra.mxu0 0.0
        %2445 = vmatprep.subr.mxu0 0.0
        %2446 = vmatpush1.msra.mxu0 0.0
        %2447 = vmatprep.mubr.f32.mxu0 0.0
        %2448 = vmatmul.mubr.f32.gmra.mrb[0].mxu0 %v884
        %v2449 = vpop.f32.mrb[0].mxu0
        %v2450 = vadd.f32 0.0, %v2449
        %v2451 = vpop.f32.mrb[0].mxu0
        %2452 = vdwg.mxu0
        %2453 = vmatprep.subr.mxu0 0.0
        %2454 = vmatpush1.msra.mxu0 %v509
        %2455 = vmatprep.subr.mxu0 0.0
        %2456 = vmatpush1.msra.mxu0 %v510
        %2457 = vmatprep.subr.mxu0 0.0
        %2458 = vmatpush1.msra.mxu0 0.0
        %2459 = vmatprep.subr.mxu0 0.0
        %2460 = vmatpush1.msra.mxu0 0.0
        %2461 = vmatprep.subr.mxu0 0.0
        %2462 = vmatpush1.msra.mxu0 0.0
        %2463 = vmatprep.subr.mxu0 0.0
        %2464 = vmatpush1.msra.mxu0 0.0
        %2465 = vmatprep.subr.mxu0 0.0
        %2466 = vmatpush1.msra.mxu0 0.0
        %2467 = vmatprep.subr.mxu0 0.0
        %2468 = vmatpush1.msra.mxu0 0.0
        %2469 = vmatprep.subr.mxu0 0.0
        %2470 = vmatpush1.msra.mxu0 0.0
        %2471 = vmatprep.subr.mxu0 0.0
        %2472 = vmatpush1.msra.mxu0 0.0
        %2473 = vmatprep.subr.mxu0 0.0
        %2474 = vmatpush1.msra.mxu0 0.0
        %2475 = vmatprep.subr.mxu0 0.0
        %2476 = vmatpush1.msra.mxu0 0.0
        %2477 = vmatprep.subr.mxu0 0.0
        %2478 = vmatpush1.msra.mxu0 0.0
        %2479 = vmatprep.subr.mxu0 0.0
        %2480 = vmatpush1.msra.mxu0 0.0
        %2481 = vmatprep.subr.mxu0 0.0
        %2482 = vmatpush1.msra.mxu0 0.0
        %2483 = vmatprep.subr.mxu0 0.0
        %2484 = vmatpush1.msra.mxu0 0.0
        %2485 = vmatprep.subr.mxu0 0.0
        %2486 = vmatpush1.msra.mxu0 0.0
        %2487 = vmatprep.subr.mxu0 0.0
        %2488 = vmatpush1.msra.mxu0 0.0
        %2489 = vmatprep.subr.mxu0 0.0
        %2490 = vmatpush1.msra.mxu0 0.0
        %2491 = vmatprep.subr.mxu0 0.0
        %2492 = vmatpush1.msra.mxu0 0.0
        %2493 = vmatprep.subr.mxu0 0.0
        %2494 = vmatpush1.msra.mxu0 0.0
        %2495 = vmatprep.subr.mxu0 0.0
        %2496 = vmatpush1.msra.mxu0 0.0
        %2497 = vmatprep.subr.mxu0 0.0
        %2498 = vmatpush1.msra.mxu0 0.0
        %2499 = vmatprep.subr.mxu0 0.0
        %2500 = vmatpush1.msra.mxu0 0.0
        %2501 = vmatprep.subr.mxu0 0.0
        %2502 = vmatpush1.msra.mxu0 0.0
        %2503 = vmatprep.subr.mxu0 0.0
        %2504 = vmatpush1.msra.mxu0 0.0
        %2505 = vmatprep.subr.mxu0 0.0
        %2506 = vmatpush1.msra.mxu0 0.0
        %2507 = vmatprep.subr.mxu0 0.0
        %2508 = vmatpush1.msra.mxu0 0.0
        %2509 = vmatprep.subr.mxu0 0.0
        %2510 = vmatpush1.msra.mxu0 0.0
        %2511 = vmatprep.subr.mxu0 0.0
        %2512 = vmatpush1.msra.mxu0 0.0
        %2513 = vmatprep.subr.mxu0 0.0
        %2514 = vmatpush1.msra.mxu0 0.0
        %2515 = vmatprep.subr.mxu0 0.0
        %2516 = vmatpush1.msra.mxu0 0.0
        %2517 = vmatprep.mubr.f32.mxu0 0.0
        %2518 = vmatmul.mubr.f32.gmra.mrb[0].mxu0 %v957
        %v2519 = vpop.f32.mrb[0].mxu0
        %v2520 = vadd.f32 0.0, %v2519
        %v2521 = vpop.f32.mrb[0].mxu0
        %2522 = vdwg.mxu0
        %2523 = vmatprep.subr.mxu0 0.0
        %2524 = vmatpush1.msra.mxu0 %v513
        %2525 = vmatprep.subr.mxu0 0.0
        %2526 = vmatpush1.msra.mxu0 %v514
        %2527 = vmatprep.subr.mxu0 0.0
        %2528 = vmatpush1.msra.mxu0 0.0
        %2529 = vmatprep.subr.mxu0 0.0
        %2530 = vmatpush1.msra.mxu0 0.0
        %2531 = vmatprep.subr.mxu0 0.0
        %2532 = vmatpush1.msra.mxu0 0.0
        %2533 = vmatprep.subr.mxu0 0.0
        %2534 = vmatpush1.msra.mxu0 0.0
        %2535 = vmatprep.subr.mxu0 0.0
        %2536 = vmatpush1.msra.mxu0 0.0
        %2537 = vmatprep.subr.mxu0 0.0
        %2538 = vmatpush1.msra.mxu0 0.0
        %2539 = vmatprep.subr.mxu0 0.0
        %2540 = vmatpush1.msra.mxu0 0.0
        %2541 = vmatprep.subr.mxu0 0.0
        %2542 = vmatpush1.msra.mxu0 0.0
        %2543 = vmatprep.subr.mxu0 0.0
        %2544 = vmatpush1.msra.mxu0 0.0
        %2545 = vmatprep.subr.mxu0 0.0
        %2546 = vmatpush1.msra.mxu0 0.0
        %2547 = vmatprep.subr.mxu0 0.0
        %2548 = vmatpush1.msra.mxu0 0.0
        %2549 = vmatprep.subr.mxu0 0.0
        %2550 = vmatpush1.msra.mxu0 0.0
        %2551 = vmatprep.subr.mxu0 0.0
        %2552 = vmatpush1.msra.mxu0 0.0
        %2553 = vmatprep.subr.mxu0 0.0
        %2554 = vmatpush1.msra.mxu0 0.0
        %2555 = vmatprep.subr.mxu0 0.0
        %2556 = vmatpush1.msra.mxu0 0.0
        %2557 = vmatprep.subr.mxu0 0.0
        %2558 = vmatpush1.msra.mxu0 0.0
        %2559 = vmatprep.subr.mxu0 0.0
        %2560 = vmatpush1.msra.mxu0 0.0
        %2561 = vmatprep.subr.mxu0 0.0
        %2562 = vmatpush1.msra.mxu0 0.0
        %2563 = vmatprep.subr.mxu0 0.0
        %2564 = vmatpush1.msra.mxu0 0.0
        %2565 = vmatprep.subr.mxu0 0.0
        %2566 = vmatpush1.msra.mxu0 0.0
        %2567 = vmatprep.subr.mxu0 0.0
        %2568 = vmatpush1.msra.mxu0 0.0
        %2569 = vmatprep.subr.mxu0 0.0
        %2570 = vmatpush1.msra.mxu0 0.0
        %2571 = vmatprep.subr.mxu0 0.0
        %2572 = vmatpush1.msra.mxu0 0.0
        %2573 = vmatprep.subr.mxu0 0.0
        %2574 = vmatpush1.msra.mxu0 0.0
        %2575 = vmatprep.subr.mxu0 0.0
        %2576 = vmatpush1.msra.mxu0 0.0
        %2577 = vmatprep.subr.mxu0 0.0
        %2578 = vmatpush1.msra.mxu0 0.0
        %2579 = vmatprep.subr.mxu0 0.0
        %2580 = vmatpush1.msra.mxu0 0.0
        %2581 = vmatprep.subr.mxu0 0.0
        %2582 = vmatpush1.msra.mxu0 0.0
        %2583 = vmatprep.subr.mxu0 0.0
        %2584 = vmatpush1.msra.mxu0 0.0
        %2585 = vmatprep.subr.mxu0 0.0
        %2586 = vmatpush1.msra.mxu0 0.0
        %2587 = vmatprep.mubr.f32.mxu0 0.0
        %2588 = vmatmul.mubr.f32.gmra.mrb[0].mxu0 %v1030
        %v2589 = vpop.f32.mrb[0].mxu0
        %v2590 = vadd.f32 0.0, %v2589
        %v2591 = vpop.f32.mrb[0].mxu0
        %2592 = vdwg.mxu0
        %v2593 = vcombine.low %v2100, %v2240
        %v2595 = vunpack.c.l.s4 1983009808
        %v2596 = vunpack.c.0.s8 %v2595
        %v2597 = vlaneseq
        %v2598 = vshrl.u32 %v2597, 7
        %v2599 = vsub.s32 %v2596, %v2598
        %v2600 = vrot.slane %v2593, %v2599
        %v2601 = vcombine.low %v2170, %v2310
        %v2603 = vunpack.c.l.s4 1983009808
        %v2604 = vunpack.c.0.s8 %v2603
        %v2605 = vlaneseq
        %v2606 = vshrl.u32 %v2605, 7
        %v2607 = vsub.s32 %v2604, %v2606
        %v2608 = vrot.slane %v2601, %v2607
        %v2609 = vcombine.low %v2380, %v2520
        %v2611 = vunpack.c.l.s4 1983009808
        %v2612 = vunpack.c.0.s8 %v2611
        %v2613 = vlaneseq
        %v2614 = vshrl.u32 %v2613, 7
        %v2615 = vsub.s32 %v2612, %v2614
        %v2616 = vrot.slane %v2609, %v2615
        %v2617 = vcombine.low %v2450, %v2590
        %v2619 = vunpack.c.l.s4 1983009808
        %v2620 = vunpack.c.0.s8 %v2619
        %v2621 = vlaneseq
        %v2622 = vshrl.u32 %v2621, 7
        %v2623 = vsub.s32 %v2620, %v2622
        %v2624 = vrot.slane %v2617, %v2623
        %v2625 = vcombine.low %v2600, %v2608
        %v2626 = vcombine.high %v2600, %v2608
        %v2628 = vunpack.c.l.s4 1934713408
        %v2629 = vunpack.c.0.s8 %v2628
        %v2630 = vlaneseq
        %v2631 = vshrl.u32 %v2630, 7
        %v2632 = vsub.s32 %v2629, %v2631
        %v2633 = vrot.slane %v2625, %v2632
        %v2635 = vunpack.c.l.s4 1934713408
        %v2636 = vunpack.c.0.s8 %v2635
        %v2637 = vlaneseq
        %v2638 = vshrl.u32 %v2637, 7
        %v2639 = vsub.s32 %v2636, %v2638
        %v2640 = vrot.slane %v2626, %v2639
        %v2641 = vcombine.low %v2616, %v2624
        %v2642 = vcombine.high %v2616, %v2624
        %v2644 = vunpack.c.l.s4 1934713408
        %v2645 = vunpack.c.0.s8 %v2644
        %v2646 = vlaneseq
        %v2647 = vshrl.u32 %v2646, 7
        %v2648 = vsub.s32 %v2645, %v2647
        %v2649 = vrot.slane %v2641, %v2648
        %v2651 = vunpack.c.l.s4 1934713408
        %v2652 = vunpack.c.0.s8 %v2651
        %v2653 = vlaneseq
        %v2654 = vshrl.u32 %v2653, 7
        %v2655 = vsub.s32 %v2652, %v2654
        %v2656 = vrot.slane %v2642, %v2655
        %v2657 = vcombine.low %v2633, %v2649
        %v2658 = vcombine.high %v2633, %v2649
        %v2659 = vcombine.low %v2640, %v2656
        %v2660 = vcombine.high %v2640, %v2656
        %v2661 = vcombine.low %v2657, %v2659
        %v2662 = vcombine.high %v2657, %v2659
        %v2664 = vunpack.c.l.s4 1983009808
        %v2665 = vunpack.c.0.s8 %v2664
        %v2666 = vlaneseq
        %v2667 = vshrl.u32 %v2666, 7
        %v2668 = vsub.s32 %v2665, %v2667
        %v2669 = vrot.slane %v2661, %v2668
        %v2671 = vunpack.c.l.s4 1983009808
        %v2672 = vunpack.c.0.s8 %v2671
        %v2673 = vlaneseq
        %v2674 = vshrl.u32 %v2673, 7
        %v2675 = vsub.s32 %v2672, %v2674
        %v2676 = vrot.slane %v2662, %v2675
        %v2677 = vcombine.low %v2658, %v2660
        %v2678 = vcombine.high %v2658, %v2660
        %v2680 = vunpack.c.l.s4 1983009808
        %v2681 = vunpack.c.0.s8 %v2680
        %v2682 = vlaneseq
        %v2683 = vshrl.u32 %v2682, 7
        %v2684 = vsub.s32 %v2681, %v2683
        %v2685 = vrot.slane %v2677, %v2684
        %v2687 = vunpack.c.l.s4 1983009808
        %v2688 = vunpack.c.0.s8 %v2687
        %v2689 = vlaneseq
        %v2690 = vshrl.u32 %v2689, 7
        %v2691 = vsub.s32 %v2688, %v2690
        %v2692 = vrot.slane %v2678, %v2691
        %v2693 = vcombine.low %v2669, %v2685
        %v2694 = vcombine.high %v2669, %v2685
        %v2696 = vunpack.c.l.s4 1934713408
        %v2697 = vunpack.c.0.s8 %v2696
        %v2698 = vlaneseq
        %v2699 = vshrl.u32 %v2698, 7
        %v2700 = vsub.s32 %v2697, %v2699
        %v2701 = vrot.slane %v2693, %v2700
        %v2703 = vunpack.c.l.s4 1934713408
        %v2704 = vunpack.c.0.s8 %v2703
        %v2705 = vlaneseq
        %v2706 = vshrl.u32 %v2705, 7
        %v2707 = vsub.s32 %v2704, %v2706
        %v2708 = vrot.slane %v2694, %v2707
        %v2709 = vcombine.low %v2676, %v2692
        %v2710 = vcombine.high %v2676, %v2692
        %v2712 = vunpack.c.l.s4 1934713408
        %v2713 = vunpack.c.0.s8 %v2712
        %v2714 = vlaneseq
        %v2715 = vshrl.u32 %v2714, 7
        %v2716 = vsub.s32 %v2713, %v2715
        %v2717 = vrot.slane %v2709, %v2716
        %v2719 = vunpack.c.l.s4 1934713408
        %v2720 = vunpack.c.0.s8 %v2719
        %v2721 = vlaneseq
        %v2722 = vshrl.u32 %v2721, 7
        %v2723 = vsub.s32 %v2720, %v2722
        %v2724 = vrot.slane %v2710, %v2723
        %v2725 = vcombine.high %v2701, 0.0
        %v2726 = vcombine.high %v2708, 0.0
        %v2727 = vcombine.high %v2717, 0.0
        %v2728 = vcombine.high %v2724, 0.0
        %2730 = vrot.lane.b32.xlu0 %v2725, 16
        %v2731 = vpop.permute.xlu0 %2730
        %2734 = vrot.lane.b32.xlu0 %v2708, 32
        %v2735 = vpop.permute.xlu0 %2734
        %2738 = vrot.lane.b32.xlu0 %v2726, 48
        %v2739 = vpop.permute.xlu0 %2738
        %2742 = vrot.lane.b32.xlu0 %v2717, 64
        %v2743 = vpop.permute.xlu0 %2742
        %2746 = vrot.lane.b32.xlu0 %v2727, 80
        %v2747 = vpop.permute.xlu0 %2746
        %2750 = vrot.lane.b32.xlu0 %v2724, 96
        %v2751 = vpop.permute.xlu0 %2750
        %2754 = vrot.lane.b32.xlu0 %v2728, 112
        %v2755 = vpop.permute.xlu0 %2754
        %v2757 = vsel %vm468, %v2701, %v2731
        %v2758 = vsel %vm470, %v2757, %v2735
        %v2759 = vsel %vm472, %v2758, %v2739
        %v2760 = vsel %vm474, %v2759, %v2743
        %v2761 = vsel %vm476, %v2760, %v2747
        %v2762 = vsel %vm478, %v2761, %v2751
        %v2763 = vsel %vm480, %v2762, %v2755
        %2764 = vst [vmem:[#allocation3 + $0xc] sm:$0xf] %v2763
        %s2765 = scalar_lea.vmem [#allocation2], 12
        %v2766 = vld [vmem:[%s2765] sm:$0xf]
        %2767 = vst.msk [vmem:[%s2765] sm:$0xf] %vm516, %v2590
        %v2769 = vsel %vm468, %v2766, 0
        %2771 = vmatprep.subr.mxu0 0.0
        %2772 = vmatpush1.msra.mxu0 %v485
        %2773 = vmatprep.subr.mxu0 0.0
        %2774 = vmatpush1.msra.mxu0 %v486
        %2775 = vmatprep.subr.mxu0 0.0
        %2776 = vmatpush1.msra.mxu0 0.0
        %2777 = vmatprep.subr.mxu0 0.0
        %2778 = vmatpush1.msra.mxu0 0.0
        %2779 = vmatprep.subr.mxu0 0.0
        %2780 = vmatpush1.msra.mxu0 0.0
        %2781 = vmatprep.subr.mxu0 0.0
        %2782 = vmatpush1.msra.mxu0 0.0
        %2783 = vmatprep.subr.mxu0 0.0
        %2784 = vmatpush1.msra.mxu0 0.0
        %2785 = vmatprep.subr.mxu0 0.0
        %2786 = vmatpush1.msra.mxu0 0.0
        %2787 = vmatprep.subr.mxu0 0.0
        %2788 = vmatpush1.msra.mxu0 0.0
        %2789 = vmatprep.subr.mxu0 0.0
        %2790 = vmatpush1.msra.mxu0 0.0
        %2791 = vmatprep.subr.mxu0 0.0
        %2792 = vmatpush1.msra.mxu0 0.0
        %2793 = vmatprep.subr.mxu0 0.0
        %2794 = vmatpush1.msra.mxu0 0.0
        %2795 = vmatprep.subr.mxu0 0.0
        %2796 = vmatpush1.msra.mxu0 0.0
        %2797 = vmatprep.subr.mxu0 0.0
        %2798 = vmatpush1.msra.mxu0 0.0
        %2799 = vmatprep.subr.mxu0 0.0
        %2800 = vmatpush1.msra.mxu0 0.0
        %2801 = vmatprep.subr.mxu0 0.0
        %2802 = vmatpush1.msra.mxu0 0.0
        %2803 = vmatprep.subr.mxu0 0.0
        %2804 = vmatpush1.msra.mxu0 0.0
        %2805 = vmatprep.subr.mxu0 0.0
        %2806 = vmatpush1.msra.mxu0 0.0
        %2807 = vmatprep.subr.mxu0 0.0
        %2808 = vmatpush1.msra.mxu0 0.0
        %2809 = vmatprep.subr.mxu0 0.0
        %2810 = vmatpush1.msra.mxu0 0.0
        %2811 = vmatprep.subr.mxu0 0.0
        %2812 = vmatpush1.msra.mxu0 0.0
        %2813 = vmatprep.subr.mxu0 0.0
        %2814 = vmatpush1.msra.mxu0 0.0
        %2815 = vmatprep.subr.mxu0 0.0
        %2816 = vmatpush1.msra.mxu0 0.0
        %2817 = vmatprep.subr.mxu0 0.0
        %2818 = vmatpush1.msra.mxu0 0.0
        %2819 = vmatprep.subr.mxu0 0.0
        %2820 = vmatpush1.msra.mxu0 0.0
        %2821 = vmatprep.subr.mxu0 0.0
        %2822 = vmatpush1.msra.mxu0 0.0
        %2823 = vmatprep.subr.mxu0 0.0
        %2824 = vmatpush1.msra.mxu0 0.0
        %2825 = vmatprep.subr.mxu0 0.0
        %2826 = vmatpush1.msra.mxu0 0.0
        %2827 = vmatprep.subr.mxu0 0.0
        %2828 = vmatpush1.msra.mxu0 0.0
        %2829 = vmatprep.subr.mxu0 0.0
        %2830 = vmatpush1.msra.mxu0 0.0
        %2831 = vmatprep.subr.mxu0 0.0
        %2832 = vmatpush1.msra.mxu0 0.0
        %2833 = vmatprep.subr.mxu0 0.0
        %2834 = vmatpush1.msra.mxu0 0.0
        %2835 = vmatprep.mubr.f32.mxu0 0.0
        %2836 = vmatmul.mubr.f32.gmra.mrb[0].mxu0 %v2769
        %v2837 = vpop.f32.mrb[0].mxu0
        %v2838 = vadd.f32 0.0, %v2837
        %v2839 = vpop.f32.mrb[0].mxu0
        %2840 = vdwg.mxu0
        %v2842 = vsel %vm468, %v2100, 0
        %2844 = vmatprep.subr.mxu0 0.0
        %2845 = vmatpush1.msra.mxu0 %v489
        %2846 = vmatprep.subr.mxu0 0.0
        %2847 = vmatpush1.msra.mxu0 %v490
        %2848 = vmatprep.subr.mxu0 0.0
        %2849 = vmatpush1.msra.mxu0 0.0
        %2850 = vmatprep.subr.mxu0 0.0
        %2851 = vmatpush1.msra.mxu0 0.0
        %2852 = vmatprep.subr.mxu0 0.0
        %2853 = vmatpush1.msra.mxu0 0.0
        %2854 = vmatprep.subr.mxu0 0.0
        %2855 = vmatpush1.msra.mxu0 0.0
        %2856 = vmatprep.subr.mxu0 0.0
        %2857 = vmatpush1.msra.mxu0 0.0
        %2858 = vmatprep.subr.mxu0 0.0
        %2859 = vmatpush1.msra.mxu0 0.0
        %2860 = vmatprep.subr.mxu0 0.0
        %2861 = vmatpush1.msra.mxu0 0.0
        %2862 = vmatprep.subr.mxu0 0.0
        %2863 = vmatpush1.msra.mxu0 0.0
        %2864 = vmatprep.subr.mxu0 0.0
        %2865 = vmatpush1.msra.mxu0 0.0
        %2866 = vmatprep.subr.mxu0 0.0
        %2867 = vmatpush1.msra.mxu0 0.0
        %2868 = vmatprep.subr.mxu0 0.0
        %2869 = vmatpush1.msra.mxu0 0.0
        %2870 = vmatprep.subr.mxu0 0.0
        %2871 = vmatpush1.msra.mxu0 0.0
        %2872 = vmatprep.subr.mxu0 0.0
        %2873 = vmatpush1.msra.mxu0 0.0
        %2874 = vmatprep.subr.mxu0 0.0
        %2875 = vmatpush1.msra.mxu0 0.0
        %2876 = vmatprep.subr.mxu0 0.0
        %2877 = vmatpush1.msra.mxu0 0.0
        %2878 = vmatprep.subr.mxu0 0.0
        %2879 = vmatpush1.msra.mxu0 0.0
        %2880 = vmatprep.subr.mxu0 0.0
        %2881 = vmatpush1.msra.mxu0 0.0
        %2882 = vmatprep.subr.mxu0 0.0
        %2883 = vmatpush1.msra.mxu0 0.0
        %2884 = vmatprep.subr.mxu0 0.0
        %2885 = vmatpush1.msra.mxu0 0.0
        %2886 = vmatprep.subr.mxu0 0.0
        %2887 = vmatpush1.msra.mxu0 0.0
        %2888 = vmatprep.subr.mxu0 0.0
        %2889 = vmatpush1.msra.mxu0 0.0
        %2890 = vmatprep.subr.mxu0 0.0
        %2891 = vmatpush1.msra.mxu0 0.0
        %2892 = vmatprep.subr.mxu0 0.0
        %2893 = vmatpush1.msra.mxu0 0.0
        %2894 = vmatprep.subr.mxu0 0.0
        %2895 = vmatpush1.msra.mxu0 0.0
        %2896 = vmatprep.subr.mxu0 0.0
        %2897 = vmatpush1.msra.mxu0 0.0
        %2898 = vmatprep.subr.mxu0 0.0
        %2899 = vmatpush1.msra.mxu0 0.0
        %2900 = vmatprep.subr.mxu0 0.0
        %2901 = vmatpush1.msra.mxu0 0.0
        %2902 = vmatprep.subr.mxu0 0.0
        %2903 = vmatpush1.msra.mxu0 0.0
        %2904 = vmatprep.subr.mxu0 0.0
        %2905 = vmatpush1.msra.mxu0 0.0
        %2906 = vmatprep.subr.mxu0 0.0
        %2907 = vmatpush1.msra.mxu0 0.0
        %2908 = vmatprep.mubr.f32.mxu0 0.0
        %2909 = vmatmul.mubr.f32.gmra.mrb[0].mxu0 %v2842
        %v2910 = vpop.f32.mrb[0].mxu0
        %v2911 = vadd.f32 0.0, %v2910
        %v2912 = vpop.f32.mrb[0].mxu0
        %2913 = vdwg.mxu0
        %v2915 = vsel %vm468, %v2170, 0
        %2917 = vmatprep.subr.mxu0 0.0
        %2918 = vmatpush1.msra.mxu0 %v493
        %2919 = vmatprep.subr.mxu0 0.0
        %2920 = vmatpush1.msra.mxu0 %v494
        %2921 = vmatprep.subr.mxu0 0.0
        %2922 = vmatpush1.msra.mxu0 0.0
        %2923 = vmatprep.subr.mxu0 0.0
        %2924 = vmatpush1.msra.mxu0 0.0
        %2925 = vmatprep.subr.mxu0 0.0
        %2926 = vmatpush1.msra.mxu0 0.0
        %2927 = vmatprep.subr.mxu0 0.0
        %2928 = vmatpush1.msra.mxu0 0.0
        %2929 = vmatprep.subr.mxu0 0.0
        %2930 = vmatpush1.msra.mxu0 0.0
        %2931 = vmatprep.subr.mxu0 0.0
        %2932 = vmatpush1.msra.mxu0 0.0
        %2933 = vmatprep.subr.mxu0 0.0
        %2934 = vmatpush1.msra.mxu0 0.0
        %2935 = vmatprep.subr.mxu0 0.0
        %2936 = vmatpush1.msra.mxu0 0.0
        %2937 = vmatprep.subr.mxu0 0.0
        %2938 = vmatpush1.msra.mxu0 0.0
        %2939 = vmatprep.subr.mxu0 0.0
        %2940 = vmatpush1.msra.mxu0 0.0
        %2941 = vmatprep.subr.mxu0 0.0
        %2942 = vmatpush1.msra.mxu0 0.0
        %2943 = vmatprep.subr.mxu0 0.0
        %2944 = vmatpush1.msra.mxu0 0.0
        %2945 = vmatprep.subr.mxu0 0.0
        %2946 = vmatpush1.msra.mxu0 0.0
        %2947 = vmatprep.subr.mxu0 0.0
        %2948 = vmatpush1.msra.mxu0 0.0
        %2949 = vmatprep.subr.mxu0 0.0
        %2950 = vmatpush1.msra.mxu0 0.0
        %2951 = vmatprep.subr.mxu0 0.0
        %2952 = vmatpush1.msra.mxu0 0.0
        %2953 = vmatprep.subr.mxu0 0.0
        %2954 = vmatpush1.msra.mxu0 0.0
        %2955 = vmatprep.subr.mxu0 0.0
        %2956 = vmatpush1.msra.mxu0 0.0
        %2957 = vmatprep.subr.mxu0 0.0
        %2958 = vmatpush1.msra.mxu0 0.0
        %2959 = vmatprep.subr.mxu0 0.0
        %2960 = vmatpush1.msra.mxu0 0.0
        %2961 = vmatprep.subr.mxu0 0.0
        %2962 = vmatpush1.msra.mxu0 0.0
        %2963 = vmatprep.subr.mxu0 0.0
        %2964 = vmatpush1.msra.mxu0 0.0
        %2965 = vmatprep.subr.mxu0 0.0
        %2966 = vmatpush1.msra.mxu0 0.0
        %2967 = vmatprep.subr.mxu0 0.0
        %2968 = vmatpush1.msra.mxu0 0.0
        %2969 = vmatprep.subr.mxu0 0.0
        %2970 = vmatpush1.msra.mxu0 0.0
        %2971 = vmatprep.subr.mxu0 0.0
        %2972 = vmatpush1.msra.mxu0 0.0
        %2973 = vmatprep.subr.mxu0 0.0
        %2974 = vmatpush1.msra.mxu0 0.0
        %2975 = vmatprep.subr.mxu0 0.0
        %2976 = vmatpush1.msra.mxu0 0.0
        %2977 = vmatprep.subr.mxu0 0.0
        %2978 = vmatpush1.msra.mxu0 0.0
        %2979 = vmatprep.subr.mxu0 0.0
        %2980 = vmatpush1.msra.mxu0 0.0
        %2981 = vmatprep.mubr.f32.mxu0 0.0
        %2982 = vmatmul.mubr.f32.gmra.mrb[0].mxu0 %v2915
        %v2983 = vpop.f32.mrb[0].mxu0
        %v2984 = vadd.f32 0.0, %v2983
        %v2985 = vpop.f32.mrb[0].mxu0
        %2986 = vdwg.mxu0
        %v2988 = vsel %vm468, %v2240, 0
        %2990 = vmatprep.subr.mxu0 0.0
        %2991 = vmatpush1.msra.mxu0 %v497
        %2992 = vmatprep.subr.mxu0 0.0
        %2993 = vmatpush1.msra.mxu0 %v498
        %2994 = vmatprep.subr.mxu0 0.0
        %2995 = vmatpush1.msra.mxu0 0.0
        %2996 = vmatprep.subr.mxu0 0.0
        %2997 = vmatpush1.msra.mxu0 0.0
        %2998 = vmatprep.subr.mxu0 0.0
        %2999 = vmatpush1.msra.mxu0 0.0
        %3000 = vmatprep.subr.mxu0 0.0
        %3001 = vmatpush1.msra.mxu0 0.0
        %3002 = vmatprep.subr.mxu0 0.0
        %3003 = vmatpush1.msra.mxu0 0.0
        %3004 = vmatprep.subr.mxu0 0.0
        %3005 = vmatpush1.msra.mxu0 0.0
        %3006 = vmatprep.subr.mxu0 0.0
        %3007 = vmatpush1.msra.mxu0 0.0
        %3008 = vmatprep.subr.mxu0 0.0
        %3009 = vmatpush1.msra.mxu0 0.0
        %3010 = vmatprep.subr.mxu0 0.0
        %3011 = vmatpush1.msra.mxu0 0.0
        %3012 = vmatprep.subr.mxu0 0.0
        %3013 = vmatpush1.msra.mxu0 0.0
        %3014 = vmatprep.subr.mxu0 0.0
        %3015 = vmatpush1.msra.mxu0 0.0
        %3016 = vmatprep.subr.mxu0 0.0
        %3017 = vmatpush1.msra.mxu0 0.0
        %3018 = vmatprep.subr.mxu0 0.0
        %3019 = vmatpush1.msra.mxu0 0.0
        %3020 = vmatprep.subr.mxu0 0.0
        %3021 = vmatpush1.msra.mxu0 0.0
        %3022 = vmatprep.subr.mxu0 0.0
        %3023 = vmatpush1.msra.mxu0 0.0
        %3024 = vmatprep.subr.mxu0 0.0
        %3025 = vmatpush1.msra.mxu0 0.0
        %3026 = vmatprep.subr.mxu0 0.0
        %3027 = vmatpush1.msra.mxu0 0.0
        %3028 = vmatprep.subr.mxu0 0.0
        %3029 = vmatpush1.msra.mxu0 0.0
        %3030 = vmatprep.subr.mxu0 0.0
        %3031 = vmatpush1.msra.mxu0 0.0
        %3032 = vmatprep.subr.mxu0 0.0
        %3033 = vmatpush1.msra.mxu0 0.0
        %3034 = vmatprep.subr.mxu0 0.0
        %3035 = vmatpush1.msra.mxu0 0.0
        %3036 = vmatprep.subr.mxu0 0.0
        %3037 = vmatpush1.msra.mxu0 0.0
        %3038 = vmatprep.subr.mxu0 0.0
        %3039 = vmatpush1.msra.mxu0 0.0
        %3040 = vmatprep.subr.mxu0 0.0
        %3041 = vmatpush1.msra.mxu0 0.0
        %3042 = vmatprep.subr.mxu0 0.0
        %3043 = vmatpush1.msra.mxu0 0.0
        %3044 = vmatprep.subr.mxu0 0.0
        %3045 = vmatpush1.msra.mxu0 0.0
        %3046 = vmatprep.subr.mxu0 0.0
        %3047 = vmatpush1.msra.mxu0 0.0
        %3048 = vmatprep.subr.mxu0 0.0
        %3049 = vmatpush1.msra.mxu0 0.0
        %3050 = vmatprep.subr.mxu0 0.0
        %3051 = vmatpush1.msra.mxu0 0.0
        %3052 = vmatprep.subr.mxu0 0.0
        %3053 = vmatpush1.msra.mxu0 0.0
        %3054 = vmatprep.mubr.f32.mxu0 0.0
        %3055 = vmatmul.mubr.f32.gmra.mrb[0].mxu0 %v2988
        %v3056 = vpop.f32.mrb[0].mxu0
        %v3057 = vadd.f32 0.0, %v3056
        %v3058 = vpop.f32.mrb[0].mxu0
        %3059 = vdwg.mxu0
        %v3061 = vsel %vm468, %v2310, 0
        %3063 = vmatprep.subr.mxu0 0.0
        %3064 = vmatpush1.msra.mxu0 %v501
        %3065 = vmatprep.subr.mxu0 0.0
        %3066 = vmatpush1.msra.mxu0 %v502
        %3067 = vmatprep.subr.mxu0 0.0
        %3068 = vmatpush1.msra.mxu0 0.0
        %3069 = vmatprep.subr.mxu0 0.0
        %3070 = vmatpush1.msra.mxu0 0.0
        %3071 = vmatprep.subr.mxu0 0.0
        %3072 = vmatpush1.msra.mxu0 0.0
        %3073 = vmatprep.subr.mxu0 0.0
        %3074 = vmatpush1.msra.mxu0 0.0
        %3075 = vmatprep.subr.mxu0 0.0
        %3076 = vmatpush1.msra.mxu0 0.0
        %3077 = vmatprep.subr.mxu0 0.0
        %3078 = vmatpush1.msra.mxu0 0.0
        %3079 = vmatprep.subr.mxu0 0.0
        %3080 = vmatpush1.msra.mxu0 0.0
        %3081 = vmatprep.subr.mxu0 0.0
        %3082 = vmatpush1.msra.mxu0 0.0
        %3083 = vmatprep.subr.mxu0 0.0
        %3084 = vmatpush1.msra.mxu0 0.0
        %3085 = vmatprep.subr.mxu0 0.0
        %3086 = vmatpush1.msra.mxu0 0.0
        %3087 = vmatprep.subr.mxu0 0.0
        %3088 = vmatpush1.msra.mxu0 0.0
        %3089 = vmatprep.subr.mxu0 0.0
        %3090 = vmatpush1.msra.mxu0 0.0
        %3091 = vmatprep.subr.mxu0 0.0
        %3092 = vmatpush1.msra.mxu0 0.0
        %3093 = vmatprep.subr.mxu0 0.0
        %3094 = vmatpush1.msra.mxu0 0.0
        %3095 = vmatprep.subr.mxu0 0.0
        %3096 = vmatpush1.msra.mxu0 0.0
        %3097 = vmatprep.subr.mxu0 0.0
        %3098 = vmatpush1.msra.mxu0 0.0
        %3099 = vmatprep.subr.mxu0 0.0
        %3100 = vmatpush1.msra.mxu0 0.0
        %3101 = vmatprep.subr.mxu0 0.0
        %3102 = vmatpush1.msra.mxu0 0.0
        %3103 = vmatprep.subr.mxu0 0.0
        %3104 = vmatpush1.msra.mxu0 0.0
        %3105 = vmatprep.subr.mxu0 0.0
        %3106 = vmatpush1.msra.mxu0 0.0
        %3107 = vmatprep.subr.mxu0 0.0
        %3108 = vmatpush1.msra.mxu0 0.0
        %3109 = vmatprep.subr.mxu0 0.0
        %3110 = vmatpush1.msra.mxu0 0.0
        %3111 = vmatprep.subr.mxu0 0.0
        %3112 = vmatpush1.msra.mxu0 0.0
        %3113 = vmatprep.subr.mxu0 0.0
        %3114 = vmatpush1.msra.mxu0 0.0
        %3115 = vmatprep.subr.mxu0 0.0
        %3116 = vmatpush1.msra.mxu0 0.0
        %3117 = vmatprep.subr.mxu0 0.0
        %3118 = vmatpush1.msra.mxu0 0.0
        %3119 = vmatprep.subr.mxu0 0.0
        %3120 = vmatpush1.msra.mxu0 0.0
        %3121 = vmatprep.subr.mxu0 0.0
        %3122 = vmatpush1.msra.mxu0 0.0
        %3123 = vmatprep.subr.mxu0 0.0
        %3124 = vmatpush1.msra.mxu0 0.0
        %3125 = vmatprep.subr.mxu0 0.0
        %3126 = vmatpush1.msra.mxu0 0.0
        %3127 = vmatprep.mubr.f32.mxu0 0.0
        %3128 = vmatmul.mubr.f32.gmra.mrb[0].mxu0 %v3061
        %v3129 = vpop.f32.mrb[0].mxu0
        %v3130 = vadd.f32 0.0, %v3129
        %v3131 = vpop.f32.mrb[0].mxu0
        %3132 = vdwg.mxu0
        %v3134 = vsel %vm468, %v2380, 0
        %3136 = vmatprep.subr.mxu0 0.0
        %3137 = vmatpush1.msra.mxu0 %v505
        %3138 = vmatprep.subr.mxu0 0.0
        %3139 = vmatpush1.msra.mxu0 %v506
        %3140 = vmatprep.subr.mxu0 0.0
        %3141 = vmatpush1.msra.mxu0 0.0
        %3142 = vmatprep.subr.mxu0 0.0
        %3143 = vmatpush1.msra.mxu0 0.0
        %3144 = vmatprep.subr.mxu0 0.0
        %3145 = vmatpush1.msra.mxu0 0.0
        %3146 = vmatprep.subr.mxu0 0.0
        %3147 = vmatpush1.msra.mxu0 0.0
        %3148 = vmatprep.subr.mxu0 0.0
        %3149 = vmatpush1.msra.mxu0 0.0
        %3150 = vmatprep.subr.mxu0 0.0
        %3151 = vmatpush1.msra.mxu0 0.0
        %3152 = vmatprep.subr.mxu0 0.0
        %3153 = vmatpush1.msra.mxu0 0.0
        %3154 = vmatprep.subr.mxu0 0.0
        %3155 = vmatpush1.msra.mxu0 0.0
        %3156 = vmatprep.subr.mxu0 0.0
        %3157 = vmatpush1.msra.mxu0 0.0
        %3158 = vmatprep.subr.mxu0 0.0
        %3159 = vmatpush1.msra.mxu0 0.0
        %3160 = vmatprep.subr.mxu0 0.0
        %3161 = vmatpush1.msra.mxu0 0.0
        %3162 = vmatprep.subr.mxu0 0.0
        %3163 = vmatpush1.msra.mxu0 0.0
        %3164 = vmatprep.subr.mxu0 0.0
        %3165 = vmatpush1.msra.mxu0 0.0
        %3166 = vmatprep.subr.mxu0 0.0
        %3167 = vmatpush1.msra.mxu0 0.0
        %3168 = vmatprep.subr.mxu0 0.0
        %3169 = vmatpush1.msra.mxu0 0.0
        %3170 = vmatprep.subr.mxu0 0.0
        %3171 = vmatpush1.msra.mxu0 0.0
        %3172 = vmatprep.subr.mxu0 0.0
        %3173 = vmatpush1.msra.mxu0 0.0
        %3174 = vmatprep.subr.mxu0 0.0
        %3175 = vmatpush1.msra.mxu0 0.0
        %3176 = vmatprep.subr.mxu0 0.0
        %3177 = vmatpush1.msra.mxu0 0.0
        %3178 = vmatprep.subr.mxu0 0.0
        %3179 = vmatpush1.msra.mxu0 0.0
        %3180 = vmatprep.subr.mxu0 0.0
        %3181 = vmatpush1.msra.mxu0 0.0
        %3182 = vmatprep.subr.mxu0 0.0
        %3183 = vmatpush1.msra.mxu0 0.0
        %3184 = vmatprep.subr.mxu0 0.0
        %3185 = vmatpush1.msra.mxu0 0.0
        %3186 = vmatprep.subr.mxu0 0.0
        %3187 = vmatpush1.msra.mxu0 0.0
        %3188 = vmatprep.subr.mxu0 0.0
        %3189 = vmatpush1.msra.mxu0 0.0
        %3190 = vmatprep.subr.mxu0 0.0
        %3191 = vmatpush1.msra.mxu0 0.0
        %3192 = vmatprep.subr.mxu0 0.0
        %3193 = vmatpush1.msra.mxu0 0.0
        %3194 = vmatprep.subr.mxu0 0.0
        %3195 = vmatpush1.msra.mxu0 0.0
        %3196 = vmatprep.subr.mxu0 0.0
        %3197 = vmatpush1.msra.mxu0 0.0
        %3198 = vmatprep.subr.mxu0 0.0
        %3199 = vmatpush1.msra.mxu0 0.0
        %3200 = vmatprep.mubr.f32.mxu0 0.0
        %3201 = vmatmul.mubr.f32.gmra.mrb[0].mxu0 %v3134
        %v3202 = vpop.f32.mrb[0].mxu0
        %v3203 = vadd.f32 0.0, %v3202
        %v3204 = vpop.f32.mrb[0].mxu0
        %3205 = vdwg.mxu0
        %v3207 = vsel %vm468, %v2450, 0
        %3209 = vmatprep.subr.mxu0 0.0
        %3210 = vmatpush1.msra.mxu0 %v509
        %3211 = vmatprep.subr.mxu0 0.0
        %3212 = vmatpush1.msra.mxu0 %v510
        %3213 = vmatprep.subr.mxu0 0.0
        %3214 = vmatpush1.msra.mxu0 0.0
        %3215 = vmatprep.subr.mxu0 0.0
        %3216 = vmatpush1.msra.mxu0 0.0
        %3217 = vmatprep.subr.mxu0 0.0
        %3218 = vmatpush1.msra.mxu0 0.0
        %3219 = vmatprep.subr.mxu0 0.0
        %3220 = vmatpush1.msra.mxu0 0.0
        %3221 = vmatprep.subr.mxu0 0.0
        %3222 = vmatpush1.msra.mxu0 0.0
        %3223 = vmatprep.subr.mxu0 0.0
        %3224 = vmatpush1.msra.mxu0 0.0
        %3225 = vmatprep.subr.mxu0 0.0
        %3226 = vmatpush1.msra.mxu0 0.0
        %3227 = vmatprep.subr.mxu0 0.0
        %3228 = vmatpush1.msra.mxu0 0.0
        %3229 = vmatprep.subr.mxu0 0.0
        %3230 = vmatpush1.msra.mxu0 0.0
        %3231 = vmatprep.subr.mxu0 0.0
        %3232 = vmatpush1.msra.mxu0 0.0
        %3233 = vmatprep.subr.mxu0 0.0
        %3234 = vmatpush1.msra.mxu0 0.0
        %3235 = vmatprep.subr.mxu0 0.0
        %3236 = vmatpush1.msra.mxu0 0.0
        %3237 = vmatprep.subr.mxu0 0.0
        %3238 = vmatpush1.msra.mxu0 0.0
        %3239 = vmatprep.subr.mxu0 0.0
        %3240 = vmatpush1.msra.mxu0 0.0
        %3241 = vmatprep.subr.mxu0 0.0
        %3242 = vmatpush1.msra.mxu0 0.0
        %3243 = vmatprep.subr.mxu0 0.0
        %3244 = vmatpush1.msra.mxu0 0.0
        %3245 = vmatprep.subr.mxu0 0.0
        %3246 = vmatpush1.msra.mxu0 0.0
        %3247 = vmatprep.subr.mxu0 0.0
        %3248 = vmatpush1.msra.mxu0 0.0
        %3249 = vmatprep.subr.mxu0 0.0
        %3250 = vmatpush1.msra.mxu0 0.0
        %3251 = vmatprep.subr.mxu0 0.0
        %3252 = vmatpush1.msra.mxu0 0.0
        %3253 = vmatprep.subr.mxu0 0.0
        %3254 = vmatpush1.msra.mxu0 0.0
        %3255 = vmatprep.subr.mxu0 0.0
        %3256 = vmatpush1.msra.mxu0 0.0
        %3257 = vmatprep.subr.mxu0 0.0
        %3258 = vmatpush1.msra.mxu0 0.0
        %3259 = vmatprep.subr.mxu0 0.0
        %3260 = vmatpush1.msra.mxu0 0.0
        %3261 = vmatprep.subr.mxu0 0.0
        %3262 = vmatpush1.msra.mxu0 0.0
        %3263 = vmatprep.subr.mxu0 0.0
        %3264 = vmatpush1.msra.mxu0 0.0
        %3265 = vmatprep.subr.mxu0 0.0
        %3266 = vmatpush1.msra.mxu0 0.0
        %3267 = vmatprep.subr.mxu0 0.0
        %3268 = vmatpush1.msra.mxu0 0.0
        %3269 = vmatprep.subr.mxu0 0.0
        %3270 = vmatpush1.msra.mxu0 0.0
        %3271 = vmatprep.subr.mxu0 0.0
        %3272 = vmatpush1.msra.mxu0 0.0
        %3273 = vmatprep.mubr.f32.mxu0 0.0
        %3274 = vmatmul.mubr.f32.gmra.mrb[0].mxu0 %v3207
        %v3275 = vpop.f32.mrb[0].mxu0
        %v3276 = vadd.f32 0.0, %v3275
        %v3277 = vpop.f32.mrb[0].mxu0
        %3278 = vdwg.mxu0
        %v3280 = vsel %vm468, %v2520, 0
        %3282 = vmatprep.subr.mxu0 0.0
        %3283 = vmatpush1.msra.mxu0 %v513
        %3284 = vmatprep.subr.mxu0 0.0
        %3285 = vmatpush1.msra.mxu0 %v514
        %3286 = vmatprep.subr.mxu0 0.0
        %3287 = vmatpush1.msra.mxu0 0.0
        %3288 = vmatprep.subr.mxu0 0.0
        %3289 = vmatpush1.msra.mxu0 0.0
        %3290 = vmatprep.subr.mxu0 0.0
        %3291 = vmatpush1.msra.mxu0 0.0
        %3292 = vmatprep.subr.mxu0 0.0
        %3293 = vmatpush1.msra.mxu0 0.0
        %3294 = vmatprep.subr.mxu0 0.0
        %3295 = vmatpush1.msra.mxu0 0.0
        %3296 = vmatprep.subr.mxu0 0.0
        %3297 = vmatpush1.msra.mxu0 0.0
        %3298 = vmatprep.subr.mxu0 0.0
        %3299 = vmatpush1.msra.mxu0 0.0
        %3300 = vmatprep.subr.mxu0 0.0
        %3301 = vmatpush1.msra.mxu0 0.0
        %3302 = vmatprep.subr.mxu0 0.0
        %3303 = vmatpush1.msra.mxu0 0.0
        %3304 = vmatprep.subr.mxu0 0.0
        %3305 = vmatpush1.msra.mxu0 0.0
        %3306 = vmatprep.subr.mxu0 0.0
        %3307 = vmatpush1.msra.mxu0 0.0
        %3308 = vmatprep.subr.mxu0 0.0
        %3309 = vmatpush1.msra.mxu0 0.0
        %3310 = vmatprep.subr.mxu0 0.0
        %3311 = vmatpush1.msra.mxu0 0.0
        %3312 = vmatprep.subr.mxu0 0.0
        %3313 = vmatpush1.msra.mxu0 0.0
        %3314 = vmatprep.subr.mxu0 0.0
        %3315 = vmatpush1.msra.mxu0 0.0
        %3316 = vmatprep.subr.mxu0 0.0
        %3317 = vmatpush1.msra.mxu0 0.0
        %3318 = vmatprep.subr.mxu0 0.0
        %3319 = vmatpush1.msra.mxu0 0.0
        %3320 = vmatprep.subr.mxu0 0.0
        %3321 = vmatpush1.msra.mxu0 0.0
        %3322 = vmatprep.subr.mxu0 0.0
        %3323 = vmatpush1.msra.mxu0 0.0
        %3324 = vmatprep.subr.mxu0 0.0
        %3325 = vmatpush1.msra.mxu0 0.0
        %3326 = vmatprep.subr.mxu0 0.0
        %3327 = vmatpush1.msra.mxu0 0.0
        %3328 = vmatprep.subr.mxu0 0.0
        %3329 = vmatpush1.msra.mxu0 0.0
        %3330 = vmatprep.subr.mxu0 0.0
        %3331 = vmatpush1.msra.mxu0 0.0
        %3332 = vmatprep.subr.mxu0 0.0
        %3333 = vmatpush1.msra.mxu0 0.0
        %3334 = vmatprep.subr.mxu0 0.0
        %3335 = vmatpush1.msra.mxu0 0.0
        %3336 = vmatprep.subr.mxu0 0.0
        %3337 = vmatpush1.msra.mxu0 0.0
        %3338 = vmatprep.subr.mxu0 0.0
        %3339 = vmatpush1.msra.mxu0 0.0
        %3340 = vmatprep.subr.mxu0 0.0
        %3341 = vmatpush1.msra.mxu0 0.0
        %3342 = vmatprep.subr.mxu0 0.0
        %3343 = vmatpush1.msra.mxu0 0.0
        %3344 = vmatprep.subr.mxu0 0.0
        %3345 = vmatpush1.msra.mxu0 0.0
        %3346 = vmatprep.mubr.f32.mxu0 0.0
        %3347 = vmatmul.mubr.f32.gmra.mrb[0].mxu0 %v3280
        %v3348 = vpop.f32.mrb[0].mxu0
        %v3349 = vadd.f32 0.0, %v3348
        %v3350 = vpop.f32.mrb[0].mxu0
        %3351 = vdwg.mxu0
        %v3352 = vcombine.low %v2838, %v2984
        %v3354 = vunpack.c.l.s4 1983009808
        %v3355 = vunpack.c.0.s8 %v3354
        %v3356 = vlaneseq
        %v3357 = vshrl.u32 %v3356, 7
        %v3358 = vsub.s32 %v3355, %v3357
        %v3359 = vrot.slane %v3352, %v3358
        %v3360 = vcombine.low %v2911, %v3057
        %v3362 = vunpack.c.l.s4 1983009808
        %v3363 = vunpack.c.0.s8 %v3362
        %v3364 = vlaneseq
        %v3365 = vshrl.u32 %v3364, 7
        %v3366 = vsub.s32 %v3363, %v3365
        %v3367 = vrot.slane %v3360, %v3366
        %v3368 = vcombine.low %v3130, %v3276
        %v3370 = vunpack.c.l.s4 1983009808
        %v3371 = vunpack.c.0.s8 %v3370
        %v3372 = vlaneseq
        %v3373 = vshrl.u32 %v3372, 7
        %v3374 = vsub.s32 %v3371, %v3373
        %v3375 = vrot.slane %v3368, %v3374
        %v3376 = vcombine.low %v3203, %v3349
        %v3378 = vunpack.c.l.s4 1983009808
        %v3379 = vunpack.c.0.s8 %v3378
        %v3380 = vlaneseq
        %v3381 = vshrl.u32 %v3380, 7
        %v3382 = vsub.s32 %v3379, %v3381
        %v3383 = vrot.slane %v3376, %v3382
        %v3384 = vcombine.low %v3359, %v3367
        %v3385 = vcombine.high %v3359, %v3367
        %v3387 = vunpack.c.l.s4 1934713408
        %v3388 = vunpack.c.0.s8 %v3387
        %v3389 = vlaneseq
        %v3390 = vshrl.u32 %v3389, 7
        %v3391 = vsub.s32 %v3388, %v3390
        %v3392 = vrot.slane %v3384, %v3391
        %v3394 = vunpack.c.l.s4 1934713408
        %v3395 = vunpack.c.0.s8 %v3394
        %v3396 = vlaneseq
        %v3397 = vshrl.u32 %v3396, 7
        %v3398 = vsub.s32 %v3395, %v3397
        %v3399 = vrot.slane %v3385, %v3398
        %v3400 = vcombine.low %v3375, %v3383
        %v3401 = vcombine.high %v3375, %v3383
        %v3403 = vunpack.c.l.s4 1934713408
        %v3404 = vunpack.c.0.s8 %v3403
        %v3405 = vlaneseq
        %v3406 = vshrl.u32 %v3405, 7
        %v3407 = vsub.s32 %v3404, %v3406
        %v3408 = vrot.slane %v3400, %v3407
        %v3410 = vunpack.c.l.s4 1934713408
        %v3411 = vunpack.c.0.s8 %v3410
        %v3412 = vlaneseq
        %v3413 = vshrl.u32 %v3412, 7
        %v3414 = vsub.s32 %v3411, %v3413
        %v3415 = vrot.slane %v3401, %v3414
        %v3416 = vcombine.low %v3392, %v3408
        %v3417 = vcombine.high %v3392, %v3408
        %v3418 = vcombine.low %v3399, %v3415
        %v3419 = vcombine.high %v3399, %v3415
        %v3420 = vcombine.low %v3416, %v3418
        %v3421 = vcombine.high %v3416, %v3418
        %v3423 = vunpack.c.l.s4 1983009808
        %v3424 = vunpack.c.0.s8 %v3423
        %v3425 = vlaneseq
        %v3426 = vshrl.u32 %v3425, 7
        %v3427 = vsub.s32 %v3424, %v3426
        %v3428 = vrot.slane %v3420, %v3427
        %v3430 = vunpack.c.l.s4 1983009808
        %v3431 = vunpack.c.0.s8 %v3430
        %v3432 = vlaneseq
        %v3433 = vshrl.u32 %v3432, 7
        %v3434 = vsub.s32 %v3431, %v3433
        %v3435 = vrot.slane %v3421, %v3434
        %v3436 = vcombine.low %v3417, %v3419
        %v3437 = vcombine.high %v3417, %v3419
        %v3439 = vunpack.c.l.s4 1983009808
        %v3440 = vunpack.c.0.s8 %v3439
        %v3441 = vlaneseq
        %v3442 = vshrl.u32 %v3441, 7
        %v3443 = vsub.s32 %v3440, %v3442
        %v3444 = vrot.slane %v3436, %v3443
        %v3446 = vunpack.c.l.s4 1983009808
        %v3447 = vunpack.c.0.s8 %v3446
        %v3448 = vlaneseq
        %v3449 = vshrl.u32 %v3448, 7
        %v3450 = vsub.s32 %v3447, %v3449
        %v3451 = vrot.slane %v3437, %v3450
        %v3452 = vcombine.low %v3428, %v3444
        %v3453 = vcombine.high %v3428, %v3444
        %v3455 = vunpack.c.l.s4 1934713408
        %v3456 = vunpack.c.0.s8 %v3455
        %v3457 = vlaneseq
        %v3458 = vshrl.u32 %v3457, 7
        %v3459 = vsub.s32 %v3456, %v3458
        %v3460 = vrot.slane %v3452, %v3459
        %v3462 = vunpack.c.l.s4 1934713408
        %v3463 = vunpack.c.0.s8 %v3462
        %v3464 = vlaneseq
        %v3465 = vshrl.u32 %v3464, 7
        %v3466 = vsub.s32 %v3463, %v3465
        %v3467 = vrot.slane %v3453, %v3466
        %v3468 = vcombine.low %v3435, %v3451
        %v3469 = vcombine.high %v3435, %v3451
        %v3471 = vunpack.c.l.s4 1934713408
        %v3472 = vunpack.c.0.s8 %v3471
        %v3473 = vlaneseq
        %v3474 = vshrl.u32 %v3473, 7
        %v3475 = vsub.s32 %v3472, %v3474
        %v3476 = vrot.slane %v3468, %v3475
        %v3478 = vunpack.c.l.s4 1934713408
        %v3479 = vunpack.c.0.s8 %v3478
        %v3480 = vlaneseq
        %v3481 = vshrl.u32 %v3480, 7
        %v3482 = vsub.s32 %v3479, %v3481
        %v3483 = vrot.slane %v3469, %v3482
        %v3484 = vcombine.high %v3460, 0.0
        %v3485 = vcombine.high %v3467, 0.0
        %v3486 = vcombine.high %v3476, 0.0
        %v3487 = vcombine.high %v3483, 0.0
        %3489 = vrot.lane.b32.xlu0 %v3484, 16
        %v3490 = vpop.permute.xlu0 %3489
        %3493 = vrot.lane.b32.xlu0 %v3467, 32
        %v3494 = vpop.permute.xlu0 %3493
        %3497 = vrot.lane.b32.xlu0 %v3485, 48
        %v3498 = vpop.permute.xlu0 %3497
        %3501 = vrot.lane.b32.xlu0 %v3476, 64
        %v3502 = vpop.permute.xlu0 %3501
        %3505 = vrot.lane.b32.xlu0 %v3486, 80
        %v3506 = vpop.permute.xlu0 %3505
        %3509 = vrot.lane.b32.xlu0 %v3483, 96
        %v3510 = vpop.permute.xlu0 %3509
        %3513 = vrot.lane.b32.xlu0 %v3487, 112
        %v3514 = vpop.permute.xlu0 %3513
        %v3516 = vsel %vm468, %v3460, %v3490
        %v3517 = vsel %vm470, %v3516, %v3494
        %v3518 = vsel %vm472, %v3517, %v3498
        %v3519 = vsel %vm474, %v3518, %v3502
        %v3520 = vsel %vm476, %v3519, %v3506
        %v3521 = vsel %vm478, %v3520, %v3510
        %v3522 = vsel %vm480, %v3521, %v3514
        %3523 = vst [vmem:[#allocation3 + $0x10] sm:$0xf] %v3522
        %v3524 = vld [vmem:[%s2] sm:$0x3f]
        %v3525 = vld [vmem:[#allocation3] sm:$0xff]
        %v3526 = vld [vmem:[#allocation3 + $0x8] sm:$0xff]
        %v3527 = vld [vmem:[#allocation3 + $0x10] sm:$0xf]
        %v3528 = vld [vmem:[%s3] sm:$0x3f]
        %3530 = vset.pattern.permute.xlu0 0
        %3531 = vperm.xlu0 %3530, %v3528
        %v3532 = vpop.permute.xlu0 %3531
        %vm3534 = vcmask 162816
        %v3536 = vsel %vm3534, %v3524, 0
        %vm3538 = vcmask 1043456
        %v3540 = vsel %vm3538, %v3527, 0
        %3542 = vmatprep.subr.mxu0 0.0
        %3543 = vmatpush1.msra.mxu0 %v3525
        %3544 = vmatprep.subr.mxu0 0.0
        %3545 = vmatpush1.msra.mxu0 %v3526
        %3546 = vmatprep.subr.mxu0 0.0
        %3547 = vmatpush1.msra.mxu0 %v3540
        %3548 = vmatprep.subr.mxu0 0.0
        %3549 = vmatpush1.msra.mxu0 0.0
        %3550 = vmatprep.subr.mxu0 0.0
        %3551 = vmatpush1.msra.mxu0 0.0
        %3552 = vmatprep.subr.mxu0 0.0
        %3553 = vmatpush1.msra.mxu0 0.0
        %3554 = vmatprep.subr.mxu0 0.0
        %3555 = vmatpush1.msra.mxu0 0.0
        %3556 = vmatprep.subr.mxu0 0.0
        %3557 = vmatpush1.msra.mxu0 0.0
        %3558 = vmatprep.subr.mxu0 0.0
        %3559 = vmatpush1.msra.mxu0 0.0
        %3560 = vmatprep.subr.mxu0 0.0
        %3561 = vmatpush1.msra.mxu0 0.0
        %3562 = vmatprep.subr.mxu0 0.0
        %3563 = vmatpush1.msra.mxu0 0.0
        %3564 = vmatprep.subr.mxu0 0.0
        %3565 = vmatpush1.msra.mxu0 0.0
        %3566 = vmatprep.subr.mxu0 0.0
        %3567 = vmatpush1.msra.mxu0 0.0
        %3568 = vmatprep.subr.mxu0 0.0
        %3569 = vmatpush1.msra.mxu0 0.0
        %3570 = vmatprep.subr.mxu0 0.0
        %3571 = vmatpush1.msra.mxu0 0.0
        %3572 = vmatprep.subr.mxu0 0.0
        %3573 = vmatpush1.msra.mxu0 0.0
        %3574 = vmatprep.subr.mxu0 0.0
        %3575 = vmatpush1.msra.mxu0 0.0
        %3576 = vmatprep.subr.mxu0 0.0
        %3577 = vmatpush1.msra.mxu0 0.0
        %3578 = vmatprep.subr.mxu0 0.0
        %3579 = vmatpush1.msra.mxu0 0.0
        %3580 = vmatprep.subr.mxu0 0.0
        %3581 = vmatpush1.msra.mxu0 0.0
        %3582 = vmatprep.subr.mxu0 0.0
        %3583 = vmatpush1.msra.mxu0 0.0
        %3584 = vmatprep.subr.mxu0 0.0
        %3585 = vmatpush1.msra.mxu0 0.0
        %3586 = vmatprep.subr.mxu0 0.0
        %3587 = vmatpush1.msra.mxu0 0.0
        %3588 = vmatprep.subr.mxu0 0.0
        %3589 = vmatpush1.msra.mxu0 0.0
        %3590 = vmatprep.subr.mxu0 0.0
        %3591 = vmatpush1.msra.mxu0 0.0
        %3592 = vmatprep.subr.mxu0 0.0
        %3593 = vmatpush1.msra.mxu0 0.0
        %3594 = vmatprep.subr.mxu0 0.0
        %3595 = vmatpush1.msra.mxu0 0.0
        %3596 = vmatprep.subr.mxu0 0.0
        %3597 = vmatpush1.msra.mxu0 0.0
        %3598 = vmatprep.subr.mxu0 0.0
        %3599 = vmatpush1.msra.mxu0 0.0
        %3600 = vmatprep.subr.mxu0 0.0
        %3601 = vmatpush1.msra.mxu0 0.0
        %3602 = vmatprep.subr.mxu0 0.0
        %3603 = vmatpush1.msra.mxu0 0.0
        %3604 = vmatprep.subr.mxu0 0.0
        %3605 = vmatpush1.msra.mxu0 0.0
        %3606 = vmatprep.mubr.f32.mxu0 0.0
        %3607 = vmatmul.mubr.f32.gmra.mrb[0].mxu0 %v3536
        %v3608 = vpop.f32.mrb[0].mxu0
        %v3609 = vadd.f32 %v3532, %v3608
        %v3610 = vpop.f32.mrb[0].mxu0
        %3611 = vdwg.mxu0
        %3612 = vst [vmem:[%s286] sm:$0x3f] %v3609
        %p3613 = scmp.lt.s32.totalorder %s25, 1
        %s3614 = scalar_select %p3613, %s25, 1
        %p3615 = scmp.lt.s32.totalorder %s26, 0
        %s3616 = scalar_select %p3615, %s26, 0
        %s3617 = sadd.s32 %s3616, %s3614
        %s3618 = smul.addr %s3617, 8
        %s3619 = scalar_lea.vmem %s4, %s3618
        // Predicated region
        $region49: #{tpu_custom_call.1} parent=35 // pred_check
          %p3620 = pneg %p151
        $region50: #{tpu_custom_call.1} parent=35 // pred_check_branch
          %3622 = sbr.rel (%p3620) target = $region52
        $region51: #{tpu_custom_call.1} parent=35 // pred_region
          _
        $region52: #{tpu_custom_call.1} parent=35 // pred_fallthru
          _
      $region36: #{tpu_custom_call.1} parent=5 // pred_fallthru
        _
      %p3623 = scmp.le.s32.totalorder 2, %s16
      // Predicated region
      $region53: #{tpu_custom_call.1} parent=5 // pred_check
        %p3624 = pneg %p3623
      $region54: #{tpu_custom_call.1} parent=5 // pred_check_branch
        %3626 = sbr.rel (%p3624) target = $region56
      $region55: #{tpu_custom_call.1} parent=5 // pred_region
        %s3627 = ssub.s32 %s16, 2
        // Predicated region
        $region57: #{tpu_custom_call.1} parent=55 // pred_check
          %p3628 = pneg %p157
        $region58: #{tpu_custom_call.1} parent=55 // pred_check_branch
          %3630 = sbr.rel (%p3628) target = $region60
        $region59: #{tpu_custom_call.1} parent=55 // pred_region
          %p3631 = scmp.lt.s32.totalorder %s27, 1
          %s3632 = scalar_select %p3631, %s27, 1
          %p3633 = scmp.lt.s32.totalorder %s28, 0
          %s3634 = scalar_select %p3633, %s28, 0
          %s3635 = sadd.s32 %s3634, %s3632
          %s3636 = smul.addr %s3635, 8
          %s3637 = scalar_lea.vmem %s4, %s3636
        $region60: #{tpu_custom_call.1} parent=55 // pred_fallthru
          _
      $region56: #{tpu_custom_call.1} parent=5 // pred_fallthru
        _
    $region6: #{tpu_custom_call.1} parent=1 // loop_footer
      %s20 = sadd.s32 1, %s16
    $region7: #{tpu_custom_call.1} parent=1 // loop_footer_branch
      %15 = sbr.rel target = $region3
    $region8: #{tpu_custom_call.1} parent=1 // loop_exit
      _
    %3638 = vsyncpa [#allocation5], 1
    %s3639 = scalar_lea.sflag [#allocation5], 1
    %3640 = vsyncpa %s3639, 1
    %3641 = vsyncpa [#allocation7], 1
    %s3642 = scalar_lea.sflag [#allocation7], 1
    %3643 = vsyncpa %s3642, 1

</llo_original>
